<compile_context>
chip_gen: v6e
topology: v6e:2x2x1
jax: 0.10.0
libtpu: 0.0.40
codegen_flags: <defaults>
</compile_context>

<pallas_src>
import functools
import math

import jax
import jax.numpy as jnp
import numpy as np
from jax import lax
from jax.experimental import pallas as pl
from jax.experimental.pallas import tpu as pltpu


def _round_up(x, m):
    return (x + m - 1) // m * m


def _const_spec(shape):
    """BlockSpec for a grid-invariant operand (index_map is constant).

    Single-buffered when the running Pallas supports pipeline_mode: default
    double-buffering would reserve 2x VMEM for zero pipelining benefit.
    """
    idx = lambda *_: (0,) * len(shape)
    try:
        return pl.BlockSpec(shape, idx, pipeline_mode=pl.Buffered(1))
    except (TypeError, AttributeError):   # older API without pipeline_mode
        return pl.BlockSpec(shape, idx)


# ----------------------------------------------------------------------------- #
# Stage 1: K / V projections -> bf16 (B, H, Skv, d_k)
# ----------------------------------------------------------------------------- #
def _kv_project_kernel(k_ref, v_ref, wk_ref, wv_ref, ko_ref, vo_ref, *, heads, d_k):
    """One (batch, kv-tile) step: project K and V, split into bf16 per-head slabs."""
    kp = jnp.dot(k_ref[0].astype(jnp.bfloat16), wk_ref[...],
                 preferred_element_type=jnp.float32)           # (TKV, D) f32
    vp = jnp.dot(v_ref[0].astype(jnp.bfloat16), wv_ref[...],
                 preferred_element_type=jnp.float32)           # (TKV, D) f32
    for h in range(heads):                                     # lane-aligned slab copies
        sl = slice(h * d_k, (h + 1) * d_k)
        ko_ref[0, h] = kp[:, sl].astype(jnp.bfloat16)
        vo_ref[0, h] = vp[:, sl].astype(jnp.bfloat16)


def _project_kv(k, v, wk_t, wv_t, *, heads, d_k, tile):
    bs, seq_kv, d_model = k.shape
    n_t = seq_kv // tile
    per_bt = lambda b, t: (b, t, 0)
    per_bht = lambda b, t: (b, 0, t, 0)

    kernel = functools.partial(_kv_project_kernel, heads=heads, d_k=d_k)
    out_shape = jax.ShapeDtypeStruct((bs, heads, seq_kv, d_k), jnp.bfloat16)
    flops = bs * 2 * (2 * seq_kv * d_model * d_model)
    bytes_accessed = int(bs * seq_kv * d_model * (k.dtype.itemsize + v.dtype.itemsize)
                         + 2 * bs * heads * seq_kv * d_k * 2
                         + 2 * d_model * d_model * 2)

    return pl.pallas_call(
        kernel,
        out_shape=(out_shape, out_shape),
        grid_spec=pltpu.PrefetchScalarGridSpec(
            num_scalar_prefetch=0,
            grid=(bs, n_t),
            in_specs=[
                pl.BlockSpec((1, tile, d_model), per_bt),      # k (f32/bf16)
                pl.BlockSpec((1, tile, d_model), per_bt),      # v
                _const_spec((d_model, d_model)),               # Wk^T (bf16)
                _const_spec((d_model, d_model)),               # Wv^T (bf16)
            ],
            out_specs=(
                pl.BlockSpec((1, heads, tile, d_k), per_bht),  # K projected (bf16)
                pl.BlockSpec((1, heads, tile, d_k), per_bht),  # V projected (bf16)
            ),
        ),
        compiler_params=pltpu.CompilerParams(
            dimension_semantics=("parallel", "parallel"),
        ),
        cost_estimate=pl.CostEstimate(flops=flops, transcendentals=0,
                                      bytes_accessed=bytes_accessed),
    )(k, v, wk_t, wv_t)


# ----------------------------------------------------------------------------- #
# Stage 2: flash-style attention + head concat + output FC
# ----------------------------------------------------------------------------- #
def _mha_attn_kernel(*refs, heads, d_k, mask_mode, tq, tkv):
    """Grid = (batch, q_tiles, kv_tiles).  KV axis innermost ("arbitrary")."""
    if mask_mode == "tensor":
        (q_ref, kh_ref, vh_ref, mask_ref, wq_ref, wfc_ref, bfc_ref,
         out_ref, qh_ref, cat_ref, m_sc, l_sc, acc_sc) = refs
    else:
        (q_ref, kh_ref, vh_ref, wq_ref, wfc_ref, bfc_ref,
         out_ref, qh_ref, cat_ref, m_sc, l_sc, acc_sc) = refs
        mask_ref = None

    kvi = pl.program_id(2)

    # ---- per-(batch, q-tile) init: accumulators + Q projection (scale already
    #      folded into Wq on the host).  Cached in bf16 scratch across KV tiles. ---
    @pl.when(kvi == 0)
    def _():
        m_sc[...] = jnp.full_like(m_sc, -jnp.inf)
        l_sc[...] = jnp.zeros_like(l_sc)
        acc_sc[...] = jnp.zeros_like(acc_sc)
        qp = jnp.dot(q_ref[0].astype(jnp.bfloat16), wq_ref[...],
                     preferred_element_type=jnp.float32)       # (TQ, D) f32
        for h in range(heads):
            qh_ref[h] = qp[:, h * d_k:(h + 1) * d_k].astype(jnp.bfloat16)

    # ---- scores for this KV tile, batched over heads (no per-head matmuls). -----
    # (If lowering showed a per-step K transpose here, K could be cached
    #  pre-transposed in the projection kernel instead; not needed so far.)
    s = jnp.einsum('hqd,hkd->hqk', qh_ref[...], kh_ref[0],
                   preferred_element_type=jnp.float32)         # (H, TQ, TKV) f32

    if mask_mode == "tensor":
        valid = mask_ref[0] != 0                               # int8 compare (VPU)
        s = jnp.where(valid[None, :, :], s, jnp.float32(-1e9))
    elif mask_mode == "causal":
        # Structured mask generated in-kernel: no O(B*Sq*Skv) HBM mask traffic.
        q_pos = pl.program_id(1) * tq + lax.broadcasted_iota(jnp.int32, (tq, tkv), 0)
        k_pos = kvi * tkv + lax.broadcasted_iota(jnp.int32, (tq, tkv), 1)
        s = jnp.where((k_pos <= q_pos)[None, :, :], s, jnp.float32(-1e9))

    # ---- online softmax (flash style): running max / denom / weighted V sum. ----
    m_new = jnp.maximum(m_sc[...], jnp.max(s, axis=-1, keepdims=True))   # (H,TQ,1)
    alpha = jnp.exp(m_sc[...] - m_new)                                   # (H,TQ,1)
    p = jnp.exp((s - m_new).astype(jnp.bfloat16))              # bf16 exp on the EUP
    l_sc[...] = alpha * l_sc[...] + jnp.sum(p, axis=-1, keepdims=True,
                                            dtype=jnp.float32)
    acc_sc[...] = alpha * acc_sc[...] + jnp.einsum(
        'hqk,hkd->hqd', p, vh_ref[0], preferred_element_type=jnp.float32)
    m_sc[...] = m_new

    # TODO(synk): nn.Dropout on attention weights is identity in eval mode; not applied.

    # ---- finalize on the last KV tile: normalize (fused into the concat copy),
    #      concat heads, output FC (+ bias). --------------------------------------
    @pl.when(kvi == pl.num_programs(2) - 1)
    def _():
        inv = pl.reciprocal(l_sc[...], approx=True)            # (H, TQ, 1), EUP
        for h in range(heads):
            cat_ref[:, h * d_k:(h + 1) * d_k] = (acc_sc[h] * inv[h]).astype(jnp.bfloat16)
        out = jnp.dot(cat_ref[...], wfc_ref[...], preferred_element_type=jnp.float32)
        out_ref[0] = (out + bfc_ref[...]).astype(out_ref.dtype)


def multi_head_attention(q, k, v, attn_mask, params, *, heads,
                         q_tile=128, kv_tile=256, causal=False):
    """Forward pass of MultiHeadAttention (eval mode).

    params: 'wq','wk','wv','wfc' in torch Linear layout (out_features, in_features)
    and 'bfc' (d_model,).  attn_mask follows the module contract: positions where
    mask == 0 are excluded (set to -1e9 before softmax), broadcast over heads.
    Pass causal=True to generate a lower-triangular mask in-kernel instead of
    streaming an explicit mask tensor from HBM.
    """
    bs, seq_q, d_model = q.shape
    seq_kv = k.shape[1]
    assert v.shape[1] == seq_kv and d_model % heads == 0
    d_k = d_model // heads           # d_k % 128 == 0 keeps all head slices lane-dense

    if causal:
        mask_mode = "causal"
    elif attn_mask is not None:
        mask_mode = "tensor"
    else:
        mask_mode = "none"

    # ---- tiling ------------------------------------------------------------------
    tq = min(q_tile, _round_up(seq_q, 8))
    seq_q_p = _round_up(seq_q, tq)                 # pad q to a full tile (no tq=seq_q fallback)
    n_qt = seq_q_p // tq
    # KV tile: the mask block's lane dim is tkv, so it must be a multiple of 128
    # (or the full seq_kv).  Fall back to a single KV tile for awkward lengths.
    tkv = kv_tile if (kv_tile % 128 == 0 and seq_kv % kv_tile == 0) else seq_kv
    n_kvt = seq_kv // tkv

    # ---- weights: torch Linear is x @ W^T -> pre-transpose once.  Softmax scale
    #      is folded into Wq in f32 before the bf16 cast; bf16 weights feed the MXU.
    scale = 1.0 / math.sqrt(d_k)
    wq_t = (params["wq"].T.astype(jnp.float32) * scale).astype(jnp.bfloat16)
    wk_t = params["wk"].T.astype(jnp.bfloat16)
    wv_t = params["wv"].T.astype(jnp.bfloat16)
    wfc_t = params["wfc"].T.astype(jnp.bfloat16)
    bfc = params["bfc"].reshape(1, d_model).astype(jnp.float32)

    # ---- Stage 1: K/V projections once per batch row, bf16 (B, H, Skv, d_k). -----
    k_proj, v_proj = _project_kv(k, v, wk_t, wv_t, heads=heads, d_k=d_k, tile=tkv)

    # ---- query-side padding to a full tile (tail rows are sliced off below). -----
    if seq_q_p != seq_q:
        q = jnp.pad(q, ((0, 0), (0, seq_q_p - seq_q), (0, 0)))

    per_bq = lambda b, qi, ki: (b, qi, 0)
    per_bkv = lambda b, qi, ki: (b, 0, ki, 0)

    inputs = [q, k_proj, v_proj]
    in_specs = [
        pl.BlockSpec((1, tq, d_model), per_bq),          # q (f32 or bf16)
        pl.BlockSpec((1, heads, tkv, d_k), per_bkv),     # projected K tile (bf16)
        pl.BlockSpec((1, heads, tkv, d_k), per_bkv),     # projected V tile (bf16)
    ]
    if mask_mode == "tensor":
        # (x != 0) preserves the reference's `mask == 0` semantics for any float mask.
        mask_i8 = (attn_mask != 0).astype(jnp.int8)
        if seq_q_p != seq_q:
            mask_i8 = jnp.pad(mask_i8, ((0, 0), (0, seq_q_p - seq_q), (0, 0)),
                              constant_values=1)
        inputs.append(mask_i8)
        in_specs.append(pl.BlockSpec((1, tq, tkv), lambda b, qi, ki: (b, qi, ki)))
    inputs += [wq_t, wfc_t, bfc]
    in_specs += [
        _const_spec((d_model, d_model)),                 # Wq^T * scale (bf16)
        _const_spec((d_model, d_model)),                 # Wfc^T (bf16)
        _const_spec((1, d_model)),                       # bias (f32)
    ]

    kernel = functools.partial(_mha_attn_kernel, heads=heads, d_k=d_k,
                               mask_mode=mask_mode, tq=tq, tkv=tkv)

    # ---- VMEM budget from actual block / scratch sizes (+ score-slab headroom). --
    est = (2 * tq * d_model * q.dtype.itemsize              # q blocks (2 bufs)
           + 2 * 2 * heads * tkv * d_k * 2                  # K/V tiles (2 bufs each)
           + (2 * tq * tkv if mask_mode == "tensor" else 0) # int8 mask tiles
           + 2 * d_model * d_model * 2 + d_model * 4        # weights + bias
           + 2 * tq * d_model * 4                           # out blocks
           + heads * tq * d_k * 2                           # qh scratch (bf16)
           + tq * d_model * 2                               # concat scratch (bf16)
           + heads * tq * d_k * 4                           # acc scratch (f32)
           + 2 * heads * tq * 128 * 4                       # m / l scratch (lane-padded)
           + 3 * heads * tq * tkv * 4)                      # s / p intermediates
    vmem_limit = int(min(max(2 * est, 16 << 20), 64 << 20))

    flops = bs * (4 * seq_q_p * d_model * d_model           # Q projection + output FC
                  + 4 * seq_q_p * seq_kv * d_model)         # QK^T + PV
    bytes_accessed = int(bs * seq_q_p * d_model * (q.dtype.itemsize + 4)
                         + bs * n_qt * 2 * heads * seq_kv * d_k * 2
                         + (bs * seq_q_p * seq_kv if mask_mode == "tensor" else 0)
                         + 2 * d_model * d_model * 2 + d_model * 4)

    out = pl.pallas_call(
        kernel,
        out_shape=jax.ShapeDtypeStruct((bs, seq_q_p, d_model), q.dtype),
        grid_spec=pltpu.PrefetchScalarGridSpec(
            num_scalar_prefetch=0,
            grid=(bs, n_qt, n_kvt),
            in_specs=in_specs,
            out_specs=pl.BlockSpec((1, tq, d_model), per_bq),
            scratch_shapes=[
                pltpu.VMEM((heads, tq, d_k), jnp.bfloat16),   # per-head Q (bf16)
                pltpu.VMEM((tq, d_model), jnp.bfloat16),      # head-concat buffer
                pltpu.VMEM((heads, tq, 1), jnp.float32),      # running max
                pltpu.VMEM((heads, tq, 1), jnp.float32),      # running denominator
                pltpu.VMEM((heads, tq, d_k), jnp.float32),    # running weighted V sum
            ],
        ),
        compiler_params=pltpu.CompilerParams(
            dimension_semantics=("parallel", "parallel", "arbitrary"),
            vmem_limit_bytes=vmem_limit,
        ),
        cost_estimate=pl.CostEstimate(
            flops=int(flops),
            transcendentals=int(bs * heads * seq_q_p * seq_kv),
            bytes_accessed=bytes_accessed,
        ),
    )(*inputs)

    return out[:, :seq_q] if seq_q_p != seq_q else out


# ----------------------------------------------------------------------------- #
# Pure-JAX f32 replica of the PyTorch forward (eval mode) for validation.
# ----------------------------------------------------------------------------- #
def _reference(q, k, v, attn_mask, params, *, heads):
    bs, seq_q, d_model = q.shape
    d_k = d_model // heads

    def proj(x, w):
        return (x @ w.T).reshape(bs, -1, heads, d_k).transpose(0, 2, 1, 3)

    qp, kp, vp = proj(q, params["wq"]), proj(k, params["wk"]), proj(v, params["wv"])
    s = jnp.einsum("bhqd,bhkd->bhqk", qp, kp) / math.sqrt(d_k)
    if attn_mask is not None:
        s = jnp.where(attn_mask[:, None, :, :] == 0, -1e9, s)
    p = jax.nn.softmax(s, axis=-1)
    o = jnp.einsum("bhqk,bhkd->bhqd", p, vp)
    concat = o.transpose(0, 2, 1, 3).reshape(bs, seq_q, d_model)
    return concat @ params["wfc"].T + params["bfc"]


if __name__ == "__main__":
    # Small but lane-aligned setup: batch=2, seq=256, d_model=512, heads=4 (d_k=128).
    # q_tile=128 and kv_tile=128 -> grid (2, 2, 2), so the online softmax runs over
    # two KV tiles and both parallel axes carry work.
    bs, seq, d_model, heads = 2, 256, 512, 4

    key = jax.random.PRNGKey(0)
    ks = jax.random.split(key, 8)
    q = jax.random.normal(ks[0], (bs, seq, d_model), dtype=jnp.float32)
    k = jax.random.normal(ks[1], (bs, seq, d_model), dtype=jnp.float32)
    v = jax.random.normal(ks[2], (bs, seq, d_model), dtype=jnp.float32)

    # Deterministic params (torch Linear layout: (out_features, in_features)).
    init = 1.0 / math.sqrt(d_model)
    params = {
        "wq": jax.random.uniform(ks[3], (d_model, d_model), jnp.float32, -init, init),
        "wk": jax.random.uniform(ks[4], (d_model, d_model), jnp.float32, -init, init),
        "wv": jax.random.uniform(ks[5], (d_model, d_model), jnp.float32, -init, init),
        "wfc": jax.random.uniform(ks[6], (d_model, d_model), jnp.float32, -init, init),
        "bfc": jax.random.uniform(ks[7], (d_model,), jnp.float32, -init, init),
    }

    # (1) Causal path: mask generated in-kernel (no mask tensor streamed from HBM).
    out_causal = multi_head_attention(q, k, v, None, params, heads=heads,
                                      q_tile=128, kv_tile=128, causal=True)
    out_causal = jax.block_until_ready(out_causal)
    tril = jnp.tril(jnp.ones((seq, seq), jnp.float32))[None].repeat(bs, axis=0)
    ref_causal = _reference(q, k, v, tril, params, heads=heads)
    # bf16 MXU matmuls + bf16 exp (EUP) with f32 accumulation vs a pure-f32 reference.
    np.testing.assert_allclose(np.asarray(out_causal), np.asarray(ref_causal),
                               rtol=2e-2, atol=3e-2)

    # (2) Explicit data-dependent mask path (0/1 padding-style mask, int8 in-kernel).
    lens = jnp.array([192, 256], dtype=jnp.int32)
    pad_mask = (jnp.arange(seq)[None, None, :] < lens[:, None, None]).astype(jnp.float32)
    pad_mask = jnp.broadcast_to(pad_mask, (bs, seq, seq))
    out_masked = multi_head_attention(q, k, v, pad_mask, params, heads=heads,
                                      q_tile=128, kv_tile=128)
    out_masked = jax.block_until_ready(out_masked)
    ref_masked = _reference(q, k, v, pad_mask, params, heads=heads)
    np.testing.assert_allclose(np.asarray(out_masked), np.asarray(ref_masked),
                               rtol=2e-2, atol=3e-2)

    print("KERNEL_OK")
</pallas_src>

<mosaic_0001>
module attributes {stable_mosaic.version = 11 : i64} {
  func.func @_kv_project_kernel(%arg0: i32, %arg1: i32, %arg2: memref<1x128x512xf32, #tpu.memory_space<vmem>>, %arg3: memref<1x128x512xf32, #tpu.memory_space<vmem>>, %arg4: memref<512x512xbf16, #tpu.memory_space<vmem>>, %arg5: memref<512x512xbf16, #tpu.memory_space<vmem>>, %arg6: memref<1x4x128x128xbf16, #tpu.memory_space<vmem>>, %arg7: memref<1x4x128x128xbf16, #tpu.memory_space<vmem>>) attributes {dimension_semantics = [#tpu.dimension_semantics<parallel>, #tpu.dimension_semantics<parallel>], iteration_bounds = array<i64: 2, 2>, scalar_prefetch = 0 : i64, scratch_operands = 0 : i64, tpu.core_type = #tpu.core_type<tc>, window_params = [{transform_indices = @transform_0, window_bounds = array<i64: 1, 128, 512>}, {transform_indices = @transform_1, window_bounds = array<i64: 1, 128, 512>}, {pipeline_mode = #tpu.pipeline_mode<synchronous>, transform_indices = @transform_2, window_bounds = array<i64: 512, 512>}, {pipeline_mode = #tpu.pipeline_mode<synchronous>, transform_indices = @transform_3, window_bounds = array<i64: 512, 512>}, {transform_indices = @transform_4, window_bounds = array<i64: 1, 4, 128, 128>}, {transform_indices = @transform_5, window_bounds = array<i64: 1, 4, 128, 128>}]} {
    %c0 = arith.constant 0 : index
    %c0_0 = arith.constant 0 : index
    %c0_1 = arith.constant 0 : index
    %0 = vector.load %arg2[%c0, %c0_0, %c0_1] : memref<1x128x512xf32, #tpu.memory_space<vmem>>, vector<1x128x512xf32>
    %1 = vector.shape_cast %0 : vector<1x128x512xf32> to vector<128x512xf32>
    %2 = arith.truncf %1 : vector<128x512xf32> to vector<128x512xbf16>
    %c0_2 = arith.constant 0 : index
    %c0_3 = arith.constant 0 : index
    %3 = vector.load %arg4[%c0_2, %c0_3] : memref<512x512xbf16, #tpu.memory_space<vmem>>, vector<512x512xbf16>
    %cst = arith.constant dense<0.000000e+00> : vector<128x512xf32>
    %4 = tpu.matmul %2, %3, %cst {dimension_numbers = #tpu.dot_dimension_numbers<[1], [0], [0], [1], [0, 0, 1, 1], [], []>} : vector<128x512xbf16>, vector<512x512xbf16>, vector<128x512xf32> -> vector<128x512xf32>
    %c0_4 = arith.constant 0 : index
    %c0_5 = arith.constant 0 : index
    %c0_6 = arith.constant 0 : index
    %5 = vector.load %arg3[%c0_4, %c0_5, %c0_6] : memref<1x128x512xf32, #tpu.memory_space<vmem>>, vector<1x128x512xf32>
    %6 = vector.shape_cast %5 : vector<1x128x512xf32> to vector<128x512xf32>
    %7 = arith.truncf %6 : vector<128x512xf32> to vector<128x512xbf16>
    %c0_7 = arith.constant 0 : index
    %c0_8 = arith.constant 0 : index
    %8 = vector.load %arg5[%c0_7, %c0_8] : memref<512x512xbf16, #tpu.memory_space<vmem>>, vector<512x512xbf16>
    %cst_9 = arith.constant dense<0.000000e+00> : vector<128x512xf32>
    %9 = tpu.matmul %7, %8, %cst_9 {dimension_numbers = #tpu.dot_dimension_numbers<[1], [0], [0], [1], [0, 0, 1, 1], [], []>} : vector<128x512xbf16>, vector<512x512xbf16>, vector<128x512xf32> -> vector<128x512xf32>
    %10 = vector.extract_strided_slice %4 {offsets = [0, 0], sizes = [128, 128], strides = [1, 1]} : vector<128x512xf32> to vector<128x128xf32>
    %11 = arith.truncf %10 : vector<128x128xf32> to vector<128x128xbf16>
    %c0_10 = arith.constant 0 : index
    %c0_11 = arith.constant 0 : index
    %c0_12 = arith.constant 0 : index
    %c0_13 = arith.constant 0 : index
    %12 = vector.load %arg6[%c0_10, %c0_11, %c0_12, %c0_13] : memref<1x4x128x128xbf16, #tpu.memory_space<vmem>>, vector<1x1x128x128xbf16>
    %13 = vector.shape_cast %12 : vector<1x1x128x128xbf16> to vector<128x128xbf16>
    %14 = vector.shape_cast %11 : vector<128x128xbf16> to vector<1x1x128x128xbf16>
    tpu.vector_store %arg6[%c0_10, %c0_11, %c0_12, %c0_13], %14 {strides = array<i32>} : memref<1x4x128x128xbf16, #tpu.memory_space<vmem>>, vector<1x1x128x128xbf16>,
    %15 = vector.extract_strided_slice %9 {offsets = [0, 0], sizes = [128, 128], strides = [1, 1]} : vector<128x512xf32> to vector<128x128xf32>
    %16 = arith.truncf %15 : vector<128x128xf32> to vector<128x128xbf16>
    %c0_14 = arith.constant 0 : index
    %c0_15 = arith.constant 0 : index
    %c0_16 = arith.constant 0 : index
    %c0_17 = arith.constant 0 : index
    %17 = vector.load %arg7[%c0_14, %c0_15, %c0_16, %c0_17] : memref<1x4x128x128xbf16, #tpu.memory_space<vmem>>, vector<1x1x128x128xbf16>
    %18 = vector.shape_cast %17 : vector<1x1x128x128xbf16> to vector<128x128xbf16>
    %19 = vector.shape_cast %16 : vector<128x128xbf16> to vector<1x1x128x128xbf16>
    tpu.vector_store %arg7[%c0_14, %c0_15, %c0_16, %c0_17], %19 {strides = array<i32>} : memref<1x4x128x128xbf16, #tpu.memory_space<vmem>>, vector<1x1x128x128xbf16>,
    %20 = vector.extract_strided_slice %4 {offsets = [0, 128], sizes = [128, 128], strides = [1, 1]} : vector<128x512xf32> to vector<128x128xf32>
    %21 = arith.truncf %20 : vector<128x128xf32> to vector<128x128xbf16>
    %c0_18 = arith.constant 0 : index
    %c1 = arith.constant 1 : index
    %c0_19 = arith.constant 0 : index
    %c0_20 = arith.constant 0 : index
    %22 = vector.load %arg6[%c0_18, %c1, %c0_19, %c0_20] : memref<1x4x128x128xbf16, #tpu.memory_space<vmem>>, vector<1x1x128x128xbf16>
    %23 = vector.shape_cast %22 : vector<1x1x128x128xbf16> to vector<128x128xbf16>
    %24 = vector.shape_cast %21 : vector<128x128xbf16> to vector<1x1x128x128xbf16>
    tpu.vector_store %arg6[%c0_18, %c1, %c0_19, %c0_20], %24 {strides = array<i32>} : memref<1x4x128x128xbf16, #tpu.memory_space<vmem>>, vector<1x1x128x128xbf16>,
    %25 = vector.extract_strided_slice %9 {offsets = [0, 128], sizes = [128, 128], strides = [1, 1]} : vector<128x512xf32> to vector<128x128xf32>
    %26 = arith.truncf %25 : vector<128x128xf32> to vector<128x128xbf16>
    %c0_21 = arith.constant 0 : index
    %c1_22 = arith.constant 1 : index
    %c0_23 = arith.constant 0 : index
    %c0_24 = arith.constant 0 : index
    %27 = vector.load %arg7[%c0_21, %c1_22, %c0_23, %c0_24] : memref<1x4x128x128xbf16, #tpu.memory_space<vmem>>, vector<1x1x128x128xbf16>
    %28 = vector.shape_cast %27 : vector<1x1x128x128xbf16> to vector<128x128xbf16>
    %29 = vector.shape_cast %26 : vector<128x128xbf16> to vector<1x1x128x128xbf16>
    tpu.vector_store %arg7[%c0_21, %c1_22, %c0_23, %c0_24], %29 {strides = array<i32>} : memref<1x4x128x128xbf16, #tpu.memory_space<vmem>>, vector<1x1x128x128xbf16>,
    %30 = vector.extract_strided_slice %4 {offsets = [0, 256], sizes = [128, 128], strides = [1, 1]} : vector<128x512xf32> to vector<128x128xf32>
    %31 = arith.truncf %30 : vector<128x128xf32> to vector<128x128xbf16>
    %c0_25 = arith.constant 0 : index
    %c2 = arith.constant 2 : index
    %c0_26 = arith.constant 0 : index
    %c0_27 = arith.constant 0 : index
    %32 = vector.load %arg6[%c0_25, %c2, %c0_26, %c0_27] : memref<1x4x128x128xbf16, #tpu.memory_space<vmem>>, vector<1x1x128x128xbf16>
    %33 = vector.shape_cast %32 : vector<1x1x128x128xbf16> to vector<128x128xbf16>
    %34 = vector.shape_cast %31 : vector<128x128xbf16> to vector<1x1x128x128xbf16>
    tpu.vector_store %arg6[%c0_25, %c2, %c0_26, %c0_27], %34 {strides = array<i32>} : memref<1x4x128x128xbf16, #tpu.memory_space<vmem>>, vector<1x1x128x128xbf16>,
    %35 = vector.extract_strided_slice %9 {offsets = [0, 256], sizes = [128, 128], strides = [1, 1]} : vector<128x512xf32> to vector<128x128xf32>
    %36 = arith.truncf %35 : vector<128x128xf32> to vector<128x128xbf16>
    %c0_28 = arith.constant 0 : index
    %c2_29 = arith.constant 2 : index
    %c0_30 = arith.constant 0 : index
    %c0_31 = arith.constant 0 : index
    %37 = vector.load %arg7[%c0_28, %c2_29, %c0_30, %c0_31] : memref<1x4x128x128xbf16, #tpu.memory_space<vmem>>, vector<1x1x128x128xbf16>
    %38 = vector.shape_cast %37 : vector<1x1x128x128xbf16> to vector<128x128xbf16>
    %39 = vector.shape_cast %36 : vector<128x128xbf16> to vector<1x1x128x128xbf16>
    tpu.vector_store %arg7[%c0_28, %c2_29, %c0_30, %c0_31], %39 {strides = array<i32>} : memref<1x4x128x128xbf16, #tpu.memory_space<vmem>>, vector<1x1x128x128xbf16>,
    %40 = vector.extract_strided_slice %4 {offsets = [0, 384], sizes = [128, 128], strides = [1, 1]} : vector<128x512xf32> to vector<128x128xf32>
    %41 = arith.truncf %40 : vector<128x128xf32> to vector<128x128xbf16>
    %c0_32 = arith.constant 0 : index
    %c3 = arith.constant 3 : index
    %c0_33 = arith.constant 0 : index
    %c0_34 = arith.constant 0 : index
    %42 = vector.load %arg6[%c0_32, %c3, %c0_33, %c0_34] : memref<1x4x128x128xbf16, #tpu.memory_space<vmem>>, vector<1x1x128x128xbf16>
    %43 = vector.shape_cast %42 : vector<1x1x128x128xbf16> to vector<128x128xbf16>
    %44 = vector.shape_cast %41 : vector<128x128xbf16> to vector<1x1x128x128xbf16>
    tpu.vector_store %arg6[%c0_32, %c3, %c0_33, %c0_34], %44 {strides = array<i32>} : memref<1x4x128x128xbf16, #tpu.memory_space<vmem>>, vector<1x1x128x128xbf16>,
    %45 = vector.extract_strided_slice %9 {offsets = [0, 384], sizes = [128, 128], strides = [1, 1]} : vector<128x512xf32> to vector<128x128xf32>
    %46 = arith.truncf %45 : vector<128x128xf32> to vector<128x128xbf16>
    %c0_35 = arith.constant 0 : index
    %c3_36 = arith.constant 3 : index
    %c0_37 = arith.constant 0 : index
    %c0_38 = arith.constant 0 : index
    %47 = vector.load %arg7[%c0_35, %c3_36, %c0_37, %c0_38] : memref<1x4x128x128xbf16, #tpu.memory_space<vmem>>, vector<1x1x128x128xbf16>
    %48 = vector.shape_cast %47 : vector<1x1x128x128xbf16> to vector<128x128xbf16>
    %49 = vector.shape_cast %46 : vector<128x128xbf16> to vector<1x1x128x128xbf16>
    tpu.vector_store %arg7[%c0_35, %c3_36, %c0_37, %c0_38], %49 {strides = array<i32>} : memref<1x4x128x128xbf16, #tpu.memory_space<vmem>>, vector<1x1x128x128xbf16>,
    return
  }
  func.func @transform_0(%arg0: i32, %arg1: i32) -> (i32, i32, i32) {
    %c0_i32 = arith.constant 0 : i32
    %c0_i32_0 = arith.constant 0 : i32
    return %arg0, %arg1, %c0_i32 : i32, i32, i32
  }
  func.func @transform_1(%arg0: i32, %arg1: i32) -> (i32, i32, i32) {
    %c0_i32 = arith.constant 0 : i32
    %c0_i32_0 = arith.constant 0 : i32
    return %arg0, %arg1, %c0_i32 : i32, i32, i32
  }
  func.func @transform_2(%arg0: i32, %arg1: i32) -> (i32, i32) {
    %c0_i32 = arith.constant 0 : i32
    %c0_i32_0 = arith.constant 0 : i32
    %c0_i32_1 = arith.constant 0 : i32
    return %c0_i32, %c0_i32_0 : i32, i32
  }
  func.func @transform_3(%arg0: i32, %arg1: i32) -> (i32, i32) {
    %c0_i32 = arith.constant 0 : i32
    %c0_i32_0 = arith.constant 0 : i32
    %c0_i32_1 = arith.constant 0 : i32
    return %c0_i32, %c0_i32_0 : i32, i32
  }
  func.func @transform_4(%arg0: i32, %arg1: i32) -> (i32, i32, i32, i32) {
    %c0_i32 = arith.constant 0 : i32
    %c0_i32_0 = arith.constant 0 : i32
    %c0_i32_1 = arith.constant 0 : i32
    return %arg0, %c0_i32, %arg1, %c0_i32_0 : i32, i32, i32, i32
  }
  func.func @transform_5(%arg0: i32, %arg1: i32) -> (i32, i32, i32, i32) {
    %c0_i32 = arith.constant 0 : i32
    %c0_i32_0 = arith.constant 0 : i32
    %c0_i32_1 = arith.constant 0 : i32
    return %arg0, %c0_i32, %arg1, %c0_i32_0 : i32, i32, i32, i32
  }
}

</mosaic_0001>

<llo_original>
// kernel: tpu_custom_call.1
$region0: #{tpu_custom_call.1}
  #allocation0 [shape = 'u32[]', space=smem, size = 0x4, offset = 0x4, fixed_abs, tag = 'smem constant byte address 0x4 - core index']
  #allocation1 [shape = 'u32[144,128]{1,0:T(1,128)}', space=vmem, size = 0x12000, scoped, tag = 'internal scratch']
  #allocation13 [shape = 's32[]', space=sflag, size = 0x4, offset = 0, fixed_abs, tag = 'sflag constant byte address 0x0 - dummy sync flag']
  #allocation15 [shape = 's32[]', space=sflag, size = 0x4, offset = 0, fixed_abs, tag = 'sflag constant byte address 0x0 - dummy sync flag']
  %s0 = inlined_call_operand.hbm [shape: f32[2,256,512], index: 0, kind: input, shape index: {}]
  %s1 = inlined_call_operand.hbm [shape: f32[2,256,512], index: 1, kind: input, shape index: {}]
  %s2 = inlined_call_operand.hbm [shape: bf16[512,512], index: 2, kind: input, shape index: {}]
  %s3 = inlined_call_operand.hbm [shape: bf16[512,512], index: 3, kind: input, shape index: {}]
  %s4 = inlined_call_operand.hbm [shape: bf16[2,4,256,128], index: 4, kind: output, shape index: {0}]
  %s5 = inlined_call_operand.hbm [shape: bf16[2,4,256,128], index: 5, kind: output, shape index: {1}]
  %6 = xla_tuple %s4, %s5
  %s7 = sld [smem:[#allocation0]]
  $region73: #{tpu_custom_call.1} parent=0
    _
  %s9 = ssub.s32 1, %s7
  %s10 = scalar_select 0, %s9, %s7
  $region1: #{tpu_custom_call.1} parent=0
    #allocation2 [shape = 'u8[524288]{0}', space=vmem, size = 0x80000, scoped, tag = 'input window, operand 0']
    #allocation3 [shape = 's32[2]{0}', space=sflag, size = 0x8, scoped, tag = 'scoped memory for tpu_custom_call.1']
    #allocation4 [shape = 's32[2]{0}', space=sflag, size = 0x8, scoped, tag = 'scoped memory for tpu_custom_call.1']
    #allocation5 [shape = 'u8[524288]{0}', space=vmem, size = 0x80000, scoped, tag = 'input window, operand 1']
    #allocation6 [shape = 's32[2]{0}', space=sflag, size = 0x8, scoped, tag = 'scoped memory for tpu_custom_call.1']
    #allocation7 [shape = 'u8[524288]{0}', space=vmem, size = 0x80000, scoped, tag = 'input window, operand 2, single buffered']
    #allocation8 [shape = 'u8[524288]{0}', space=vmem, size = 0x80000, scoped, tag = 'input window, operand 3, single buffered']
    #allocation9 [shape = 's32[1]{0}', space=sflag, size = 0x4, scoped, tag = 'scoped memory for tpu_custom_call.1']
    #allocation10 [shape = 'u8[262144]{0}', space=vmem, size = 0x40000, scoped, tag = 'output window, operand 0']
    #allocation11 [shape = 'u8[262144]{0}', space=vmem, size = 0x40000, scoped, tag = 'output window, operand 1']
    #allocation12 [shape = 's32[2]{0}', space=sflag, size = 0x8, scoped, tag = 'scoped memory for tpu_custom_call.1']
    %11 = vsyncpa [#allocation3], 0
    %s12 = scalar_lea.sflag [#allocation3], 1
    %13 = vsyncpa %s12, 0
    %14 = vsyncpa [#allocation6], 0
    %s15 = scalar_lea.sflag [#allocation6], 1
    %16 = vsyncpa %s15, 0
    %17 = vsyncpa [#allocation9], 0
    %18 = vsyncpa [#allocation4], 0
    %s19 = scalar_lea.sflag [#allocation4], 1
    %20 = vsyncpa %s19, 0
    %21 = vsyncpa [#allocation12], 0
    %s22 = scalar_lea.sflag [#allocation12], 1
    %23 = vsyncpa %s22, 0
    loop: start=0, step=1, limit=6
    $region2: #{tpu_custom_call.1} parent=1 // loop_pre_header
      _
    $region3: #{tpu_custom_call.1} parent=1 // loop_header
      %s25 = sphi 0, %s29
      %p26 = scmp.ge.s32.totalorder %s25, 6
      %s32 = sphi 0, %s44
      %s33 = sphi 0, %s40
      %s34 = sphi 0, %s32
      %s35 = sphi 0, %s33
      %s36 = sphi 0, %s34
      %s37 = sphi 0, %s35
      %s49 = sphi 0, %s51
      %s52 = sphi 0, %s49
      %s53 = sphi 0, %s52
      %s69 = sphi 0, %s53
      %s77 = sphi 0, %s79
      %s80 = sphi 0, %s77
      %s81 = sphi 0, %s80
      %s97 = sphi 0, %s81
      %s101 = sphi 0, %s101
      %s103 = sphi 0, %s101
      %s104 = sphi 0, %s103
      %s118 = sphi 0, %s104
      %s122 = sphi 0, %s122
      %s124 = sphi 0, %s122
      %s125 = sphi 0, %s124
      %s139 = sphi 0, %s125
      %s147 = sphi 0, %s149
      %s150 = sphi 0, %s147
      %s151 = sphi 0, %s150
      %s167 = sphi 0, %s151
      %s175 = sphi 0, %s177
      %s178 = sphi 0, %s175
      %s179 = sphi 0, %s178
      %s195 = sphi 0, %s179
    $region4: #{tpu_custom_call.1} parent=1 // loop_header_branch
      %28 = sbr.rel (%p26) target = $region8
    $region5: #{tpu_custom_call.1} parent=1 // loop_body
      %s30 = ssub.s32 %s25, 1
      %s31 = ssub.s32 %s25, 2
      %s38 = sadd.s32 1, %s33
      %p39 = scmp.ge.s32.totalorder %s38, 2
      %s40 = scalar_select %p39, 0, %s38
      %s41 = sadd.s32 1, %s32
      %s42 = scalar_select %p39, %s41, %s32
      %p43 = scmp.ge.s32.totalorder %s42, 2
      %s44 = scalar_select %p43, 0, %s42
      %s45 = ssub.s32 %s32, %s44
      %s46 = ssub.s32 %s33, %s40
      %s47 = sor.u32 %s45, %s46
      %p48 = scmp.eq.s32.totalorder %s47, 0
      %s50 = sadd.s32 %s49, 1
      %s51 = scalar_select %p48, %s49, %s50
      %p54 = pneg %p48
      %p55 = scmp.eq.s32.totalorder %s25, 3
      %p56 = por %p54, %p55
      %p57 = scmp.ne.s32.totalorder %s49, %s52
      %p58 = scmp.eq.s32.totalorder %s25, 0
      %p59 = por %p57, %p58
      %p60 = scmp.ne.s32.totalorder %s49, %s52
      %p61 = scmp.eq.s32.totalorder %s30, 3
      %p62 = por %p60, %p61
      %p63 = scmp.ne.s32.totalorder %s52, %s53
      %p64 = scmp.eq.s32.totalorder %s30, 0
      %p65 = por %p63, %p64
      %p66 = scmp.ne.s32.totalorder %s52, %s53
      %p67 = scmp.eq.s32.totalorder %s31, 3
      %p68 = por %p66, %p67
      %p70 = scmp.ne.s32.totalorder %s53, %s69
      %p71 = scmp.eq.s32.totalorder %s31, 0
      %p72 = por %p70, %p71
      %s73 = ssub.s32 %s32, %s44
      %s74 = ssub.s32 %s33, %s40
      %s75 = sor.u32 %s73, %s74
      %p76 = scmp.eq.s32.totalorder %s75, 0
      %s78 = sadd.s32 %s77, 1
      %s79 = scalar_select %p76, %s77, %s78
      %p82 = pneg %p76
      %p83 = scmp.eq.s32.totalorder %s25, 3
      %p84 = por %p82, %p83
      %p85 = scmp.ne.s32.totalorder %s77, %s80
      %p86 = scmp.eq.s32.totalorder %s25, 0
      %p87 = por %p85, %p86
      %p88 = scmp.ne.s32.totalorder %s77, %s80
      %p89 = scmp.eq.s32.totalorder %s30, 3
      %p90 = por %p88, %p89
      %p91 = scmp.ne.s32.totalorder %s80, %s81
      %p92 = scmp.eq.s32.totalorder %s30, 0
      %p93 = por %p91, %p92
      %p94 = scmp.ne.s32.totalorder %s80, %s81
      %p95 = scmp.eq.s32.totalorder %s31, 3
      %p96 = por %p94, %p95
      %p98 = scmp.ne.s32.totalorder %s81, %s97
      %p99 = scmp.eq.s32.totalorder %s31, 0
      %p100 = por %p98, %p99
      %s102 = sadd.s32 %s101, 1
      %p105 = scmp.eq.s32.totalorder %s25, 3
      %p106 = scmp.ne.s32.totalorder %s101, %s103
      %p107 = scmp.eq.s32.totalorder %s25, 0
      %p108 = por %p106, %p107
      %p109 = scmp.ne.s32.totalorder %s101, %s103
      %p110 = scmp.eq.s32.totalorder %s30, 3
      %p111 = por %p109, %p110
      %p112 = scmp.ne.s32.totalorder %s103, %s104
      %p113 = scmp.eq.s32.totalorder %s30, 0
      %p114 = por %p112, %p113
      %p115 = scmp.ne.s32.totalorder %s103, %s104
      %p116 = scmp.eq.s32.totalorder %s31, 3
      %p117 = por %p115, %p116
      %p119 = scmp.ne.s32.totalorder %s104, %s118
      %p120 = scmp.eq.s32.totalorder %s31, 0
      %p121 = por %p119, %p120
      %s123 = sadd.s32 %s122, 1
      %p126 = scmp.eq.s32.totalorder %s25, 3
      %p127 = scmp.ne.s32.totalorder %s122, %s124
      %p128 = scmp.eq.s32.totalorder %s25, 0
      %p129 = por %p127, %p128
      %p130 = scmp.ne.s32.totalorder %s122, %s124
      %p131 = scmp.eq.s32.totalorder %s30, 3
      %p132 = por %p130, %p131
      %p133 = scmp.ne.s32.totalorder %s124, %s125
      %p134 = scmp.eq.s32.totalorder %s30, 0
      %p135 = por %p133, %p134
      %p136 = scmp.ne.s32.totalorder %s124, %s125
      %p137 = scmp.eq.s32.totalorder %s31, 3
      %p138 = por %p136, %p137
      %p140 = scmp.ne.s32.totalorder %s125, %s139
      %p141 = scmp.eq.s32.totalorder %s31, 0
      %p142 = por %p140, %p141
      %s143 = ssub.s32 %s32, %s44
      %s144 = ssub.s32 %s33, %s40
      %s145 = sor.u32 %s143, %s144
      %p146 = scmp.eq.s32.totalorder %s145, 0
      %s148 = sadd.s32 %s147, 1
      %s149 = scalar_select %p146, %s147, %s148
      %p152 = pneg %p146
      %p153 = scmp.eq.s32.totalorder %s25, 3
      %p154 = por %p152, %p153
      %p155 = scmp.ne.s32.totalorder %s147, %s150
      %p156 = scmp.eq.s32.totalorder %s25, 0
      %p157 = por %p155, %p156
      %p158 = scmp.ne.s32.totalorder %s147, %s150
      %p159 = scmp.eq.s32.totalorder %s30, 3
      %p160 = por %p158, %p159
      %p161 = scmp.ne.s32.totalorder %s150, %s151
      %p162 = scmp.eq.s32.totalorder %s30, 0
      %p163 = por %p161, %p162
      %p164 = scmp.ne.s32.totalorder %s150, %s151
      %p165 = scmp.eq.s32.totalorder %s31, 3
      %p166 = por %p164, %p165
      %p168 = scmp.ne.s32.totalorder %s151, %s167
      %p169 = scmp.eq.s32.totalorder %s31, 0
      %p170 = por %p168, %p169
      %s171 = ssub.s32 %s32, %s44
      %s172 = ssub.s32 %s33, %s40
      %s173 = sor.u32 %s171, %s172
      %p174 = scmp.eq.s32.totalorder %s173, 0
      %s176 = sadd.s32 %s175, 1
      %s177 = scalar_select %p174, %s175, %s176
      %p180 = pneg %p174
      %p181 = scmp.eq.s32.totalorder %s25, 3
      %p182 = por %p180, %p181
      %p183 = scmp.ne.s32.totalorder %s175, %s178
      %p184 = scmp.eq.s32.totalorder %s25, 0
      %p185 = por %p183, %p184
      %p186 = scmp.ne.s32.totalorder %s175, %s178
      %p187 = scmp.eq.s32.totalorder %s30, 3
      %p188 = por %p186, %p187
      %p189 = scmp.ne.s32.totalorder %s178, %s179
      %p190 = scmp.eq.s32.totalorder %s30, 0
      %p191 = por %p189, %p190
      %p192 = scmp.ne.s32.totalorder %s178, %s179
      %p193 = scmp.eq.s32.totalorder %s31, 3
      %p194 = por %p192, %p193
      %p196 = scmp.ne.s32.totalorder %s179, %s195
      %p197 = scmp.eq.s32.totalorder %s31, 0
      %p198 = por %p196, %p197
      %p199 = scmp.le.s32.totalorder 1, %s25
      %p200 = scmp.lt.s32.totalorder %s25, 5
      %p201 = pnand %p199, %p200
      %p202 = pneg %p201
      // Predicated region
      $region9: #{tpu_custom_call.1} parent=5 // pred_check
        _
      $region10: #{tpu_custom_call.1} parent=5 // pred_check_branch
        %204 = sbr.rel (%p201) target = $region12
      $region11: #{tpu_custom_call.1} parent=5 // pred_region
        %s205 = ssub.s32 %s25, 1
        // Predicated region
        $region13: #{tpu_custom_call.1} parent=11 // pred_check
          %p206 = pneg %p114
        $region14: #{tpu_custom_call.1} parent=11 // pred_check_branch
          %208 = sbr.rel (%p206) target = $region16
        $region15: #{tpu_custom_call.1} parent=11 // pred_region
          %s210 = ssub.s32 16384, 16384
          %211 = vsyncadd [#allocation6], %s210
          %s212 = sshll.u32 [#allocation7], 4
          %s213 = int_to_ptr.vmem [resolvable:$true] %s212
          %218 = dma.hbm_to_vmem [thread:$0]  %s2, 16384, %s213, [#allocation6], 256, 256, 16
        $region16: #{tpu_custom_call.1} parent=11 // pred_fallthru
          _
        // Predicated region
        $region17: #{tpu_custom_call.1} parent=11 // pred_check
          %p219 = pneg %p135
        $region18: #{tpu_custom_call.1} parent=11 // pred_check_branch
          %221 = sbr.rel (%p219) target = $region20
        $region19: #{tpu_custom_call.1} parent=11 // pred_region
          %s223 = ssub.s32 16384, 16384
          %224 = vsyncadd [#allocation9], %s223
          %s225 = sshll.u32 [#allocation8], 4
          %s226 = int_to_ptr.vmem [resolvable:$true] %s225
          %231 = dma.hbm_to_vmem [thread:$0]  %s3, 16384, %s226, [#allocation9], 256, 256, 16
        $region20: #{tpu_custom_call.1} parent=11 // pred_fallthru
          _
      $region12: #{tpu_custom_call.1} parent=5 // pred_fallthru
        _
      %p232 = scmp.lt.s32.totalorder %s25, 4
      // Predicated region
      $region21: #{tpu_custom_call.1} parent=5 // pred_check
        %p233 = pneg %p232
      $region22: #{tpu_custom_call.1} parent=5 // pred_check_branch
        %235 = sbr.rel (%p233) target = $region24
      $region23: #{tpu_custom_call.1} parent=5 // pred_region
        // Predicated region
        $region25: #{tpu_custom_call.1} parent=23 // pred_check
          %p236 = pneg %p59
        $region26: #{tpu_custom_call.1} parent=23 // pred_check_branch
          %238 = sbr.rel (%p236) target = $region28
        $region27: #{tpu_custom_call.1} parent=23 // pred_region
          %s239 = sand.u32 %s49, 1
          %s240 = scalar_lea.sflag [#allocation3], %s239
          %s241 = sand.u32 %s49, 1
          %s242 = smul.addr %s241, 512
          %s243 = scalar_lea.vmem [#allocation2], %s242
          %s244 = smul.u32 16, %s33
          %s246 = ssub.s32 8192, 8192
          %247 = vsyncadd %s240, %s246
          %s248 = smul.addr %s244, 4
          %s249 = smul.addr %s32, 128
          %s250 = sadd.s32 %s248, %s249
          %s251 = smul.addr %s250, 128
          %s252 = scalar_lea.hbm %s0, %s251
          %s253 = sshll.u32 %s243, 4
          %s254 = int_to_ptr.vmem [resolvable:$true] %s253
          %259 = dma.hbm_to_vmem [thread:$0]  %s252, 8192, %s254, %s240, 512, 512, 32
        $region28: #{tpu_custom_call.1} parent=23 // pred_fallthru
          _
        // Predicated region
        $region29: #{tpu_custom_call.1} parent=23 // pred_check
          %p260 = pneg %p87
        $region30: #{tpu_custom_call.1} parent=23 // pred_check_branch
          %262 = sbr.rel (%p260) target = $region32
        $region31: #{tpu_custom_call.1} parent=23 // pred_region
          %s263 = sand.u32 %s25, 1
          %s264 = scalar_lea.sflag [#allocation6], %s263
          %s265 = sand.u32 %s77, 1
          %s266 = smul.addr %s265, 512
          %s267 = scalar_lea.vmem [#allocation5], %s266
          %s268 = smul.u32 16, %s33
          %s270 = ssub.s32 8192, 8192
          %271 = vsyncadd %s264, %s270
          %s272 = smul.addr %s268, 4
          %s273 = smul.addr %s32, 128
          %s274 = sadd.s32 %s272, %s273
          %s275 = smul.addr %s274, 128
          %s276 = scalar_lea.hbm %s1, %s275
          %s277 = sshll.u32 %s267, 4
          %s278 = int_to_ptr.vmem [resolvable:$true] %s277
          %283 = dma.hbm_to_vmem [thread:$0]  %s276, 8192, %s278, %s264, 512, 512, 32
        $region32: #{tpu_custom_call.1} parent=23 // pred_fallthru
          _
      $region24: #{tpu_custom_call.1} parent=5 // pred_fallthru
        _
      %p284 = scmp.le.s32.totalorder 1, %s25
      %p285 = scmp.lt.s32.totalorder %s25, 5
      %p286 = pnand %p284, %p285
      %p287 = pneg %p286
      // Predicated region
      $region33: #{tpu_custom_call.1} parent=5 // pred_check
        _
      $region34: #{tpu_custom_call.1} parent=5 // pred_check_branch
        %289 = sbr.rel (%p286) target = $region36
      $region35: #{tpu_custom_call.1} parent=5 // pred_region
        %s290 = ssub.s32 %s25, 1
        %s291 = sand.u32 %s52, 1
        %s292 = scalar_lea.sflag [#allocation3], %s291
        %s293 = sand.u32 %s52, 1
        %s294 = smul.addr %s293, 512
        %s295 = scalar_lea.vmem [#allocation2], %s294
        // Predicated region
        $region37: #{tpu_custom_call.1} parent=35 // pred_check
          %p296 = pneg %p65
        $region38: #{tpu_custom_call.1} parent=35 // pred_check_branch
          %298 = sbr.rel (%p296) target = $region40
        $region39: #{tpu_custom_call.1} parent=35 // pred_region
          %299 = dma.done %s292, 8192
        $region40: #{tpu_custom_call.1} parent=35 // pred_fallthru
          _
        %s300 = sand.u32 %s30, 1
        %s301 = scalar_lea.sflag [#allocation6], %s300
        %s302 = sand.u32 %s80, 1
        %s303 = smul.addr %s302, 512
        %s304 = scalar_lea.vmem [#allocation5], %s303
        // Predicated region
        $region41: #{tpu_custom_call.1} parent=35 // pred_check
          %p305 = pneg %p93
        $region42: #{tpu_custom_call.1} parent=35 // pred_check_branch
          %307 = sbr.rel (%p305) target = $region44
        $region43: #{tpu_custom_call.1} parent=35 // pred_region
          %308 = dma.done %s301, 8192
        $region44: #{tpu_custom_call.1} parent=35 // pred_fallthru
          _
        // Predicated region
        $region45: #{tpu_custom_call.1} parent=35 // pred_check
          %p309 = pneg %p114
        $region46: #{tpu_custom_call.1} parent=35 // pred_check_branch
          %311 = sbr.rel (%p309) target = $region48
        $region47: #{tpu_custom_call.1} parent=35 // pred_region
          %312 = dma.done [#allocation6], 16384
        $region48: #{tpu_custom_call.1} parent=35 // pred_fallthru
          _
        // Predicated region
        $region49: #{tpu_custom_call.1} parent=35 // pred_check
          %p313 = pneg %p135
        $region50: #{tpu_custom_call.1} parent=35 // pred_check_branch
          %315 = sbr.rel (%p313) target = $region52
        $region51: #{tpu_custom_call.1} parent=35 // pred_region
          %316 = dma.done [#allocation9], 16384
        $region52: #{tpu_custom_call.1} parent=35 // pred_fallthru
          _
        %s317 = sand.u32 %s52, 1
        %s318 = scalar_lea.sflag [#allocation3], %s317
        %s319 = sand.u32 %s52, 1
        %s320 = smul.addr %s319, 512
        %s321 = scalar_lea.vmem [#allocation2], %s320
        %p322 = pneg %p65
        %p323 = pneg %p62
        %s324 = sand.u32 %s30, 1
        %s325 = scalar_lea.sflag [#allocation6], %s324
        %s326 = sand.u32 %s80, 1
        %s327 = smul.addr %s326, 512
        %s328 = scalar_lea.vmem [#allocation5], %s327
        %p329 = pneg %p93
        %p330 = pneg %p90
        %p331 = pneg %p114
        %p332 = pneg %p111
        %p333 = pneg %p135
        %p334 = pneg %p132
        %p335 = pneg %p163
        %p336 = pneg %p160
        %s337 = sand.u32 %s150, 1
        %s338 = scalar_lea.sflag [#allocation4], %s337
        %s339 = sand.u32 %s150, 1
        %s340 = smul.addr %s339, 256
        %s341 = scalar_lea.vmem [#allocation10], %s340
        %p342 = pneg %p191
        %p343 = pneg %p188
        %s344 = sand.u32 %s178, 1
        %s345 = scalar_lea.sflag [#allocation12], %s344
        %s346 = sand.u32 %s178, 1
        %s347 = smul.addr %s346, 256
        %s348 = scalar_lea.vmem [#allocation11], %s347
        %s349 = smul.u32 16, %s35
        %s350 = smul.u32 16, %s35
        %s351 = smul.u32 16, %s35
        %s352 = smul.u32 16, %s35
        %v353 = vld [vmem:[%s295] sm:$0xff]
        %v354 = vld [vmem:[%s295 + $0x8] sm:$0xff]
        %v355 = vld [vmem:[%s295 + $0x10] sm:$0xff]
        %v356 = vld [vmem:[%s295 + $0x18] sm:$0xff]
        %v357 = vld [vmem:[%s295 + $0x20] sm:$0xff]
        %v358 = vld [vmem:[%s295 + $0x28] sm:$0xff]
        %v359 = vld [vmem:[%s295 + $0x30] sm:$0xff]
        %v360 = vld [vmem:[%s295 + $0x38] sm:$0xff]
        %v361 = vld [vmem:[%s295 + $0x40] sm:$0xff]
        %v362 = vld [vmem:[%s295 + $0x48] sm:$0xff]
        %v363 = vld [vmem:[%s295 + $0x50] sm:$0xff]
        %v364 = vld [vmem:[%s295 + $0x58] sm:$0xff]
        %v365 = vld [vmem:[%s295 + $0x60] sm:$0xff]
        %v366 = vld [vmem:[%s295 + $0x68] sm:$0xff]
        %v367 = vld [vmem:[%s295 + $0x70] sm:$0xff]
        %v368 = vld [vmem:[%s295 + $0x78] sm:$0xff]
        %v369 = vld [vmem:[%s295 + $0x80] sm:$0xff]
        %v370 = vld [vmem:[%s295 + $0x88] sm:$0xff]
        %v371 = vld [vmem:[%s295 + $0x90] sm:$0xff]
        %v372 = vld [vmem:[%s295 + $0x98] sm:$0xff]
        %v373 = vld [vmem:[%s295 + $0xa0] sm:$0xff]
        %v374 = vld [vmem:[%s295 + $0xa8] sm:$0xff]
        %v375 = vld [vmem:[%s295 + $0xb0] sm:$0xff]
        %v376 = vld [vmem:[%s295 + $0xb8] sm:$0xff]
        %v377 = vld [vmem:[%s295 + $0xc0] sm:$0xff]
        %v378 = vld [vmem:[%s295 + $0xc8] sm:$0xff]
        %v379 = vld [vmem:[%s295 + $0xd0] sm:$0xff]
        %v380 = vld [vmem:[%s295 + $0xd8] sm:$0xff]
        %v381 = vld [vmem:[%s295 + $0xe0] sm:$0xff]
        %v382 = vld [vmem:[%s295 + $0xe8] sm:$0xff]
        %v383 = vld [vmem:[%s295 + $0xf0] sm:$0xff]
        %v384 = vld [vmem:[%s295 + $0xf8] sm:$0xff]
        %v385 = vld [vmem:[%s295 + $0x100] sm:$0xff]
        %v386 = vld [vmem:[%s295 + $0x108] sm:$0xff]
        %v387 = vld [vmem:[%s295 + $0x110] sm:$0xff]
        %v388 = vld [vmem:[%s295 + $0x118] sm:$0xff]
        %v389 = vld [vmem:[%s295 + $0x120] sm:$0xff]
        %v390 = vld [vmem:[%s295 + $0x128] sm:$0xff]
        %v391 = vld [vmem:[%s295 + $0x130] sm:$0xff]
        %v392 = vld [vmem:[%s295 + $0x138] sm:$0xff]
        %v393 = vld [vmem:[%s295 + $0x140] sm:$0xff]
        %v394 = vld [vmem:[%s295 + $0x148] sm:$0xff]
        %v395 = vld [vmem:[%s295 + $0x150] sm:$0xff]
        %v396 = vld [vmem:[%s295 + $0x158] sm:$0xff]
        %v397 = vld [vmem:[%s295 + $0x160] sm:$0xff]
        %v398 = vld [vmem:[%s295 + $0x168] sm:$0xff]
        %v399 = vld [vmem:[%s295 + $0x170] sm:$0xff]
        %v400 = vld [vmem:[%s295 + $0x178] sm:$0xff]
        %v401 = vld [vmem:[%s295 + $0x180] sm:$0xff]
        %v402 = vld [vmem:[%s295 + $0x188] sm:$0xff]
        %v403 = vld [vmem:[%s295 + $0x190] sm:$0xff]
        %v404 = vld [vmem:[%s295 + $0x198] sm:$0xff]
        %v405 = vld [vmem:[%s295 + $0x1a0] sm:$0xff]
        %v406 = vld [vmem:[%s295 + $0x1a8] sm:$0xff]
        %v407 = vld [vmem:[%s295 + $0x1b0] sm:$0xff]
        %v408 = vld [vmem:[%s295 + $0x1b8] sm:$0xff]
        %v409 = vld [vmem:[%s295 + $0x1c0] sm:$0xff]
        %v410 = vld [vmem:[%s295 + $0x1c8] sm:$0xff]
        %v411 = vld [vmem:[%s295 + $0x1d0] sm:$0xff]
        %v412 = vld [vmem:[%s295 + $0x1d8] sm:$0xff]
        %v413 = vld [vmem:[%s295 + $0x1e0] sm:$0xff]
        %v414 = vld [vmem:[%s295 + $0x1e8] sm:$0xff]
        %v415 = vld [vmem:[%s295 + $0x1f0] sm:$0xff]
        %v416 = vld [vmem:[%s295 + $0x1f8] sm:$0xff]
        %v417 = vpack.c.bf16 %v357, %v353
        %v418 = vpack.c.bf16 %v358, %v354
        %v419 = vpack.c.bf16 %v359, %v355
        %v420 = vpack.c.bf16 %v360, %v356
        %v421 = vpack.c.bf16 %v365, %v361
        %v422 = vpack.c.bf16 %v366, %v362
        %v423 = vpack.c.bf16 %v367, %v363
        %v424 = vpack.c.bf16 %v368, %v364
        %v425 = vpack.c.bf16 %v373, %v369
        %v426 = vpack.c.bf16 %v374, %v370
        %v427 = vpack.c.bf16 %v375, %v371
        %v428 = vpack.c.bf16 %v376, %v372
        %v429 = vpack.c.bf16 %v381, %v377
        %v430 = vpack.c.bf16 %v382, %v378
        %v431 = vpack.c.bf16 %v383, %v379
        %v432 = vpack.c.bf16 %v384, %v380
        %v433 = vpack.c.bf16 %v389, %v385
        %v434 = vpack.c.bf16 %v390, %v386
        %v435 = vpack.c.bf16 %v391, %v387
        %v436 = vpack.c.bf16 %v392, %v388
        %v437 = vpack.c.bf16 %v397, %v393
        %v438 = vpack.c.bf16 %v398, %v394
        %v439 = vpack.c.bf16 %v399, %v395
        %v440 = vpack.c.bf16 %v400, %v396
        %v441 = vpack.c.bf16 %v405, %v401
        %v442 = vpack.c.bf16 %v406, %v402
        %v443 = vpack.c.bf16 %v407, %v403
        %v444 = vpack.c.bf16 %v408, %v404
        %v445 = vpack.c.bf16 %v413, %v409
        %v446 = vpack.c.bf16 %v414, %v410
        %v447 = vpack.c.bf16 %v415, %v411
        %v448 = vpack.c.bf16 %v416, %v412
        %v449 = vld [vmem:[#allocation7] sm:$0xff]
        %v450 = vld [vmem:[#allocation7 + $0x8] sm:$0xff]
        %v451 = vld [vmem:[#allocation7 + $0x10] sm:$0xff]
        %v452 = vld [vmem:[#allocation7 + $0x18] sm:$0xff]
        %v453 = vld [vmem:[#allocation7 + $0x20] sm:$0xff]
        %v454 = vld [vmem:[#allocation7 + $0x28] sm:$0xff]
        %v455 = vld [vmem:[#allocation7 + $0x30] sm:$0xff]
        %v456 = vld [vmem:[#allocation7 + $0x38] sm:$0xff]
        %v457 = vld [vmem:[#allocation7 + $0x40] sm:$0xff]
        %v458 = vld [vmem:[#allocation7 + $0x48] sm:$0xff]
        %v459 = vld [vmem:[#allocation7 + $0x50] sm:$0xff]
        %v460 = vld [vmem:[#allocation7 + $0x58] sm:$0xff]
        %v461 = vld [vmem:[#allocation7 + $0x60] sm:$0xff]
        %v462 = vld [vmem:[#allocation7 + $0x68] sm:$0xff]
        %v463 = vld [vmem:[#allocation7 + $0x70] sm:$0xff]
        %v464 = vld [vmem:[#allocation7 + $0x78] sm:$0xff]
        %v465 = vld [vmem:[#allocation7 + $0x80] sm:$0xff]
        %v466 = vld [vmem:[#allocation7 + $0x88] sm:$0xff]
        %v467 = vld [vmem:[#allocation7 + $0x90] sm:$0xff]
        %v468 = vld [vmem:[#allocation7 + $0x98] sm:$0xff]
        %v469 = vld [vmem:[#allocation7 + $0xa0] sm:$0xff]
        %v470 = vld [vmem:[#allocation7 + $0xa8] sm:$0xff]
        %v471 = vld [vmem:[#allocation7 + $0xb0] sm:$0xff]
        %v472 = vld [vmem:[#allocation7 + $0xb8] sm:$0xff]
        %v473 = vld [vmem:[#allocation7 + $0xc0] sm:$0xff]
        %v474 = vld [vmem:[#allocation7 + $0xc8] sm:$0xff]
        %v475 = vld [vmem:[#allocation7 + $0xd0] sm:$0xff]
        %v476 = vld [vmem:[#allocation7 + $0xd8] sm:$0xff]
        %v477 = vld [vmem:[#allocation7 + $0xe0] sm:$0xff]
        %v478 = vld [vmem:[#allocation7 + $0xe8] sm:$0xff]
        %v479 = vld [vmem:[#allocation7 + $0xf0] sm:$0xff]
        %v480 = vld [vmem:[#allocation7 + $0xf8] sm:$0xff]
        %v481 = vld [vmem:[#allocation7 + $0x100] sm:$0xff]
        %v482 = vld [vmem:[#allocation7 + $0x108] sm:$0xff]
        %v483 = vld [vmem:[#allocation7 + $0x110] sm:$0xff]
        %v484 = vld [vmem:[#allocation7 + $0x118] sm:$0xff]
        %v485 = vld [vmem:[#allocation7 + $0x120] sm:$0xff]
        %v486 = vld [vmem:[#allocation7 + $0x128] sm:$0xff]
        %v487 = vld [vmem:[#allocation7 + $0x130] sm:$0xff]
        %v488 = vld [vmem:[#allocation7 + $0x138] sm:$0xff]
        %v489 = vld [vmem:[#allocation7 + $0x140] sm:$0xff]
        %v490 = vld [vmem:[#allocation7 + $0x148] sm:$0xff]
        %v491 = vld [vmem:[#allocation7 + $0x150] sm:$0xff]
        %v492 = vld [vmem:[#allocation7 + $0x158] sm:$0xff]
        %v493 = vld [vmem:[#allocation7 + $0x160] sm:$0xff]
        %v494 = vld [vmem:[#allocation7 + $0x168] sm:$0xff]
        %v495 = vld [vmem:[#allocation7 + $0x170] sm:$0xff]
        %v496 = vld [vmem:[#allocation7 + $0x178] sm:$0xff]
        %v497 = vld [vmem:[#allocation7 + $0x180] sm:$0xff]
        %v498 = vld [vmem:[#allocation7 + $0x188] sm:$0xff]
        %v499 = vld [vmem:[#allocation7 + $0x190] sm:$0xff]
        %v500 = vld [vmem:[#allocation7 + $0x198] sm:$0xff]
        %v501 = vld [vmem:[#allocation7 + $0x1a0] sm:$0xff]
        %v502 = vld [vmem:[#allocation7 + $0x1a8] sm:$0xff]
        %v503 = vld [vmem:[#allocation7 + $0x1b0] sm:$0xff]
        %v504 = vld [vmem:[#allocation7 + $0x1b8] sm:$0xff]
        %v505 = vld [vmem:[#allocation7 + $0x1c0] sm:$0xff]
        %v506 = vld [vmem:[#allocation7 + $0x1c8] sm:$0xff]
        %v507 = vld [vmem:[#allocation7 + $0x1d0] sm:$0xff]
        %v508 = vld [vmem:[#allocation7 + $0x1d8] sm:$0xff]
        %v509 = vld [vmem:[#allocation7 + $0x1e0] sm:$0xff]
        %v510 = vld [vmem:[#allocation7 + $0x1e8] sm:$0xff]
        %v511 = vld [vmem:[#allocation7 + $0x1f0] sm:$0xff]
        %v512 = vld [vmem:[#allocation7 + $0x1f8] sm:$0xff]
        %v513 = vld [vmem:[#allocation7 + $0x200] sm:$0xff]
        %v514 = vld [vmem:[#allocation7 + $0x208] sm:$0xff]
        %v515 = vld [vmem:[#allocation7 + $0x210] sm:$0xff]
        %v516 = vld [vmem:[#allocation7 + $0x218] sm:$0xff]
        %v517 = vld [vmem:[#allocation7 + $0x220] sm:$0xff]
        %v518 = vld [vmem:[#allocation7 + $0x228] sm:$0xff]
        %v519 = vld [vmem:[#allocation7 + $0x230] sm:$0xff]
        %v520 = vld [vmem:[#allocation7 + $0x238] sm:$0xff]
        %v521 = vld [vmem:[#allocation7 + $0x240] sm:$0xff]
        %v522 = vld [vmem:[#allocation7 + $0x248] sm:$0xff]
        %v523 = vld [vmem:[#allocation7 + $0x250] sm:$0xff]
        %v524 = vld [vmem:[#allocation7 + $0x258] sm:$0xff]
        %v525 = vld [vmem:[#allocation7 + $0x260] sm:$0xff]
        %v526 = vld [vmem:[#allocation7 + $0x268] sm:$0xff]
        %v527 = vld [vmem:[#allocation7 + $0x270] sm:$0xff]
        %v528 = vld [vmem:[#allocation7 + $0x278] sm:$0xff]
        %v529 = vld [vmem:[#allocation7 + $0x280] sm:$0xff]
        %v530 = vld [vmem:[#allocation7 + $0x288] sm:$0xff]
        %v531 = vld [vmem:[#allocation7 + $0x290] sm:$0xff]
        %v532 = vld [vmem:[#allocation7 + $0x298] sm:$0xff]
        %v533 = vld [vmem:[#allocation7 + $0x2a0] sm:$0xff]
        %v534 = vld [vmem:[#allocation7 + $0x2a8] sm:$0xff]
        %v535 = vld [vmem:[#allocation7 + $0x2b0] sm:$0xff]
        %v536 = vld [vmem:[#allocation7 + $0x2b8] sm:$0xff]
        %v537 = vld [vmem:[#allocation7 + $0x2c0] sm:$0xff]
        %v538 = vld [vmem:[#allocation7 + $0x2c8] sm:$0xff]
        %v539 = vld [vmem:[#allocation7 + $0x2d0] sm:$0xff]
        %v540 = vld [vmem:[#allocation7 + $0x2d8] sm:$0xff]
        %v541 = vld [vmem:[#allocation7 + $0x2e0] sm:$0xff]
        %v542 = vld [vmem:[#allocation7 + $0x2e8] sm:$0xff]
        %v543 = vld [vmem:[#allocation7 + $0x2f0] sm:$0xff]
        %v544 = vld [vmem:[#allocation7 + $0x2f8] sm:$0xff]
        %v545 = vld [vmem:[#allocation7 + $0x300] sm:$0xff]
        %v546 = vld [vmem:[#allocation7 + $0x308] sm:$0xff]
        %v547 = vld [vmem:[#allocation7 + $0x310] sm:$0xff]
        %v548 = vld [vmem:[#allocation7 + $0x318] sm:$0xff]
        %v549 = vld [vmem:[#allocation7 + $0x320] sm:$0xff]
        %v550 = vld [vmem:[#allocation7 + $0x328] sm:$0xff]
        %v551 = vld [vmem:[#allocation7 + $0x330] sm:$0xff]
        %v552 = vld [vmem:[#allocation7 + $0x338] sm:$0xff]
        %v553 = vld [vmem:[#allocation7 + $0x340] sm:$0xff]
        %v554 = vld [vmem:[#allocation7 + $0x348] sm:$0xff]
        %v555 = vld [vmem:[#allocation7 + $0x350] sm:$0xff]
        %v556 = vld [vmem:[#allocation7 + $0x358] sm:$0xff]
        %v557 = vld [vmem:[#allocation7 + $0x360] sm:$0xff]
        %v558 = vld [vmem:[#allocation7 + $0x368] sm:$0xff]
        %v559 = vld [vmem:[#allocation7 + $0x370] sm:$0xff]
        %v560 = vld [vmem:[#allocation7 + $0x378] sm:$0xff]
        %v561 = vld [vmem:[#allocation7 + $0x380] sm:$0xff]
        %v562 = vld [vmem:[#allocation7 + $0x388] sm:$0xff]
        %v563 = vld [vmem:[#allocation7 + $0x390] sm:$0xff]
        %v564 = vld [vmem:[#allocation7 + $0x398] sm:$0xff]
        %v565 = vld [vmem:[#allocation7 + $0x3a0] sm:$0xff]
        %v566 = vld [vmem:[#allocation7 + $0x3a8] sm:$0xff]
        %v567 = vld [vmem:[#allocation7 + $0x3b0] sm:$0xff]
        %v568 = vld [vmem:[#allocation7 + $0x3b8] sm:$0xff]
        %v569 = vld [vmem:[#allocation7 + $0x3c0] sm:$0xff]
        %v570 = vld [vmem:[#allocation7 + $0x3c8] sm:$0xff]
        %v571 = vld [vmem:[#allocation7 + $0x3d0] sm:$0xff]
        %v572 = vld [vmem:[#allocation7 + $0x3d8] sm:$0xff]
        %v573 = vld [vmem:[#allocation7 + $0x3e0] sm:$0xff]
        %v574 = vld [vmem:[#allocation7 + $0x3e8] sm:$0xff]
        %v575 = vld [vmem:[#allocation7 + $0x3f0] sm:$0xff]
        %v576 = vld [vmem:[#allocation7 + $0x3f8] sm:$0xff]
        %v705 = vunpack.c.l.b16 %v449
        %v706 = vunpack.c.h.b16 %v449
        %v707 = vunpack.c.l.b16 %v450
        %v708 = vunpack.c.h.b16 %v450
        %v709 = vunpack.c.l.b16 %v451
        %v710 = vunpack.c.h.b16 %v451
        %v711 = vunpack.c.l.b16 %v452
        %v712 = vunpack.c.h.b16 %v452
        %v713 = vunpack.c.l.b16 %v453
        %v714 = vunpack.c.h.b16 %v453
        %v715 = vunpack.c.l.b16 %v454
        %v716 = vunpack.c.h.b16 %v454
        %v717 = vunpack.c.l.b16 %v455
        %v718 = vunpack.c.h.b16 %v455
        %v719 = vunpack.c.l.b16 %v456
        %v720 = vunpack.c.h.b16 %v456
        %v721 = vunpack.c.l.b16 %v457
        %v722 = vunpack.c.h.b16 %v457
        %v723 = vunpack.c.l.b16 %v458
        %v724 = vunpack.c.h.b16 %v458
        %v725 = vunpack.c.l.b16 %v459
        %v726 = vunpack.c.h.b16 %v459
        %v727 = vunpack.c.l.b16 %v460
        %v728 = vunpack.c.h.b16 %v460
        %v729 = vunpack.c.l.b16 %v461
        %v730 = vunpack.c.h.b16 %v461
        %v731 = vunpack.c.l.b16 %v462
        %v732 = vunpack.c.h.b16 %v462
        %v733 = vunpack.c.l.b16 %v463
        %v734 = vunpack.c.h.b16 %v463
        %v735 = vunpack.c.l.b16 %v464
        %v736 = vunpack.c.h.b16 %v464
        %v737 = vunpack.c.l.b16 %v465
        %v738 = vunpack.c.h.b16 %v465
        %v739 = vunpack.c.l.b16 %v466
        %v740 = vunpack.c.h.b16 %v466
        %v741 = vunpack.c.l.b16 %v467
        %v742 = vunpack.c.h.b16 %v467
        %v743 = vunpack.c.l.b16 %v468
        %v744 = vunpack.c.h.b16 %v468
        %v745 = vunpack.c.l.b16 %v469
        %v746 = vunpack.c.h.b16 %v469
        %v747 = vunpack.c.l.b16 %v470
        %v748 = vunpack.c.h.b16 %v470
        %v749 = vunpack.c.l.b16 %v471
        %v750 = vunpack.c.h.b16 %v471
        %v751 = vunpack.c.l.b16 %v472
        %v752 = vunpack.c.h.b16 %v472
        %v753 = vunpack.c.l.b16 %v473
        %v754 = vunpack.c.h.b16 %v473
        %v755 = vunpack.c.l.b16 %v474
        %v756 = vunpack.c.h.b16 %v474
        %v757 = vunpack.c.l.b16 %v475
        %v758 = vunpack.c.h.b16 %v475
        %v759 = vunpack.c.l.b16 %v476
        %v760 = vunpack.c.h.b16 %v476
        %v761 = vunpack.c.l.b16 %v477
        %v762 = vunpack.c.h.b16 %v477
        %v763 = vunpack.c.l.b16 %v478
        %v764 = vunpack.c.h.b16 %v478
        %v765 = vunpack.c.l.b16 %v479
        %v766 = vunpack.c.h.b16 %v479
        %v767 = vunpack.c.l.b16 %v480
        %v768 = vunpack.c.h.b16 %v480
        %v769 = vunpack.c.l.b16 %v481
        %v770 = vunpack.c.h.b16 %v481
        %v771 = vunpack.c.l.b16 %v482
        %v772 = vunpack.c.h.b16 %v482
        %v773 = vunpack.c.l.b16 %v483
        %v774 = vunpack.c.h.b16 %v483
        %v775 = vunpack.c.l.b16 %v484
        %v776 = vunpack.c.h.b16 %v484
        %v777 = vunpack.c.l.b16 %v485
        %v778 = vunpack.c.h.b16 %v485
        %v779 = vunpack.c.l.b16 %v486
        %v780 = vunpack.c.h.b16 %v486
        %v781 = vunpack.c.l.b16 %v487
        %v782 = vunpack.c.h.b16 %v487
        %v783 = vunpack.c.l.b16 %v488
        %v784 = vunpack.c.h.b16 %v488
        %v785 = vunpack.c.l.b16 %v489
        %v786 = vunpack.c.h.b16 %v489
        %v787 = vunpack.c.l.b16 %v490
        %v788 = vunpack.c.h.b16 %v490
        %v789 = vunpack.c.l.b16 %v491
        %v790 = vunpack.c.h.b16 %v491
        %v791 = vunpack.c.l.b16 %v492
        %v792 = vunpack.c.h.b16 %v492
        %v793 = vunpack.c.l.b16 %v493
        %v794 = vunpack.c.h.b16 %v493
        %v795 = vunpack.c.l.b16 %v494
        %v796 = vunpack.c.h.b16 %v494
        %v797 = vunpack.c.l.b16 %v495
        %v798 = vunpack.c.h.b16 %v495
        %v799 = vunpack.c.l.b16 %v496
        %v800 = vunpack.c.h.b16 %v496
        %v801 = vunpack.c.l.b16 %v497
        %v802 = vunpack.c.h.b16 %v497
        %v803 = vunpack.c.l.b16 %v498
        %v804 = vunpack.c.h.b16 %v498
        %v805 = vunpack.c.l.b16 %v499
        %v806 = vunpack.c.h.b16 %v499
        %v807 = vunpack.c.l.b16 %v500
        %v808 = vunpack.c.h.b16 %v500
        %v809 = vunpack.c.l.b16 %v501
        %v810 = vunpack.c.h.b16 %v501
        %v811 = vunpack.c.l.b16 %v502
        %v812 = vunpack.c.h.b16 %v502
        %v813 = vunpack.c.l.b16 %v503
        %v814 = vunpack.c.h.b16 %v503
        %v815 = vunpack.c.l.b16 %v504
        %v816 = vunpack.c.h.b16 %v504
        %v817 = vunpack.c.l.b16 %v505
        %v818 = vunpack.c.h.b16 %v505
        %v819 = vunpack.c.l.b16 %v506
        %v820 = vunpack.c.h.b16 %v506
        %v821 = vunpack.c.l.b16 %v507
        %v822 = vunpack.c.h.b16 %v507
        %v823 = vunpack.c.l.b16 %v508
        %v824 = vunpack.c.h.b16 %v508
        %v825 = vunpack.c.l.b16 %v509
        %v826 = vunpack.c.h.b16 %v509
        %v827 = vunpack.c.l.b16 %v510
        %v828 = vunpack.c.h.b16 %v510
        %v829 = vunpack.c.l.b16 %v511
        %v830 = vunpack.c.h.b16 %v511
        %v831 = vunpack.c.l.b16 %v512
        %v832 = vunpack.c.h.b16 %v512
        %v833 = vunpack.c.l.b16 %v513
        %v834 = vunpack.c.h.b16 %v513
        %v835 = vunpack.c.l.b16 %v514
        %v836 = vunpack.c.h.b16 %v514
        %v837 = vunpack.c.l.b16 %v515
        %v838 = vunpack.c.h.b16 %v515
        %v839 = vunpack.c.l.b16 %v516
        %v840 = vunpack.c.h.b16 %v516
        %v841 = vunpack.c.l.b16 %v517
        %v842 = vunpack.c.h.b16 %v517
        %v843 = vunpack.c.l.b16 %v518
        %v844 = vunpack.c.h.b16 %v518
        %v845 = vunpack.c.l.b16 %v519
        %v846 = vunpack.c.h.b16 %v519
        %v847 = vunpack.c.l.b16 %v520
        %v848 = vunpack.c.h.b16 %v520
        %v849 = vunpack.c.l.b16 %v521
        %v850 = vunpack.c.h.b16 %v521
        %v851 = vunpack.c.l.b16 %v522
        %v852 = vunpack.c.h.b16 %v522
        %v853 = vunpack.c.l.b16 %v523
        %v854 = vunpack.c.h.b16 %v523
        %v855 = vunpack.c.l.b16 %v524
        %v856 = vunpack.c.h.b16 %v524
        %v857 = vunpack.c.l.b16 %v525
        %v858 = vunpack.c.h.b16 %v525
        %v859 = vunpack.c.l.b16 %v526
        %v860 = vunpack.c.h.b16 %v526
        %v861 = vunpack.c.l.b16 %v527
        %v862 = vunpack.c.h.b16 %v527
        %v863 = vunpack.c.l.b16 %v528
        %v864 = vunpack.c.h.b16 %v528
        %v865 = vunpack.c.l.b16 %v529
        %v866 = vunpack.c.h.b16 %v529
        %v867 = vunpack.c.l.b16 %v530
        %v868 = vunpack.c.h.b16 %v530
        %v869 = vunpack.c.l.b16 %v531
        %v870 = vunpack.c.h.b16 %v531
        %v871 = vunpack.c.l.b16 %v532
        %v872 = vunpack.c.h.b16 %v532
        %v873 = vunpack.c.l.b16 %v533
        %v874 = vunpack.c.h.b16 %v533
        %v875 = vunpack.c.l.b16 %v534
        %v876 = vunpack.c.h.b16 %v534
        %v877 = vunpack.c.l.b16 %v535
        %v878 = vunpack.c.h.b16 %v535
        %v879 = vunpack.c.l.b16 %v536
        %v880 = vunpack.c.h.b16 %v536
        %v881 = vunpack.c.l.b16 %v537
        %v882 = vunpack.c.h.b16 %v537
        %v883 = vunpack.c.l.b16 %v538
        %v884 = vunpack.c.h.b16 %v538
        %v885 = vunpack.c.l.b16 %v539
        %v886 = vunpack.c.h.b16 %v539
        %v887 = vunpack.c.l.b16 %v540
        %v888 = vunpack.c.h.b16 %v540
        %v889 = vunpack.c.l.b16 %v541
        %v890 = vunpack.c.h.b16 %v541
        %v891 = vunpack.c.l.b16 %v542
        %v892 = vunpack.c.h.b16 %v542
        %v893 = vunpack.c.l.b16 %v543
        %v894 = vunpack.c.h.b16 %v543
        %v895 = vunpack.c.l.b16 %v544
        %v896 = vunpack.c.h.b16 %v544
        %v897 = vunpack.c.l.b16 %v545
        %v898 = vunpack.c.h.b16 %v545
        %v899 = vunpack.c.l.b16 %v546
        %v900 = vunpack.c.h.b16 %v546
        %v901 = vunpack.c.l.b16 %v547
        %v902 = vunpack.c.h.b16 %v547
        %v903 = vunpack.c.l.b16 %v548
        %v904 = vunpack.c.h.b16 %v548
        %v905 = vunpack.c.l.b16 %v549
        %v906 = vunpack.c.h.b16 %v549
        %v907 = vunpack.c.l.b16 %v550
        %v908 = vunpack.c.h.b16 %v550
        %v909 = vunpack.c.l.b16 %v551
        %v910 = vunpack.c.h.b16 %v551
        %v911 = vunpack.c.l.b16 %v552
        %v912 = vunpack.c.h.b16 %v552
        %v913 = vunpack.c.l.b16 %v553
        %v914 = vunpack.c.h.b16 %v553
        %v915 = vunpack.c.l.b16 %v554
        %v916 = vunpack.c.h.b16 %v554
        %v917 = vunpack.c.l.b16 %v555
        %v918 = vunpack.c.h.b16 %v555
        %v919 = vunpack.c.l.b16 %v556
        %v920 = vunpack.c.h.b16 %v556
        %v921 = vunpack.c.l.b16 %v557
        %v922 = vunpack.c.h.b16 %v557
        %v923 = vunpack.c.l.b16 %v558
        %v924 = vunpack.c.h.b16 %v558
        %v925 = vunpack.c.l.b16 %v559
        %v926 = vunpack.c.h.b16 %v559
        %v927 = vunpack.c.l.b16 %v560
        %v928 = vunpack.c.h.b16 %v560
        %v929 = vunpack.c.l.b16 %v561
        %v930 = vunpack.c.h.b16 %v561
        %v931 = vunpack.c.l.b16 %v562
        %v932 = vunpack.c.h.b16 %v562
        %v933 = vunpack.c.l.b16 %v563
        %v934 = vunpack.c.h.b16 %v563
        %v935 = vunpack.c.l.b16 %v564
        %v936 = vunpack.c.h.b16 %v564
        %v937 = vunpack.c.l.b16 %v565
        %v938 = vunpack.c.h.b16 %v565
        %v939 = vunpack.c.l.b16 %v566
        %v940 = vunpack.c.h.b16 %v566
        %v941 = vunpack.c.l.b16 %v567
        %v942 = vunpack.c.h.b16 %v567
        %v943 = vunpack.c.l.b16 %v568
        %v944 = vunpack.c.h.b16 %v568
        %v945 = vunpack.c.l.b16 %v569
        %v946 = vunpack.c.h.b16 %v569
        %v947 = vunpack.c.l.b16 %v570
        %v948 = vunpack.c.h.b16 %v570
        %v949 = vunpack.c.l.b16 %v571
        %v950 = vunpack.c.h.b16 %v571
        %v951 = vunpack.c.l.b16 %v572
        %v952 = vunpack.c.h.b16 %v572
        %v953 = vunpack.c.l.b16 %v573
        %v954 = vunpack.c.h.b16 %v573
        %v955 = vunpack.c.l.b16 %v574
        %v956 = vunpack.c.h.b16 %v574
        %v957 = vunpack.c.l.b16 %v575
        %v958 = vunpack.c.h.b16 %v575
        %v959 = vunpack.c.l.b16 %v576
        %v960 = vunpack.c.h.b16 %v576
        %v961 = vpack.c.b16 %v709, %v705
        %v962 = vpack.c.b16 %v710, %v706
        %v963 = vpack.c.b16 %v711, %v707
        %v964 = vpack.c.b16 %v712, %v708
        %v965 = vpack.c.b16 %v717, %v713
        %v966 = vpack.c.b16 %v718, %v714
        %v967 = vpack.c.b16 %v719, %v715
        %v968 = vpack.c.b16 %v720, %v716
        %v969 = vpack.c.b16 %v725, %v721
        %v970 = vpack.c.b16 %v726, %v722
        %v971 = vpack.c.b16 %v727, %v723
        %v972 = vpack.c.b16 %v728, %v724
        %v973 = vpack.c.b16 %v733, %v729
        %v974 = vpack.c.b16 %v734, %v730
        %v975 = vpack.c.b16 %v735, %v731
        %v976 = vpack.c.b16 %v736, %v732
        %v977 = vpack.c.b16 %v741, %v737
        %v978 = vpack.c.b16 %v742, %v738
        %v979 = vpack.c.b16 %v743, %v739
        %v980 = vpack.c.b16 %v744, %v740
        %v981 = vpack.c.b16 %v749, %v745
        %v982 = vpack.c.b16 %v750, %v746
        %v983 = vpack.c.b16 %v751, %v747
        %v984 = vpack.c.b16 %v752, %v748
        %v985 = vpack.c.b16 %v757, %v753
        %v986 = vpack.c.b16 %v758, %v754
        %v987 = vpack.c.b16 %v759, %v755
        %v988 = vpack.c.b16 %v760, %v756
        %v989 = vpack.c.b16 %v765, %v761
        %v990 = vpack.c.b16 %v766, %v762
        %v991 = vpack.c.b16 %v767, %v763
        %v992 = vpack.c.b16 %v768, %v764
        %v993 = vpack.c.b16 %v773, %v769
        %v994 = vpack.c.b16 %v774, %v770
        %v995 = vpack.c.b16 %v775, %v771
        %v996 = vpack.c.b16 %v776, %v772
        %v997 = vpack.c.b16 %v781, %v777
        %v998 = vpack.c.b16 %v782, %v778
        %v999 = vpack.c.b16 %v783, %v779
        %v1000 = vpack.c.b16 %v784, %v780
        %v1001 = vpack.c.b16 %v789, %v785
        %v1002 = vpack.c.b16 %v790, %v786
        %v1003 = vpack.c.b16 %v791, %v787
        %v1004 = vpack.c.b16 %v792, %v788
        %v1005 = vpack.c.b16 %v797, %v793
        %v1006 = vpack.c.b16 %v798, %v794
        %v1007 = vpack.c.b16 %v799, %v795
        %v1008 = vpack.c.b16 %v800, %v796
        %v1009 = vpack.c.b16 %v805, %v801
        %v1010 = vpack.c.b16 %v806, %v802
        %v1011 = vpack.c.b16 %v807, %v803
        %v1012 = vpack.c.b16 %v808, %v804
        %v1013 = vpack.c.b16 %v813, %v809
        %v1014 = vpack.c.b16 %v814, %v810
        %v1015 = vpack.c.b16 %v815, %v811
        %v1016 = vpack.c.b16 %v816, %v812
        %v1017 = vpack.c.b16 %v821, %v817
        %v1018 = vpack.c.b16 %v822, %v818
        %v1019 = vpack.c.b16 %v823, %v819
        %v1020 = vpack.c.b16 %v824, %v820
        %v1021 = vpack.c.b16 %v829, %v825
        %v1022 = vpack.c.b16 %v830, %v826
        %v1023 = vpack.c.b16 %v831, %v827
        %v1024 = vpack.c.b16 %v832, %v828
        %v1025 = vpack.c.b16 %v837, %v833
        %v1026 = vpack.c.b16 %v838, %v834
        %v1027 = vpack.c.b16 %v839, %v835
        %v1028 = vpack.c.b16 %v840, %v836
        %v1029 = vpack.c.b16 %v845, %v841
        %v1030 = vpack.c.b16 %v846, %v842
        %v1031 = vpack.c.b16 %v847, %v843
        %v1032 = vpack.c.b16 %v848, %v844
        %v1033 = vpack.c.b16 %v853, %v849
        %v1034 = vpack.c.b16 %v854, %v850
        %v1035 = vpack.c.b16 %v855, %v851
        %v1036 = vpack.c.b16 %v856, %v852
        %v1037 = vpack.c.b16 %v861, %v857
        %v1038 = vpack.c.b16 %v862, %v858
        %v1039 = vpack.c.b16 %v863, %v859
        %v1040 = vpack.c.b16 %v864, %v860
        %v1041 = vpack.c.b16 %v869, %v865
        %v1042 = vpack.c.b16 %v870, %v866
        %v1043 = vpack.c.b16 %v871, %v867
        %v1044 = vpack.c.b16 %v872, %v868
        %v1045 = vpack.c.b16 %v877, %v873
        %v1046 = vpack.c.b16 %v878, %v874
        %v1047 = vpack.c.b16 %v879, %v875
        %v1048 = vpack.c.b16 %v880, %v876
        %v1049 = vpack.c.b16 %v885, %v881
        %v1050 = vpack.c.b16 %v886, %v882
        %v1051 = vpack.c.b16 %v887, %v883
        %v1052 = vpack.c.b16 %v888, %v884
        %v1053 = vpack.c.b16 %v893, %v889
        %v1054 = vpack.c.b16 %v894, %v890
        %v1055 = vpack.c.b16 %v895, %v891
        %v1056 = vpack.c.b16 %v896, %v892
        %v1057 = vpack.c.b16 %v901, %v897
        %v1058 = vpack.c.b16 %v902, %v898
        %v1059 = vpack.c.b16 %v903, %v899
        %v1060 = vpack.c.b16 %v904, %v900
        %v1061 = vpack.c.b16 %v909, %v905
        %v1062 = vpack.c.b16 %v910, %v906
        %v1063 = vpack.c.b16 %v911, %v907
        %v1064 = vpack.c.b16 %v912, %v908
        %v1065 = vpack.c.b16 %v917, %v913
        %v1066 = vpack.c.b16 %v918, %v914
        %v1067 = vpack.c.b16 %v919, %v915
        %v1068 = vpack.c.b16 %v920, %v916
        %v1069 = vpack.c.b16 %v925, %v921
        %v1070 = vpack.c.b16 %v926, %v922
        %v1071 = vpack.c.b16 %v927, %v923
        %v1072 = vpack.c.b16 %v928, %v924
        %v1073 = vpack.c.b16 %v933, %v929
        %v1074 = vpack.c.b16 %v934, %v930
        %v1075 = vpack.c.b16 %v935, %v931
        %v1076 = vpack.c.b16 %v936, %v932
        %v1077 = vpack.c.b16 %v941, %v937
        %v1078 = vpack.c.b16 %v942, %v938
        %v1079 = vpack.c.b16 %v943, %v939
        %v1080 = vpack.c.b16 %v944, %v940
        %v1081 = vpack.c.b16 %v949, %v945
        %v1082 = vpack.c.b16 %v950, %v946
        %v1083 = vpack.c.b16 %v951, %v947
        %v1084 = vpack.c.b16 %v952, %v948
        %v1085 = vpack.c.b16 %v957, %v953
        %v1086 = vpack.c.b16 %v958, %v954
        %v1087 = vpack.c.b16 %v959, %v955
        %v1088 = vpack.c.b16 %v960, %v956
        %1217 = vmatprep.subr.bf16.mxu0 %v990
        %1218 = vmatpush1.bf16.msra.mxu0 %v989
        %1219 = vmatprep.subr.bf16.mxu0 %v986
        %1220 = vmatpush1.bf16.msra.mxu0 %v985
        %1221 = vmatprep.subr.bf16.mxu0 %v982
        %1222 = vmatpush1.bf16.msra.mxu0 %v981
        %1223 = vmatprep.subr.bf16.mxu0 %v978
        %1224 = vmatpush1.bf16.msra.mxu0 %v977
        %1225 = vmatprep.subr.bf16.mxu0 %v974
        %1226 = vmatpush1.bf16.msra.mxu0 %v973
        %1227 = vmatprep.subr.bf16.mxu0 %v970
        %1228 = vmatpush1.bf16.msra.mxu0 %v969
        %1229 = vmatprep.subr.bf16.mxu0 %v966
        %1230 = vmatpush1.bf16.msra.mxu0 %v965
        %1231 = vmatprep.subr.bf16.mxu0 %v962
        %1232 = vmatpush1.bf16.msra.mxu0 %v961
        %1233 = vmatprep.subr.bf16.mxu0 %v1022
        %1234 = vmatpush2.bf16.msra.mxu0 %v1021
        %1235 = vmatprep.subr.bf16.mxu0 %v1018
        %1236 = vmatpush2.bf16.msra.mxu0 %v1017
        %1237 = vmatprep.subr.bf16.mxu0 %v1014
        %1238 = vmatpush2.bf16.msra.mxu0 %v1013
        %1239 = vmatprep.subr.bf16.mxu0 %v1010
        %1240 = vmatpush2.bf16.msra.mxu0 %v1009
        %1241 = vmatprep.subr.bf16.mxu0 %v1006
        %1242 = vmatpush2.bf16.msra.mxu0 %v1005
        %1243 = vmatprep.subr.bf16.mxu0 %v1002
        %1244 = vmatpush2.bf16.msra.mxu0 %v1001
        %1245 = vmatprep.subr.bf16.mxu0 %v998
        %1246 = vmatpush2.bf16.msra.mxu0 %v997
        %1247 = vmatprep.subr.bf16.mxu0 %v994
        %1248 = vmatpush2.bf16.msra.mxu0 %v993
        %1249 = vmatprep.mubr.bf16.mxu0 %v418
        %1250 = vmatmul.mubr.bf16.gmra.mxu0 %v417
        %v1251 = vpop.f32.mrf.mxu0
        %v1252 = vadd.f32 0.0, %v1251
        %v1253 = vpop.f32.mrf.mxu0
        %v1254 = vadd.f32 0.0, %v1253
        %v1255 = vpop.f32.mrf.mxu0
        %v1256 = vadd.f32 0.0, %v1255
        %v1257 = vpop.f32.mrf.mxu0
        %v1258 = vadd.f32 0.0, %v1257
        %1259 = vmatprep.mubr.bf16.mxu0 %v422
        %1260 = vmatmul.mubr.bf16.gmra.mxu0 %v421
        %v1261 = vpop.f32.mrf.mxu0
        %v1262 = vadd.f32 0.0, %v1261
        %v1263 = vpop.f32.mrf.mxu0
        %v1264 = vadd.f32 0.0, %v1263
        %v1265 = vpop.f32.mrf.mxu0
        %v1266 = vadd.f32 0.0, %v1265
        %v1267 = vpop.f32.mrf.mxu0
        %v1268 = vadd.f32 0.0, %v1267
        %1269 = vmatprep.mubr.bf16.mxu0 %v426
        %1270 = vmatmul.mubr.bf16.gmra.mxu0 %v425
        %v1271 = vpop.f32.mrf.mxu0
        %v1272 = vadd.f32 0.0, %v1271
        %v1273 = vpop.f32.mrf.mxu0
        %v1274 = vadd.f32 0.0, %v1273
        %v1275 = vpop.f32.mrf.mxu0
        %v1276 = vadd.f32 0.0, %v1275
        %v1277 = vpop.f32.mrf.mxu0
        %v1278 = vadd.f32 0.0, %v1277
        %1279 = vmatprep.mubr.bf16.mxu0 %v430
        %1280 = vmatmul.mubr.bf16.gmra.mxu0 %v429
        %v1281 = vpop.f32.mrf.mxu0
        %v1282 = vadd.f32 0.0, %v1281
        %v1283 = vpop.f32.mrf.mxu0
        %v1284 = vadd.f32 0.0, %v1283
        %v1285 = vpop.f32.mrf.mxu0
        %v1286 = vadd.f32 0.0, %v1285
        %v1287 = vpop.f32.mrf.mxu0
        %v1288 = vadd.f32 0.0, %v1287
        %1289 = vmatprep.mubr.bf16.mxu0 %v434
        %1290 = vmatmul.mubr.bf16.gmra.mxu0 %v433
        %v1291 = vpop.f32.mrf.mxu0
        %v1292 = vadd.f32 0.0, %v1291
        %v1293 = vpop.f32.mrf.mxu0
        %v1294 = vadd.f32 0.0, %v1293
        %v1295 = vpop.f32.mrf.mxu0
        %v1296 = vadd.f32 0.0, %v1295
        %v1297 = vpop.f32.mrf.mxu0
        %v1298 = vadd.f32 0.0, %v1297
        %1299 = vmatprep.mubr.bf16.mxu0 %v438
        %1300 = vmatmul.mubr.bf16.gmra.mxu0 %v437
        %v1301 = vpop.f32.mrf.mxu0
        %v1302 = vadd.f32 0.0, %v1301
        %v1303 = vpop.f32.mrf.mxu0
        %v1304 = vadd.f32 0.0, %v1303
        %v1305 = vpop.f32.mrf.mxu0
        %v1306 = vadd.f32 0.0, %v1305
        %v1307 = vpop.f32.mrf.mxu0
        %v1308 = vadd.f32 0.0, %v1307
        %1309 = vmatprep.mubr.bf16.mxu0 %v442
        %1310 = vmatmul.mubr.bf16.gmra.mxu0 %v441
        %v1311 = vpop.f32.mrf.mxu0
        %v1312 = vadd.f32 0.0, %v1311
        %v1313 = vpop.f32.mrf.mxu0
        %v1314 = vadd.f32 0.0, %v1313
        %v1315 = vpop.f32.mrf.mxu0
        %v1316 = vadd.f32 0.0, %v1315
        %v1317 = vpop.f32.mrf.mxu0
        %v1318 = vadd.f32 0.0, %v1317
        %1319 = vmatprep.mubr.bf16.mxu0 %v446
        %1320 = vmatmul.mubr.bf16.gmra.mxu0 %v445
        %v1321 = vpop.f32.mrf.mxu0
        %v1322 = vadd.f32 0.0, %v1321
        %v1323 = vpop.f32.mrf.mxu0
        %v1324 = vadd.f32 0.0, %v1323
        %v1325 = vpop.f32.mrf.mxu0
        %v1326 = vadd.f32 0.0, %v1325
        %v1327 = vpop.f32.mrf.mxu0
        %v1328 = vadd.f32 0.0, %v1327
        %1329 = vdwg.mxu0
        %1330 = vmatprep.subr.bf16.mxu0 %v1054
        %1331 = vmatpush1.bf16.msra.mxu0 %v1053
        %1332 = vmatprep.subr.bf16.mxu0 %v1050
        %1333 = vmatpush1.bf16.msra.mxu0 %v1049
        %1334 = vmatprep.subr.bf16.mxu0 %v1046
        %1335 = vmatpush1.bf16.msra.mxu0 %v1045
        %1336 = vmatprep.subr.bf16.mxu0 %v1042
        %1337 = vmatpush1.bf16.msra.mxu0 %v1041
        %1338 = vmatprep.subr.bf16.mxu0 %v1038
        %1339 = vmatpush1.bf16.msra.mxu0 %v1037
        %1340 = vmatprep.subr.bf16.mxu0 %v1034
        %1341 = vmatpush1.bf16.msra.mxu0 %v1033
        %1342 = vmatprep.subr.bf16.mxu0 %v1030
        %1343 = vmatpush1.bf16.msra.mxu0 %v1029
        %1344 = vmatprep.subr.bf16.mxu0 %v1026
        %1345 = vmatpush1.bf16.msra.mxu0 %v1025
        %1346 = vmatprep.subr.bf16.mxu0 %v1086
        %1347 = vmatpush2.bf16.msra.mxu0 %v1085
        %1348 = vmatprep.subr.bf16.mxu0 %v1082
        %1349 = vmatpush2.bf16.msra.mxu0 %v1081
        %1350 = vmatprep.subr.bf16.mxu0 %v1078
        %1351 = vmatpush2.bf16.msra.mxu0 %v1077
        %1352 = vmatprep.subr.bf16.mxu0 %v1074
        %1353 = vmatpush2.bf16.msra.mxu0 %v1073
        %1354 = vmatprep.subr.bf16.mxu0 %v1070
        %1355 = vmatpush2.bf16.msra.mxu0 %v1069
        %1356 = vmatprep.subr.bf16.mxu0 %v1066
        %1357 = vmatpush2.bf16.msra.mxu0 %v1065
        %1358 = vmatprep.subr.bf16.mxu0 %v1062
        %1359 = vmatpush2.bf16.msra.mxu0 %v1061
        %1360 = vmatprep.subr.bf16.mxu0 %v1058
        %1361 = vmatpush2.bf16.msra.mxu0 %v1057
        %1362 = vmatprep.mubr.bf16.mxu0 %v420
        %1363 = vmatmul.mubr.bf16.gmra.mxu0 %v419
        %v1364 = vpop.f32.mrf.mxu0
        %v1365 = vadd.f32 %v1252, %v1364
        %v1366 = vpop.f32.mrf.mxu0
        %v1367 = vadd.f32 %v1254, %v1366
        %v1368 = vpop.f32.mrf.mxu0
        %v1369 = vadd.f32 %v1256, %v1368
        %v1370 = vpop.f32.mrf.mxu0
        %v1371 = vadd.f32 %v1258, %v1370
        %1372 = vmatprep.mubr.bf16.mxu0 %v424
        %1373 = vmatmul.mubr.bf16.gmra.mxu0 %v423
        %v1374 = vpop.f32.mrf.mxu0
        %v1375 = vadd.f32 %v1262, %v1374
        %v1376 = vpop.f32.mrf.mxu0
        %v1377 = vadd.f32 %v1264, %v1376
        %v1378 = vpop.f32.mrf.mxu0
        %v1379 = vadd.f32 %v1266, %v1378
        %v1380 = vpop.f32.mrf.mxu0
        %v1381 = vadd.f32 %v1268, %v1380
        %1382 = vmatprep.mubr.bf16.mxu0 %v428
        %1383 = vmatmul.mubr.bf16.gmra.mxu0 %v427
        %v1384 = vpop.f32.mrf.mxu0
        %v1385 = vadd.f32 %v1272, %v1384
        %v1386 = vpop.f32.mrf.mxu0
        %v1387 = vadd.f32 %v1274, %v1386
        %v1388 = vpop.f32.mrf.mxu0
        %v1389 = vadd.f32 %v1276, %v1388
        %v1390 = vpop.f32.mrf.mxu0
        %v1391 = vadd.f32 %v1278, %v1390
        %1392 = vmatprep.mubr.bf16.mxu0 %v432
        %1393 = vmatmul.mubr.bf16.gmra.mxu0 %v431
        %v1394 = vpop.f32.mrf.mxu0
        %v1395 = vadd.f32 %v1282, %v1394
        %v1396 = vpop.f32.mrf.mxu0
        %v1397 = vadd.f32 %v1284, %v1396
        %v1398 = vpop.f32.mrf.mxu0
        %v1399 = vadd.f32 %v1286, %v1398
        %v1400 = vpop.f32.mrf.mxu0
        %v1401 = vadd.f32 %v1288, %v1400
        %1402 = vmatprep.mubr.bf16.mxu0 %v436
        %1403 = vmatmul.mubr.bf16.gmra.mxu0 %v435
        %v1404 = vpop.f32.mrf.mxu0
        %v1405 = vadd.f32 %v1292, %v1404
        %v1406 = vpop.f32.mrf.mxu0
        %v1407 = vadd.f32 %v1294, %v1406
        %v1408 = vpop.f32.mrf.mxu0
        %v1409 = vadd.f32 %v1296, %v1408
        %v1410 = vpop.f32.mrf.mxu0
        %v1411 = vadd.f32 %v1298, %v1410
        %1412 = vmatprep.mubr.bf16.mxu0 %v440
        %1413 = vmatmul.mubr.bf16.gmra.mxu0 %v439
        %v1414 = vpop.f32.mrf.mxu0
        %v1415 = vadd.f32 %v1302, %v1414
        %v1416 = vpop.f32.mrf.mxu0
        %v1417 = vadd.f32 %v1304, %v1416
        %v1418 = vpop.f32.mrf.mxu0
        %v1419 = vadd.f32 %v1306, %v1418
        %v1420 = vpop.f32.mrf.mxu0
        %v1421 = vadd.f32 %v1308, %v1420
        %1422 = vmatprep.mubr.bf16.mxu0 %v444
        %1423 = vmatmul.mubr.bf16.gmra.mxu0 %v443
        %v1424 = vpop.f32.mrf.mxu0
        %v1425 = vadd.f32 %v1312, %v1424
        %v1426 = vpop.f32.mrf.mxu0
        %v1427 = vadd.f32 %v1314, %v1426
        %v1428 = vpop.f32.mrf.mxu0
        %v1429 = vadd.f32 %v1316, %v1428
        %v1430 = vpop.f32.mrf.mxu0
        %v1431 = vadd.f32 %v1318, %v1430
        %1432 = vmatprep.mubr.bf16.mxu0 %v448
        %1433 = vmatmul.mubr.bf16.gmra.mxu0 %v447
        %v1434 = vpop.f32.mrf.mxu0
        %v1435 = vadd.f32 %v1322, %v1434
        %v1436 = vpop.f32.mrf.mxu0
        %v1437 = vadd.f32 %v1324, %v1436
        %v1438 = vpop.f32.mrf.mxu0
        %v1439 = vadd.f32 %v1326, %v1438
        %v1440 = vpop.f32.mrf.mxu0
        %v1441 = vadd.f32 %v1328, %v1440
        %1442 = vdwg.mxu0
        %1443 = vmatprep.subr.bf16.mxu0 %v992
        %1444 = vmatpush1.bf16.msra.mxu0 %v991
        %1445 = vmatprep.subr.bf16.mxu0 %v988
        %1446 = vmatpush1.bf16.msra.mxu0 %v987
        %1447 = vmatprep.subr.bf16.mxu0 %v984
        %1448 = vmatpush1.bf16.msra.mxu0 %v983
        %1449 = vmatprep.subr.bf16.mxu0 %v980
        %1450 = vmatpush1.bf16.msra.mxu0 %v979
        %1451 = vmatprep.subr.bf16.mxu0 %v976
        %1452 = vmatpush1.bf16.msra.mxu0 %v975
        %1453 = vmatprep.subr.bf16.mxu0 %v972
        %1454 = vmatpush1.bf16.msra.mxu0 %v971
        %1455 = vmatprep.subr.bf16.mxu0 %v968
        %1456 = vmatpush1.bf16.msra.mxu0 %v967
        %1457 = vmatprep.subr.bf16.mxu0 %v964
        %1458 = vmatpush1.bf16.msra.mxu0 %v963
        %1459 = vmatprep.subr.bf16.mxu0 %v1024
        %1460 = vmatpush2.bf16.msra.mxu0 %v1023
        %1461 = vmatprep.subr.bf16.mxu0 %v1020
        %1462 = vmatpush2.bf16.msra.mxu0 %v1019
        %1463 = vmatprep.subr.bf16.mxu0 %v1016
        %1464 = vmatpush2.bf16.msra.mxu0 %v1015
        %1465 = vmatprep.subr.bf16.mxu0 %v1012
        %1466 = vmatpush2.bf16.msra.mxu0 %v1011
        %1467 = vmatprep.subr.bf16.mxu0 %v1008
        %1468 = vmatpush2.bf16.msra.mxu0 %v1007
        %1469 = vmatprep.subr.bf16.mxu0 %v1004
        %1470 = vmatpush2.bf16.msra.mxu0 %v1003
        %1471 = vmatprep.subr.bf16.mxu0 %v1000
        %1472 = vmatpush2.bf16.msra.mxu0 %v999
        %1473 = vmatprep.subr.bf16.mxu0 %v996
        %1474 = vmatpush2.bf16.msra.mxu0 %v995
        %1475 = vmatprep.mubr.bf16.mxu0 %v418
        %1476 = vmatmul.mubr.bf16.gmra.mxu0 %v417
        %v1477 = vpop.f32.mrf.mxu0
        %v1478 = vadd.f32 0.0, %v1477
        %v1479 = vpop.f32.mrf.mxu0
        %v1480 = vadd.f32 0.0, %v1479
        %v1481 = vpop.f32.mrf.mxu0
        %v1482 = vadd.f32 0.0, %v1481
        %v1483 = vpop.f32.mrf.mxu0
        %v1484 = vadd.f32 0.0, %v1483
        %1485 = vmatprep.mubr.bf16.mxu0 %v422
        %1486 = vmatmul.mubr.bf16.gmra.mxu0 %v421
        %v1487 = vpop.f32.mrf.mxu0
        %v1488 = vadd.f32 0.0, %v1487
        %v1489 = vpop.f32.mrf.mxu0
        %v1490 = vadd.f32 0.0, %v1489
        %v1491 = vpop.f32.mrf.mxu0
        %v1492 = vadd.f32 0.0, %v1491
        %v1493 = vpop.f32.mrf.mxu0
        %v1494 = vadd.f32 0.0, %v1493
        %1495 = vmatprep.mubr.bf16.mxu0 %v426
        %1496 = vmatmul.mubr.bf16.gmra.mxu0 %v425
        %v1497 = vpop.f32.mrf.mxu0
        %v1498 = vadd.f32 0.0, %v1497
        %v1499 = vpop.f32.mrf.mxu0
        %v1500 = vadd.f32 0.0, %v1499
        %v1501 = vpop.f32.mrf.mxu0
        %v1502 = vadd.f32 0.0, %v1501
        %v1503 = vpop.f32.mrf.mxu0
        %v1504 = vadd.f32 0.0, %v1503
        %1505 = vmatprep.mubr.bf16.mxu0 %v430
        %1506 = vmatmul.mubr.bf16.gmra.mxu0 %v429
        %v1507 = vpop.f32.mrf.mxu0
        %v1508 = vadd.f32 0.0, %v1507
        %v1509 = vpop.f32.mrf.mxu0
        %v1510 = vadd.f32 0.0, %v1509
        %v1511 = vpop.f32.mrf.mxu0
        %v1512 = vadd.f32 0.0, %v1511
        %v1513 = vpop.f32.mrf.mxu0
        %v1514 = vadd.f32 0.0, %v1513
        %1515 = vmatprep.mubr.bf16.mxu0 %v434
        %1516 = vmatmul.mubr.bf16.gmra.mxu0 %v433
        %v1517 = vpop.f32.mrf.mxu0
        %v1518 = vadd.f32 0.0, %v1517
        %v1519 = vpop.f32.mrf.mxu0
        %v1520 = vadd.f32 0.0, %v1519
        %v1521 = vpop.f32.mrf.mxu0
        %v1522 = vadd.f32 0.0, %v1521
        %v1523 = vpop.f32.mrf.mxu0
        %v1524 = vadd.f32 0.0, %v1523
        %1525 = vmatprep.mubr.bf16.mxu0 %v438
        %1526 = vmatmul.mubr.bf16.gmra.mxu0 %v437
        %v1527 = vpop.f32.mrf.mxu0
        %v1528 = vadd.f32 0.0, %v1527
        %v1529 = vpop.f32.mrf.mxu0
        %v1530 = vadd.f32 0.0, %v1529
        %v1531 = vpop.f32.mrf.mxu0
        %v1532 = vadd.f32 0.0, %v1531
        %v1533 = vpop.f32.mrf.mxu0
        %v1534 = vadd.f32 0.0, %v1533
        %1535 = vmatprep.mubr.bf16.mxu0 %v442
        %1536 = vmatmul.mubr.bf16.gmra.mxu0 %v441
        %v1537 = vpop.f32.mrf.mxu0
        %v1538 = vadd.f32 0.0, %v1537
        %v1539 = vpop.f32.mrf.mxu0
        %v1540 = vadd.f32 0.0, %v1539
        %v1541 = vpop.f32.mrf.mxu0
        %v1542 = vadd.f32 0.0, %v1541
        %v1543 = vpop.f32.mrf.mxu0
        %v1544 = vadd.f32 0.0, %v1543
        %1545 = vmatprep.mubr.bf16.mxu0 %v446
        %1546 = vmatmul.mubr.bf16.gmra.mxu0 %v445
        %v1547 = vpop.f32.mrf.mxu0
        %v1548 = vadd.f32 0.0, %v1547
        %v1549 = vpop.f32.mrf.mxu0
        %v1550 = vadd.f32 0.0, %v1549
        %v1551 = vpop.f32.mrf.mxu0
        %v1552 = vadd.f32 0.0, %v1551
        %v1553 = vpop.f32.mrf.mxu0
        %v1554 = vadd.f32 0.0, %v1553
        %1555 = vdwg.mxu0
        %1556 = vmatprep.subr.bf16.mxu0 %v1056
        %1557 = vmatpush1.bf16.msra.mxu0 %v1055
        %1558 = vmatprep.subr.bf16.mxu0 %v1052
        %1559 = vmatpush1.bf16.msra.mxu0 %v1051
        %1560 = vmatprep.subr.bf16.mxu0 %v1048
        %1561 = vmatpush1.bf16.msra.mxu0 %v1047
        %1562 = vmatprep.subr.bf16.mxu0 %v1044
        %1563 = vmatpush1.bf16.msra.mxu0 %v1043
        %1564 = vmatprep.subr.bf16.mxu0 %v1040
        %1565 = vmatpush1.bf16.msra.mxu0 %v1039
        %1566 = vmatprep.subr.bf16.mxu0 %v1036
        %1567 = vmatpush1.bf16.msra.mxu0 %v1035
        %1568 = vmatprep.subr.bf16.mxu0 %v1032
        %1569 = vmatpush1.bf16.msra.mxu0 %v1031
        %1570 = vmatprep.subr.bf16.mxu0 %v1028
        %1571 = vmatpush1.bf16.msra.mxu0 %v1027
        %1572 = vmatprep.subr.bf16.mxu0 %v1088
        %1573 = vmatpush2.bf16.msra.mxu0 %v1087
        %1574 = vmatprep.subr.bf16.mxu0 %v1084
        %1575 = vmatpush2.bf16.msra.mxu0 %v1083
        %1576 = vmatprep.subr.bf16.mxu0 %v1080
        %1577 = vmatpush2.bf16.msra.mxu0 %v1079
        %1578 = vmatprep.subr.bf16.mxu0 %v1076
        %1579 = vmatpush2.bf16.msra.mxu0 %v1075
        %1580 = vmatprep.subr.bf16.mxu0 %v1072
        %1581 = vmatpush2.bf16.msra.mxu0 %v1071
        %1582 = vmatprep.subr.bf16.mxu0 %v1068
        %1583 = vmatpush2.bf16.msra.mxu0 %v1067
        %1584 = vmatprep.subr.bf16.mxu0 %v1064
        %1585 = vmatpush2.bf16.msra.mxu0 %v1063
        %1586 = vmatprep.subr.bf16.mxu0 %v1060
        %1587 = vmatpush2.bf16.msra.mxu0 %v1059
        %1588 = vmatprep.mubr.bf16.mxu0 %v420
        %1589 = vmatmul.mubr.bf16.gmra.mxu0 %v419
        %v1590 = vpop.f32.mrf.mxu0
        %v1591 = vadd.f32 %v1478, %v1590
        %v1592 = vpop.f32.mrf.mxu0
        %v1593 = vadd.f32 %v1480, %v1592
        %v1594 = vpop.f32.mrf.mxu0
        %v1595 = vadd.f32 %v1482, %v1594
        %v1596 = vpop.f32.mrf.mxu0
        %v1597 = vadd.f32 %v1484, %v1596
        %1598 = vmatprep.mubr.bf16.mxu0 %v424
        %1599 = vmatmul.mubr.bf16.gmra.mxu0 %v423
        %v1600 = vpop.f32.mrf.mxu0
        %v1601 = vadd.f32 %v1488, %v1600
        %v1602 = vpop.f32.mrf.mxu0
        %v1603 = vadd.f32 %v1490, %v1602
        %v1604 = vpop.f32.mrf.mxu0
        %v1605 = vadd.f32 %v1492, %v1604
        %v1606 = vpop.f32.mrf.mxu0
        %v1607 = vadd.f32 %v1494, %v1606
        %1608 = vmatprep.mubr.bf16.mxu0 %v428
        %1609 = vmatmul.mubr.bf16.gmra.mxu0 %v427
        %v1610 = vpop.f32.mrf.mxu0
        %v1611 = vadd.f32 %v1498, %v1610
        %v1612 = vpop.f32.mrf.mxu0
        %v1613 = vadd.f32 %v1500, %v1612
        %v1614 = vpop.f32.mrf.mxu0
        %v1615 = vadd.f32 %v1502, %v1614
        %v1616 = vpop.f32.mrf.mxu0
        %v1617 = vadd.f32 %v1504, %v1616
        %1618 = vmatprep.mubr.bf16.mxu0 %v432
        %1619 = vmatmul.mubr.bf16.gmra.mxu0 %v431
        %v1620 = vpop.f32.mrf.mxu0
        %v1621 = vadd.f32 %v1508, %v1620
        %v1622 = vpop.f32.mrf.mxu0
        %v1623 = vadd.f32 %v1510, %v1622
        %v1624 = vpop.f32.mrf.mxu0
        %v1625 = vadd.f32 %v1512, %v1624
        %v1626 = vpop.f32.mrf.mxu0
        %v1627 = vadd.f32 %v1514, %v1626
        %1628 = vmatprep.mubr.bf16.mxu0 %v436
        %1629 = vmatmul.mubr.bf16.gmra.mxu0 %v435
        %v1630 = vpop.f32.mrf.mxu0
        %v1631 = vadd.f32 %v1518, %v1630
        %v1632 = vpop.f32.mrf.mxu0
        %v1633 = vadd.f32 %v1520, %v1632
        %v1634 = vpop.f32.mrf.mxu0
        %v1635 = vadd.f32 %v1522, %v1634
        %v1636 = vpop.f32.mrf.mxu0
        %v1637 = vadd.f32 %v1524, %v1636
        %1638 = vmatprep.mubr.bf16.mxu0 %v440
        %1639 = vmatmul.mubr.bf16.gmra.mxu0 %v439
        %v1640 = vpop.f32.mrf.mxu0
        %v1641 = vadd.f32 %v1528, %v1640
        %v1642 = vpop.f32.mrf.mxu0
        %v1643 = vadd.f32 %v1530, %v1642
        %v1644 = vpop.f32.mrf.mxu0
        %v1645 = vadd.f32 %v1532, %v1644
        %v1646 = vpop.f32.mrf.mxu0
        %v1647 = vadd.f32 %v1534, %v1646
        %1648 = vmatprep.mubr.bf16.mxu0 %v444
        %1649 = vmatmul.mubr.bf16.gmra.mxu0 %v443
        %v1650 = vpop.f32.mrf.mxu0
        %v1651 = vadd.f32 %v1538, %v1650
        %v1652 = vpop.f32.mrf.mxu0
        %v1653 = vadd.f32 %v1540, %v1652
        %v1654 = vpop.f32.mrf.mxu0
        %v1655 = vadd.f32 %v1542, %v1654
        %v1656 = vpop.f32.mrf.mxu0
        %v1657 = vadd.f32 %v1544, %v1656
        %1658 = vmatprep.mubr.bf16.mxu0 %v448
        %1659 = vmatmul.mubr.bf16.gmra.mxu0 %v447
        %v1660 = vpop.f32.mrf.mxu0
        %v1661 = vadd.f32 %v1548, %v1660
        %v1662 = vpop.f32.mrf.mxu0
        %v1663 = vadd.f32 %v1550, %v1662
        %v1664 = vpop.f32.mrf.mxu0
        %v1665 = vadd.f32 %v1552, %v1664
        %v1666 = vpop.f32.mrf.mxu0
        %v1667 = vadd.f32 %v1554, %v1666
        %1668 = vdwg.mxu0
        %v1669 = vld [vmem:[%s304] sm:$0xff]
        %v1670 = vld [vmem:[%s304 + $0x8] sm:$0xff]
        %v1671 = vld [vmem:[%s304 + $0x10] sm:$0xff]
        %v1672 = vld [vmem:[%s304 + $0x18] sm:$0xff]
        %v1673 = vld [vmem:[%s304 + $0x20] sm:$0xff]
        %v1674 = vld [vmem:[%s304 + $0x28] sm:$0xff]
        %v1675 = vld [vmem:[%s304 + $0x30] sm:$0xff]
        %v1676 = vld [vmem:[%s304 + $0x38] sm:$0xff]
        %v1677 = vld [vmem:[%s304 + $0x40] sm:$0xff]
        %v1678 = vld [vmem:[%s304 + $0x48] sm:$0xff]
        %v1679 = vld [vmem:[%s304 + $0x50] sm:$0xff]
        %v1680 = vld [vmem:[%s304 + $0x58] sm:$0xff]
        %v1681 = vld [vmem:[%s304 + $0x60] sm:$0xff]
        %v1682 = vld [vmem:[%s304 + $0x68] sm:$0xff]
        %v1683 = vld [vmem:[%s304 + $0x70] sm:$0xff]
        %v1684 = vld [vmem:[%s304 + $0x78] sm:$0xff]
        %v1685 = vld [vmem:[%s304 + $0x80] sm:$0xff]
        %v1686 = vld [vmem:[%s304 + $0x88] sm:$0xff]
        %v1687 = vld [vmem:[%s304 + $0x90] sm:$0xff]
        %v1688 = vld [vmem:[%s304 + $0x98] sm:$0xff]
        %v1689 = vld [vmem:[%s304 + $0xa0] sm:$0xff]
        %v1690 = vld [vmem:[%s304 + $0xa8] sm:$0xff]
        %v1691 = vld [vmem:[%s304 + $0xb0] sm:$0xff]
        %v1692 = vld [vmem:[%s304 + $0xb8] sm:$0xff]
        %v1693 = vld [vmem:[%s304 + $0xc0] sm:$0xff]
        %v1694 = vld [vmem:[%s304 + $0xc8] sm:$0xff]
        %v1695 = vld [vmem:[%s304 + $0xd0] sm:$0xff]
        %v1696 = vld [vmem:[%s304 + $0xd8] sm:$0xff]
        %v1697 = vld [vmem:[%s304 + $0xe0] sm:$0xff]
        %v1698 = vld [vmem:[%s304 + $0xe8] sm:$0xff]
        %v1699 = vld [vmem:[%s304 + $0xf0] sm:$0xff]
        %v1700 = vld [vmem:[%s304 + $0xf8] sm:$0xff]
        %v1701 = vld [vmem:[%s304 + $0x100] sm:$0xff]
        %v1702 = vld [vmem:[%s304 + $0x108] sm:$0xff]
        %v1703 = vld [vmem:[%s304 + $0x110] sm:$0xff]
        %v1704 = vld [vmem:[%s304 + $0x118] sm:$0xff]
        %v1705 = vld [vmem:[%s304 + $0x120] sm:$0xff]
        %v1706 = vld [vmem:[%s304 + $0x128] sm:$0xff]
        %v1707 = vld [vmem:[%s304 + $0x130] sm:$0xff]
        %v1708 = vld [vmem:[%s304 + $0x138] sm:$0xff]
        %v1709 = vld [vmem:[%s304 + $0x140] sm:$0xff]
        %v1710 = vld [vmem:[%s304 + $0x148] sm:$0xff]
        %v1711 = vld [vmem:[%s304 + $0x150] sm:$0xff]
        %v1712 = vld [vmem:[%s304 + $0x158] sm:$0xff]
        %v1713 = vld [vmem:[%s304 + $0x160] sm:$0xff]
        %v1714 = vld [vmem:[%s304 + $0x168] sm:$0xff]
        %v1715 = vld [vmem:[%s304 + $0x170] sm:$0xff]
        %v1716 = vld [vmem:[%s304 + $0x178] sm:$0xff]
        %v1717 = vld [vmem:[%s304 + $0x180] sm:$0xff]
        %v1718 = vld [vmem:[%s304 + $0x188] sm:$0xff]
        %v1719 = vld [vmem:[%s304 + $0x190] sm:$0xff]
        %v1720 = vld [vmem:[%s304 + $0x198] sm:$0xff]
        %v1721 = vld [vmem:[%s304 + $0x1a0] sm:$0xff]
        %v1722 = vld [vmem:[%s304 + $0x1a8] sm:$0xff]
        %v1723 = vld [vmem:[%s304 + $0x1b0] sm:$0xff]
        %v1724 = vld [vmem:[%s304 + $0x1b8] sm:$0xff]
        %v1725 = vld [vmem:[%s304 + $0x1c0] sm:$0xff]
        %v1726 = vld [vmem:[%s304 + $0x1c8] sm:$0xff]
        %v1727 = vld [vmem:[%s304 + $0x1d0] sm:$0xff]
        %v1728 = vld [vmem:[%s304 + $0x1d8] sm:$0xff]
        %v1729 = vld [vmem:[%s304 + $0x1e0] sm:$0xff]
        %v1730 = vld [vmem:[%s304 + $0x1e8] sm:$0xff]
        %v1731 = vld [vmem:[%s304 + $0x1f0] sm:$0xff]
        %v1732 = vld [vmem:[%s304 + $0x1f8] sm:$0xff]
        %v1733 = vpack.c.bf16 %v1673, %v1669
        %v1734 = vpack.c.bf16 %v1674, %v1670
        %v1735 = vpack.c.bf16 %v1675, %v1671
        %v1736 = vpack.c.bf16 %v1676, %v1672
        %v1737 = vpack.c.bf16 %v1681, %v1677
        %v1738 = vpack.c.bf16 %v1682, %v1678
        %v1739 = vpack.c.bf16 %v1683, %v1679
        %v1740 = vpack.c.bf16 %v1684, %v1680
        %v1741 = vpack.c.bf16 %v1689, %v1685
        %v1742 = vpack.c.bf16 %v1690, %v1686
        %v1743 = vpack.c.bf16 %v1691, %v1687
        %v1744 = vpack.c.bf16 %v1692, %v1688
        %v1745 = vpack.c.bf16 %v1697, %v1693
        %v1746 = vpack.c.bf16 %v1698, %v1694
        %v1747 = vpack.c.bf16 %v1699, %v1695
        %v1748 = vpack.c.bf16 %v1700, %v1696
        %v1749 = vpack.c.bf16 %v1705, %v1701
        %v1750 = vpack.c.bf16 %v1706, %v1702
        %v1751 = vpack.c.bf16 %v1707, %v1703
        %v1752 = vpack.c.bf16 %v1708, %v1704
        %v1753 = vpack.c.bf16 %v1713, %v1709
        %v1754 = vpack.c.bf16 %v1714, %v1710
        %v1755 = vpack.c.bf16 %v1715, %v1711
        %v1756 = vpack.c.bf16 %v1716, %v1712
        %v1757 = vpack.c.bf16 %v1721, %v1717
        %v1758 = vpack.c.bf16 %v1722, %v1718
        %v1759 = vpack.c.bf16 %v1723, %v1719
        %v1760 = vpack.c.bf16 %v1724, %v1720
        %v1761 = vpack.c.bf16 %v1729, %v1725
        %v1762 = vpack.c.bf16 %v1730, %v1726
        %v1763 = vpack.c.bf16 %v1731, %v1727
        %v1764 = vpack.c.bf16 %v1732, %v1728
        %v1765 = vld [vmem:[#allocation8] sm:$0xff]
        %v1766 = vld [vmem:[#allocation8 + $0x8] sm:$0xff]
        %v1767 = vld [vmem:[#allocation8 + $0x10] sm:$0xff]
        %v1768 = vld [vmem:[#allocation8 + $0x18] sm:$0xff]
        %v1769 = vld [vmem:[#allocation8 + $0x20] sm:$0xff]
        %v1770 = vld [vmem:[#allocation8 + $0x28] sm:$0xff]
        %v1771 = vld [vmem:[#allocation8 + $0x30] sm:$0xff]
        %v1772 = vld [vmem:[#allocation8 + $0x38] sm:$0xff]
        %v1773 = vld [vmem:[#allocation8 + $0x40] sm:$0xff]
        %v1774 = vld [vmem:[#allocation8 + $0x48] sm:$0xff]
        %v1775 = vld [vmem:[#allocation8 + $0x50] sm:$0xff]
        %v1776 = vld [vmem:[#allocation8 + $0x58] sm:$0xff]
        %v1777 = vld [vmem:[#allocation8 + $0x60] sm:$0xff]
        %v1778 = vld [vmem:[#allocation8 + $0x68] sm:$0xff]
        %v1779 = vld [vmem:[#allocation8 + $0x70] sm:$0xff]
        %v1780 = vld [vmem:[#allocation8 + $0x78] sm:$0xff]
        %v1781 = vld [vmem:[#allocation8 + $0x80] sm:$0xff]
        %v1782 = vld [vmem:[#allocation8 + $0x88] sm:$0xff]
        %v1783 = vld [vmem:[#allocation8 + $0x90] sm:$0xff]
        %v1784 = vld [vmem:[#allocation8 + $0x98] sm:$0xff]
        %v1785 = vld [vmem:[#allocation8 + $0xa0] sm:$0xff]
        %v1786 = vld [vmem:[#allocation8 + $0xa8] sm:$0xff]
        %v1787 = vld [vmem:[#allocation8 + $0xb0] sm:$0xff]
        %v1788 = vld [vmem:[#allocation8 + $0xb8] sm:$0xff]
        %v1789 = vld [vmem:[#allocation8 + $0xc0] sm:$0xff]
        %v1790 = vld [vmem:[#allocation8 + $0xc8] sm:$0xff]
        %v1791 = vld [vmem:[#allocation8 + $0xd0] sm:$0xff]
        %v1792 = vld [vmem:[#allocation8 + $0xd8] sm:$0xff]
        %v1793 = vld [vmem:[#allocation8 + $0xe0] sm:$0xff]
        %v1794 = vld [vmem:[#allocation8 + $0xe8] sm:$0xff]
        %v1795 = vld [vmem:[#allocation8 + $0xf0] sm:$0xff]
        %v1796 = vld [vmem:[#allocation8 + $0xf8] sm:$0xff]
        %v1797 = vld [vmem:[#allocation8 + $0x100] sm:$0xff]
        %v1798 = vld [vmem:[#allocation8 + $0x108] sm:$0xff]
        %v1799 = vld [vmem:[#allocation8 + $0x110] sm:$0xff]
        %v1800 = vld [vmem:[#allocation8 + $0x118] sm:$0xff]
        %v1801 = vld [vmem:[#allocation8 + $0x120] sm:$0xff]
        %v1802 = vld [vmem:[#allocation8 + $0x128] sm:$0xff]
        %v1803 = vld [vmem:[#allocation8 + $0x130] sm:$0xff]
        %v1804 = vld [vmem:[#allocation8 + $0x138] sm:$0xff]
        %v1805 = vld [vmem:[#allocation8 + $0x140] sm:$0xff]
        %v1806 = vld [vmem:[#allocation8 + $0x148] sm:$0xff]
        %v1807 = vld [vmem:[#allocation8 + $0x150] sm:$0xff]
        %v1808 = vld [vmem:[#allocation8 + $0x158] sm:$0xff]
        %v1809 = vld [vmem:[#allocation8 + $0x160] sm:$0xff]
        %v1810 = vld [vmem:[#allocation8 + $0x168] sm:$0xff]
        %v1811 = vld [vmem:[#allocation8 + $0x170] sm:$0xff]
        %v1812 = vld [vmem:[#allocation8 + $0x178] sm:$0xff]
        %v1813 = vld [vmem:[#allocation8 + $0x180] sm:$0xff]
        %v1814 = vld [vmem:[#allocation8 + $0x188] sm:$0xff]
        %v1815 = vld [vmem:[#allocation8 + $0x190] sm:$0xff]
        %v1816 = vld [vmem:[#allocation8 + $0x198] sm:$0xff]
        %v1817 = vld [vmem:[#allocation8 + $0x1a0] sm:$0xff]
        %v1818 = vld [vmem:[#allocation8 + $0x1a8] sm:$0xff]
        %v1819 = vld [vmem:[#allocation8 + $0x1b0] sm:$0xff]
        %v1820 = vld [vmem:[#allocation8 + $0x1b8] sm:$0xff]
        %v1821 = vld [vmem:[#allocation8 + $0x1c0] sm:$0xff]
        %v1822 = vld [vmem:[#allocation8 + $0x1c8] sm:$0xff]
        %v1823 = vld [vmem:[#allocation8 + $0x1d0] sm:$0xff]
        %v1824 = vld [vmem:[#allocation8 + $0x1d8] sm:$0xff]
        %v1825 = vld [vmem:[#allocation8 + $0x1e0] sm:$0xff]
        %v1826 = vld [vmem:[#allocation8 + $0x1e8] sm:$0xff]
        %v1827 = vld [vmem:[#allocation8 + $0x1f0] sm:$0xff]
        %v1828 = vld [vmem:[#allocation8 + $0x1f8] sm:$0xff]
        %v1829 = vld [vmem:[#allocation8 + $0x200] sm:$0xff]
        %v1830 = vld [vmem:[#allocation8 + $0x208] sm:$0xff]
        %v1831 = vld [vmem:[#allocation8 + $0x210] sm:$0xff]
        %v1832 = vld [vmem:[#allocation8 + $0x218] sm:$0xff]
        %v1833 = vld [vmem:[#allocation8 + $0x220] sm:$0xff]
        %v1834 = vld [vmem:[#allocation8 + $0x228] sm:$0xff]
        %v1835 = vld [vmem:[#allocation8 + $0x230] sm:$0xff]
        %v1836 = vld [vmem:[#allocation8 + $0x238] sm:$0xff]
        %v1837 = vld [vmem:[#allocation8 + $0x240] sm:$0xff]
        %v1838 = vld [vmem:[#allocation8 + $0x248] sm:$0xff]
        %v1839 = vld [vmem:[#allocation8 + $0x250] sm:$0xff]
        %v1840 = vld [vmem:[#allocation8 + $0x258] sm:$0xff]
        %v1841 = vld [vmem:[#allocation8 + $0x260] sm:$0xff]
        %v1842 = vld [vmem:[#allocation8 + $0x268] sm:$0xff]
        %v1843 = vld [vmem:[#allocation8 + $0x270] sm:$0xff]
        %v1844 = vld [vmem:[#allocation8 + $0x278] sm:$0xff]
        %v1845 = vld [vmem:[#allocation8 + $0x280] sm:$0xff]
        %v1846 = vld [vmem:[#allocation8 + $0x288] sm:$0xff]
        %v1847 = vld [vmem:[#allocation8 + $0x290] sm:$0xff]
        %v1848 = vld [vmem:[#allocation8 + $0x298] sm:$0xff]
        %v1849 = vld [vmem:[#allocation8 + $0x2a0] sm:$0xff]
        %v1850 = vld [vmem:[#allocation8 + $0x2a8] sm:$0xff]
        %v1851 = vld [vmem:[#allocation8 + $0x2b0] sm:$0xff]
        %v1852 = vld [vmem:[#allocation8 + $0x2b8] sm:$0xff]
        %v1853 = vld [vmem:[#allocation8 + $0x2c0] sm:$0xff]
        %v1854 = vld [vmem:[#allocation8 + $0x2c8] sm:$0xff]
        %v1855 = vld [vmem:[#allocation8 + $0x2d0] sm:$0xff]
        %v1856 = vld [vmem:[#allocation8 + $0x2d8] sm:$0xff]
        %v1857 = vld [vmem:[#allocation8 + $0x2e0] sm:$0xff]
        %v1858 = vld [vmem:[#allocation8 + $0x2e8] sm:$0xff]
        %v1859 = vld [vmem:[#allocation8 + $0x2f0] sm:$0xff]
        %v1860 = vld [vmem:[#allocation8 + $0x2f8] sm:$0xff]
        %v1861 = vld [vmem:[#allocation8 + $0x300] sm:$0xff]
        %v1862 = vld [vmem:[#allocation8 + $0x308] sm:$0xff]
        %v1863 = vld [vmem:[#allocation8 + $0x310] sm:$0xff]
        %v1864 = vld [vmem:[#allocation8 + $0x318] sm:$0xff]
        %v1865 = vld [vmem:[#allocation8 + $0x320] sm:$0xff]
        %v1866 = vld [vmem:[#allocation8 + $0x328] sm:$0xff]
        %v1867 = vld [vmem:[#allocation8 + $0x330] sm:$0xff]
        %v1868 = vld [vmem:[#allocation8 + $0x338] sm:$0xff]
        %v1869 = vld [vmem:[#allocation8 + $0x340] sm:$0xff]
        %v1870 = vld [vmem:[#allocation8 + $0x348] sm:$0xff]
        %v1871 = vld [vmem:[#allocation8 + $0x350] sm:$0xff]
        %v1872 = vld [vmem:[#allocation8 + $0x358] sm:$0xff]
        %v1873 = vld [vmem:[#allocation8 + $0x360] sm:$0xff]
        %v1874 = vld [vmem:[#allocation8 + $0x368] sm:$0xff]
        %v1875 = vld [vmem:[#allocation8 + $0x370] sm:$0xff]
        %v1876 = vld [vmem:[#allocation8 + $0x378] sm:$0xff]
        %v1877 = vld [vmem:[#allocation8 + $0x380] sm:$0xff]
        %v1878 = vld [vmem:[#allocation8 + $0x388] sm:$0xff]
        %v1879 = vld [vmem:[#allocation8 + $0x390] sm:$0xff]
        %v1880 = vld [vmem:[#allocation8 + $0x398] sm:$0xff]
        %v1881 = vld [vmem:[#allocation8 + $0x3a0] sm:$0xff]
        %v1882 = vld [vmem:[#allocation8 + $0x3a8] sm:$0xff]
        %v1883 = vld [vmem:[#allocation8 + $0x3b0] sm:$0xff]
        %v1884 = vld [vmem:[#allocation8 + $0x3b8] sm:$0xff]
        %v1885 = vld [vmem:[#allocation8 + $0x3c0] sm:$0xff]
        %v1886 = vld [vmem:[#allocation8 + $0x3c8] sm:$0xff]
        %v1887 = vld [vmem:[#allocation8 + $0x3d0] sm:$0xff]
        %v1888 = vld [vmem:[#allocation8 + $0x3d8] sm:$0xff]
        %v1889 = vld [vmem:[#allocation8 + $0x3e0] sm:$0xff]
        %v1890 = vld [vmem:[#allocation8 + $0x3e8] sm:$0xff]
        %v1891 = vld [vmem:[#allocation8 + $0x3f0] sm:$0xff]
        %v1892 = vld [vmem:[#allocation8 + $0x3f8] sm:$0xff]
        %v2021 = vunpack.c.l.b16 %v1765
        %v2022 = vunpack.c.h.b16 %v1765
        %v2023 = vunpack.c.l.b16 %v1766
        %v2024 = vunpack.c.h.b16 %v1766
        %v2025 = vunpack.c.l.b16 %v1767
        %v2026 = vunpack.c.h.b16 %v1767
        %v2027 = vunpack.c.l.b16 %v1768
        %v2028 = vunpack.c.h.b16 %v1768
        %v2029 = vunpack.c.l.b16 %v1769
        %v2030 = vunpack.c.h.b16 %v1769
        %v2031 = vunpack.c.l.b16 %v1770
        %v2032 = vunpack.c.h.b16 %v1770
        %v2033 = vunpack.c.l.b16 %v1771
        %v2034 = vunpack.c.h.b16 %v1771
        %v2035 = vunpack.c.l.b16 %v1772
        %v2036 = vunpack.c.h.b16 %v1772
        %v2037 = vunpack.c.l.b16 %v1773
        %v2038 = vunpack.c.h.b16 %v1773
        %v2039 = vunpack.c.l.b16 %v1774
        %v2040 = vunpack.c.h.b16 %v1774
        %v2041 = vunpack.c.l.b16 %v1775
        %v2042 = vunpack.c.h.b16 %v1775
        %v2043 = vunpack.c.l.b16 %v1776
        %v2044 = vunpack.c.h.b16 %v1776
        %v2045 = vunpack.c.l.b16 %v1777
        %v2046 = vunpack.c.h.b16 %v1777
        %v2047 = vunpack.c.l.b16 %v1778
        %v2048 = vunpack.c.h.b16 %v1778
        %v2049 = vunpack.c.l.b16 %v1779
        %v2050 = vunpack.c.h.b16 %v1779
        %v2051 = vunpack.c.l.b16 %v1780
        %v2052 = vunpack.c.h.b16 %v1780
        %v2053 = vunpack.c.l.b16 %v1781
        %v2054 = vunpack.c.h.b16 %v1781
        %v2055 = vunpack.c.l.b16 %v1782
        %v2056 = vunpack.c.h.b16 %v1782
        %v2057 = vunpack.c.l.b16 %v1783
        %v2058 = vunpack.c.h.b16 %v1783
        %v2059 = vunpack.c.l.b16 %v1784
        %v2060 = vunpack.c.h.b16 %v1784
        %v2061 = vunpack.c.l.b16 %v1785
        %v2062 = vunpack.c.h.b16 %v1785
        %v2063 = vunpack.c.l.b16 %v1786
        %v2064 = vunpack.c.h.b16 %v1786
        %v2065 = vunpack.c.l.b16 %v1787
        %v2066 = vunpack.c.h.b16 %v1787
        %v2067 = vunpack.c.l.b16 %v1788
        %v2068 = vunpack.c.h.b16 %v1788
        %v2069 = vunpack.c.l.b16 %v1789
        %v2070 = vunpack.c.h.b16 %v1789
        %v2071 = vunpack.c.l.b16 %v1790
        %v2072 = vunpack.c.h.b16 %v1790
        %v2073 = vunpack.c.l.b16 %v1791
        %v2074 = vunpack.c.h.b16 %v1791
        %v2075 = vunpack.c.l.b16 %v1792
        %v2076 = vunpack.c.h.b16 %v1792
        %v2077 = vunpack.c.l.b16 %v1793
        %v2078 = vunpack.c.h.b16 %v1793
        %v2079 = vunpack.c.l.b16 %v1794
        %v2080 = vunpack.c.h.b16 %v1794
        %v2081 = vunpack.c.l.b16 %v1795
        %v2082 = vunpack.c.h.b16 %v1795
        %v2083 = vunpack.c.l.b16 %v1796
        %v2084 = vunpack.c.h.b16 %v1796
        %v2085 = vunpack.c.l.b16 %v1797
        %v2086 = vunpack.c.h.b16 %v1797
        %v2087 = vunpack.c.l.b16 %v1798
        %v2088 = vunpack.c.h.b16 %v1798
        %v2089 = vunpack.c.l.b16 %v1799
        %v2090 = vunpack.c.h.b16 %v1799
        %v2091 = vunpack.c.l.b16 %v1800
        %v2092 = vunpack.c.h.b16 %v1800
        %v2093 = vunpack.c.l.b16 %v1801
        %v2094 = vunpack.c.h.b16 %v1801
        %v2095 = vunpack.c.l.b16 %v1802
        %v2096 = vunpack.c.h.b16 %v1802
        %v2097 = vunpack.c.l.b16 %v1803
        %v2098 = vunpack.c.h.b16 %v1803
        %v2099 = vunpack.c.l.b16 %v1804
        %v2100 = vunpack.c.h.b16 %v1804
        %v2101 = vunpack.c.l.b16 %v1805
        %v2102 = vunpack.c.h.b16 %v1805
        %v2103 = vunpack.c.l.b16 %v1806
        %v2104 = vunpack.c.h.b16 %v1806
        %v2105 = vunpack.c.l.b16 %v1807
        %v2106 = vunpack.c.h.b16 %v1807
        %v2107 = vunpack.c.l.b16 %v1808
        %v2108 = vunpack.c.h.b16 %v1808
        %v2109 = vunpack.c.l.b16 %v1809
        %v2110 = vunpack.c.h.b16 %v1809
        %v2111 = vunpack.c.l.b16 %v1810
        %v2112 = vunpack.c.h.b16 %v1810
        %v2113 = vunpack.c.l.b16 %v1811
        %v2114 = vunpack.c.h.b16 %v1811
        %v2115 = vunpack.c.l.b16 %v1812
        %v2116 = vunpack.c.h.b16 %v1812
        %v2117 = vunpack.c.l.b16 %v1813
        %v2118 = vunpack.c.h.b16 %v1813
        %v2119 = vunpack.c.l.b16 %v1814
        %v2120 = vunpack.c.h.b16 %v1814
        %v2121 = vunpack.c.l.b16 %v1815
        %v2122 = vunpack.c.h.b16 %v1815
        %v2123 = vunpack.c.l.b16 %v1816
        %v2124 = vunpack.c.h.b16 %v1816
        %v2125 = vunpack.c.l.b16 %v1817
        %v2126 = vunpack.c.h.b16 %v1817
        %v2127 = vunpack.c.l.b16 %v1818
        %v2128 = vunpack.c.h.b16 %v1818
        %v2129 = vunpack.c.l.b16 %v1819
        %v2130 = vunpack.c.h.b16 %v1819
        %v2131 = vunpack.c.l.b16 %v1820
        %v2132 = vunpack.c.h.b16 %v1820
        %v2133 = vunpack.c.l.b16 %v1821
        %v2134 = vunpack.c.h.b16 %v1821
        %v2135 = vunpack.c.l.b16 %v1822
        %v2136 = vunpack.c.h.b16 %v1822
        %v2137 = vunpack.c.l.b16 %v1823
        %v2138 = vunpack.c.h.b16 %v1823
        %v2139 = vunpack.c.l.b16 %v1824
        %v2140 = vunpack.c.h.b16 %v1824
        %v2141 = vunpack.c.l.b16 %v1825
        %v2142 = vunpack.c.h.b16 %v1825
        %v2143 = vunpack.c.l.b16 %v1826
        %v2144 = vunpack.c.h.b16 %v1826
        %v2145 = vunpack.c.l.b16 %v1827
        %v2146 = vunpack.c.h.b16 %v1827
        %v2147 = vunpack.c.l.b16 %v1828
        %v2148 = vunpack.c.h.b16 %v1828
        %v2149 = vunpack.c.l.b16 %v1829
        %v2150 = vunpack.c.h.b16 %v1829
        %v2151 = vunpack.c.l.b16 %v1830
        %v2152 = vunpack.c.h.b16 %v1830
        %v2153 = vunpack.c.l.b16 %v1831
        %v2154 = vunpack.c.h.b16 %v1831
        %v2155 = vunpack.c.l.b16 %v1832
        %v2156 = vunpack.c.h.b16 %v1832
        %v2157 = vunpack.c.l.b16 %v1833
        %v2158 = vunpack.c.h.b16 %v1833
        %v2159 = vunpack.c.l.b16 %v1834
        %v2160 = vunpack.c.h.b16 %v1834
        %v2161 = vunpack.c.l.b16 %v1835
        %v2162 = vunpack.c.h.b16 %v1835
        %v2163 = vunpack.c.l.b16 %v1836
        %v2164 = vunpack.c.h.b16 %v1836
        %v2165 = vunpack.c.l.b16 %v1837
        %v2166 = vunpack.c.h.b16 %v1837
        %v2167 = vunpack.c.l.b16 %v1838
        %v2168 = vunpack.c.h.b16 %v1838
        %v2169 = vunpack.c.l.b16 %v1839
        %v2170 = vunpack.c.h.b16 %v1839
        %v2171 = vunpack.c.l.b16 %v1840
        %v2172 = vunpack.c.h.b16 %v1840
        %v2173 = vunpack.c.l.b16 %v1841
        %v2174 = vunpack.c.h.b16 %v1841
        %v2175 = vunpack.c.l.b16 %v1842
        %v2176 = vunpack.c.h.b16 %v1842
        %v2177 = vunpack.c.l.b16 %v1843
        %v2178 = vunpack.c.h.b16 %v1843
        %v2179 = vunpack.c.l.b16 %v1844
        %v2180 = vunpack.c.h.b16 %v1844
        %v2181 = vunpack.c.l.b16 %v1845
        %v2182 = vunpack.c.h.b16 %v1845
        %v2183 = vunpack.c.l.b16 %v1846
        %v2184 = vunpack.c.h.b16 %v1846
        %v2185 = vunpack.c.l.b16 %v1847
        %v2186 = vunpack.c.h.b16 %v1847
        %v2187 = vunpack.c.l.b16 %v1848
        %v2188 = vunpack.c.h.b16 %v1848
        %v2189 = vunpack.c.l.b16 %v1849
        %v2190 = vunpack.c.h.b16 %v1849
        %v2191 = vunpack.c.l.b16 %v1850
        %v2192 = vunpack.c.h.b16 %v1850
        %v2193 = vunpack.c.l.b16 %v1851
        %v2194 = vunpack.c.h.b16 %v1851
        %v2195 = vunpack.c.l.b16 %v1852
        %v2196 = vunpack.c.h.b16 %v1852
        %v2197 = vunpack.c.l.b16 %v1853
        %v2198 = vunpack.c.h.b16 %v1853
        %v2199 = vunpack.c.l.b16 %v1854
        %v2200 = vunpack.c.h.b16 %v1854
        %v2201 = vunpack.c.l.b16 %v1855
        %v2202 = vunpack.c.h.b16 %v1855
        %v2203 = vunpack.c.l.b16 %v1856
        %v2204 = vunpack.c.h.b16 %v1856
        %v2205 = vunpack.c.l.b16 %v1857
        %v2206 = vunpack.c.h.b16 %v1857
        %v2207 = vunpack.c.l.b16 %v1858
        %v2208 = vunpack.c.h.b16 %v1858
        %v2209 = vunpack.c.l.b16 %v1859
        %v2210 = vunpack.c.h.b16 %v1859
        %v2211 = vunpack.c.l.b16 %v1860
        %v2212 = vunpack.c.h.b16 %v1860
        %v2213 = vunpack.c.l.b16 %v1861
        %v2214 = vunpack.c.h.b16 %v1861
        %v2215 = vunpack.c.l.b16 %v1862
        %v2216 = vunpack.c.h.b16 %v1862
        %v2217 = vunpack.c.l.b16 %v1863
        %v2218 = vunpack.c.h.b16 %v1863
        %v2219 = vunpack.c.l.b16 %v1864
        %v2220 = vunpack.c.h.b16 %v1864
        %v2221 = vunpack.c.l.b16 %v1865
        %v2222 = vunpack.c.h.b16 %v1865
        %v2223 = vunpack.c.l.b16 %v1866
        %v2224 = vunpack.c.h.b16 %v1866
        %v2225 = vunpack.c.l.b16 %v1867
        %v2226 = vunpack.c.h.b16 %v1867
        %v2227 = vunpack.c.l.b16 %v1868
        %v2228 = vunpack.c.h.b16 %v1868
        %v2229 = vunpack.c.l.b16 %v1869
        %v2230 = vunpack.c.h.b16 %v1869
        %v2231 = vunpack.c.l.b16 %v1870
        %v2232 = vunpack.c.h.b16 %v1870
        %v2233 = vunpack.c.l.b16 %v1871
        %v2234 = vunpack.c.h.b16 %v1871
        %v2235 = vunpack.c.l.b16 %v1872
        %v2236 = vunpack.c.h.b16 %v1872
        %v2237 = vunpack.c.l.b16 %v1873
        %v2238 = vunpack.c.h.b16 %v1873
        %v2239 = vunpack.c.l.b16 %v1874
        %v2240 = vunpack.c.h.b16 %v1874
        %v2241 = vunpack.c.l.b16 %v1875
        %v2242 = vunpack.c.h.b16 %v1875
        %v2243 = vunpack.c.l.b16 %v1876
        %v2244 = vunpack.c.h.b16 %v1876
        %v2245 = vunpack.c.l.b16 %v1877
        %v2246 = vunpack.c.h.b16 %v1877
        %v2247 = vunpack.c.l.b16 %v1878
        %v2248 = vunpack.c.h.b16 %v1878
        %v2249 = vunpack.c.l.b16 %v1879
        %v2250 = vunpack.c.h.b16 %v1879
        %v2251 = vunpack.c.l.b16 %v1880
        %v2252 = vunpack.c.h.b16 %v1880
        %v2253 = vunpack.c.l.b16 %v1881
        %v2254 = vunpack.c.h.b16 %v1881
        %v2255 = vunpack.c.l.b16 %v1882
        %v2256 = vunpack.c.h.b16 %v1882
        %v2257 = vunpack.c.l.b16 %v1883
        %v2258 = vunpack.c.h.b16 %v1883
        %v2259 = vunpack.c.l.b16 %v1884
        %v2260 = vunpack.c.h.b16 %v1884
        %v2261 = vunpack.c.l.b16 %v1885
        %v2262 = vunpack.c.h.b16 %v1885
        %v2263 = vunpack.c.l.b16 %v1886
        %v2264 = vunpack.c.h.b16 %v1886
        %v2265 = vunpack.c.l.b16 %v1887
        %v2266 = vunpack.c.h.b16 %v1887
        %v2267 = vunpack.c.l.b16 %v1888
        %v2268 = vunpack.c.h.b16 %v1888
        %v2269 = vunpack.c.l.b16 %v1889
        %v2270 = vunpack.c.h.b16 %v1889
        %v2271 = vunpack.c.l.b16 %v1890
        %v2272 = vunpack.c.h.b16 %v1890
        %v2273 = vunpack.c.l.b16 %v1891
        %v2274 = vunpack.c.h.b16 %v1891
        %v2275 = vunpack.c.l.b16 %v1892
        %v2276 = vunpack.c.h.b16 %v1892
        %v2277 = vpack.c.b16 %v2025, %v2021
        %v2278 = vpack.c.b16 %v2026, %v2022
        %v2279 = vpack.c.b16 %v2027, %v2023
        %v2280 = vpack.c.b16 %v2028, %v2024
        %v2281 = vpack.c.b16 %v2033, %v2029
        %v2282 = vpack.c.b16 %v2034, %v2030
        %v2283 = vpack.c.b16 %v2035, %v2031
        %v2284 = vpack.c.b16 %v2036, %v2032
        %v2285 = vpack.c.b16 %v2041, %v2037
        %v2286 = vpack.c.b16 %v2042, %v2038
        %v2287 = vpack.c.b16 %v2043, %v2039
        %v2288 = vpack.c.b16 %v2044, %v2040
        %v2289 = vpack.c.b16 %v2049, %v2045
        %v2290 = vpack.c.b16 %v2050, %v2046
        %v2291 = vpack.c.b16 %v2051, %v2047
        %v2292 = vpack.c.b16 %v2052, %v2048
        %v2293 = vpack.c.b16 %v2057, %v2053
        %v2294 = vpack.c.b16 %v2058, %v2054
        %v2295 = vpack.c.b16 %v2059, %v2055
        %v2296 = vpack.c.b16 %v2060, %v2056
        %v2297 = vpack.c.b16 %v2065, %v2061
        %v2298 = vpack.c.b16 %v2066, %v2062
        %v2299 = vpack.c.b16 %v2067, %v2063
        %v2300 = vpack.c.b16 %v2068, %v2064
        %v2301 = vpack.c.b16 %v2073, %v2069
        %v2302 = vpack.c.b16 %v2074, %v2070
        %v2303 = vpack.c.b16 %v2075, %v2071
        %v2304 = vpack.c.b16 %v2076, %v2072
        %v2305 = vpack.c.b16 %v2081, %v2077
        %v2306 = vpack.c.b16 %v2082, %v2078
        %v2307 = vpack.c.b16 %v2083, %v2079
        %v2308 = vpack.c.b16 %v2084, %v2080
        %v2309 = vpack.c.b16 %v2089, %v2085
        %v2310 = vpack.c.b16 %v2090, %v2086
        %v2311 = vpack.c.b16 %v2091, %v2087
        %v2312 = vpack.c.b16 %v2092, %v2088
        %v2313 = vpack.c.b16 %v2097, %v2093
        %v2314 = vpack.c.b16 %v2098, %v2094
        %v2315 = vpack.c.b16 %v2099, %v2095
        %v2316 = vpack.c.b16 %v2100, %v2096
        %v2317 = vpack.c.b16 %v2105, %v2101
        %v2318 = vpack.c.b16 %v2106, %v2102
        %v2319 = vpack.c.b16 %v2107, %v2103
        %v2320 = vpack.c.b16 %v2108, %v2104
        %v2321 = vpack.c.b16 %v2113, %v2109
        %v2322 = vpack.c.b16 %v2114, %v2110
        %v2323 = vpack.c.b16 %v2115, %v2111
        %v2324 = vpack.c.b16 %v2116, %v2112
        %v2325 = vpack.c.b16 %v2121, %v2117
        %v2326 = vpack.c.b16 %v2122, %v2118
        %v2327 = vpack.c.b16 %v2123, %v2119
        %v2328 = vpack.c.b16 %v2124, %v2120
        %v2329 = vpack.c.b16 %v2129, %v2125
        %v2330 = vpack.c.b16 %v2130, %v2126
        %v2331 = vpack.c.b16 %v2131, %v2127
        %v2332 = vpack.c.b16 %v2132, %v2128
        %v2333 = vpack.c.b16 %v2137, %v2133
        %v2334 = vpack.c.b16 %v2138, %v2134
        %v2335 = vpack.c.b16 %v2139, %v2135
        %v2336 = vpack.c.b16 %v2140, %v2136
        %v2337 = vpack.c.b16 %v2145, %v2141
        %v2338 = vpack.c.b16 %v2146, %v2142
        %v2339 = vpack.c.b16 %v2147, %v2143
        %v2340 = vpack.c.b16 %v2148, %v2144
        %v2341 = vpack.c.b16 %v2153, %v2149
        %v2342 = vpack.c.b16 %v2154, %v2150
        %v2343 = vpack.c.b16 %v2155, %v2151
        %v2344 = vpack.c.b16 %v2156, %v2152
        %v2345 = vpack.c.b16 %v2161, %v2157
        %v2346 = vpack.c.b16 %v2162, %v2158
        %v2347 = vpack.c.b16 %v2163, %v2159
        %v2348 = vpack.c.b16 %v2164, %v2160
        %v2349 = vpack.c.b16 %v2169, %v2165
        %v2350 = vpack.c.b16 %v2170, %v2166
        %v2351 = vpack.c.b16 %v2171, %v2167
        %v2352 = vpack.c.b16 %v2172, %v2168
        %v2353 = vpack.c.b16 %v2177, %v2173
        %v2354 = vpack.c.b16 %v2178, %v2174
        %v2355 = vpack.c.b16 %v2179, %v2175
        %v2356 = vpack.c.b16 %v2180, %v2176
        %v2357 = vpack.c.b16 %v2185, %v2181
        %v2358 = vpack.c.b16 %v2186, %v2182
        %v2359 = vpack.c.b16 %v2187, %v2183
        %v2360 = vpack.c.b16 %v2188, %v2184
        %v2361 = vpack.c.b16 %v2193, %v2189
        %v2362 = vpack.c.b16 %v2194, %v2190
        %v2363 = vpack.c.b16 %v2195, %v2191
        %v2364 = vpack.c.b16 %v2196, %v2192
        %v2365 = vpack.c.b16 %v2201, %v2197
        %v2366 = vpack.c.b16 %v2202, %v2198
        %v2367 = vpack.c.b16 %v2203, %v2199
        %v2368 = vpack.c.b16 %v2204, %v2200
        %v2369 = vpack.c.b16 %v2209, %v2205
        %v2370 = vpack.c.b16 %v2210, %v2206
        %v2371 = vpack.c.b16 %v2211, %v2207
        %v2372 = vpack.c.b16 %v2212, %v2208
        %v2373 = vpack.c.b16 %v2217, %v2213
        %v2374 = vpack.c.b16 %v2218, %v2214
        %v2375 = vpack.c.b16 %v2219, %v2215
        %v2376 = vpack.c.b16 %v2220, %v2216
        %v2377 = vpack.c.b16 %v2225, %v2221
        %v2378 = vpack.c.b16 %v2226, %v2222
        %v2379 = vpack.c.b16 %v2227, %v2223
        %v2380 = vpack.c.b16 %v2228, %v2224
        %v2381 = vpack.c.b16 %v2233, %v2229
        %v2382 = vpack.c.b16 %v2234, %v2230
        %v2383 = vpack.c.b16 %v2235, %v2231
        %v2384 = vpack.c.b16 %v2236, %v2232
        %v2385 = vpack.c.b16 %v2241, %v2237
        %v2386 = vpack.c.b16 %v2242, %v2238
        %v2387 = vpack.c.b16 %v2243, %v2239
        %v2388 = vpack.c.b16 %v2244, %v2240
        %v2389 = vpack.c.b16 %v2249, %v2245
        %v2390 = vpack.c.b16 %v2250, %v2246
        %v2391 = vpack.c.b16 %v2251, %v2247
        %v2392 = vpack.c.b16 %v2252, %v2248
        %v2393 = vpack.c.b16 %v2257, %v2253
        %v2394 = vpack.c.b16 %v2258, %v2254
        %v2395 = vpack.c.b16 %v2259, %v2255
        %v2396 = vpack.c.b16 %v2260, %v2256
        %v2397 = vpack.c.b16 %v2265, %v2261
        %v2398 = vpack.c.b16 %v2266, %v2262
        %v2399 = vpack.c.b16 %v2267, %v2263
        %v2400 = vpack.c.b16 %v2268, %v2264
        %v2401 = vpack.c.b16 %v2273, %v2269
        %v2402 = vpack.c.b16 %v2274, %v2270
        %v2403 = vpack.c.b16 %v2275, %v2271
        %v2404 = vpack.c.b16 %v2276, %v2272
        %2533 = vmatprep.subr.bf16.mxu0 %v2306
        %2534 = vmatpush1.bf16.msra.mxu0 %v2305
        %2535 = vmatprep.subr.bf16.mxu0 %v2302
        %2536 = vmatpush1.bf16.msra.mxu0 %v2301
        %2537 = vmatprep.subr.bf16.mxu0 %v2298
        %2538 = vmatpush1.bf16.msra.mxu0 %v2297
        %2539 = vmatprep.subr.bf16.mxu0 %v2294
        %2540 = vmatpush1.bf16.msra.mxu0 %v2293
        %2541 = vmatprep.subr.bf16.mxu0 %v2290
        %2542 = vmatpush1.bf16.msra.mxu0 %v2289
        %2543 = vmatprep.subr.bf16.mxu0 %v2286
        %2544 = vmatpush1.bf16.msra.mxu0 %v2285
        %2545 = vmatprep.subr.bf16.mxu0 %v2282
        %2546 = vmatpush1.bf16.msra.mxu0 %v2281
        %2547 = vmatprep.subr.bf16.mxu0 %v2278
        %2548 = vmatpush1.bf16.msra.mxu0 %v2277
        %2549 = vmatprep.subr.bf16.mxu0 %v2338
        %2550 = vmatpush2.bf16.msra.mxu0 %v2337
        %2551 = vmatprep.subr.bf16.mxu0 %v2334
        %2552 = vmatpush2.bf16.msra.mxu0 %v2333
        %2553 = vmatprep.subr.bf16.mxu0 %v2330
        %2554 = vmatpush2.bf16.msra.mxu0 %v2329
        %2555 = vmatprep.subr.bf16.mxu0 %v2326
        %2556 = vmatpush2.bf16.msra.mxu0 %v2325
        %2557 = vmatprep.subr.bf16.mxu0 %v2322
        %2558 = vmatpush2.bf16.msra.mxu0 %v2321
        %2559 = vmatprep.subr.bf16.mxu0 %v2318
        %2560 = vmatpush2.bf16.msra.mxu0 %v2317
        %2561 = vmatprep.subr.bf16.mxu0 %v2314
        %2562 = vmatpush2.bf16.msra.mxu0 %v2313
        %2563 = vmatprep.subr.bf16.mxu0 %v2310
        %2564 = vmatpush2.bf16.msra.mxu0 %v2309
        %2565 = vmatprep.mubr.bf16.mxu0 %v1734
        %2566 = vmatmul.mubr.bf16.gmra.mxu0 %v1733
        %v2567 = vpop.f32.mrf.mxu0
        %v2568 = vadd.f32 0.0, %v2567
        %v2569 = vpop.f32.mrf.mxu0
        %v2570 = vadd.f32 0.0, %v2569
        %v2571 = vpop.f32.mrf.mxu0
        %v2572 = vadd.f32 0.0, %v2571
        %v2573 = vpop.f32.mrf.mxu0
        %v2574 = vadd.f32 0.0, %v2573
        %2575 = vmatprep.mubr.bf16.mxu0 %v1738
        %2576 = vmatmul.mubr.bf16.gmra.mxu0 %v1737
        %v2577 = vpop.f32.mrf.mxu0
        %v2578 = vadd.f32 0.0, %v2577
        %v2579 = vpop.f32.mrf.mxu0
        %v2580 = vadd.f32 0.0, %v2579
        %v2581 = vpop.f32.mrf.mxu0
        %v2582 = vadd.f32 0.0, %v2581
        %v2583 = vpop.f32.mrf.mxu0
        %v2584 = vadd.f32 0.0, %v2583
        %2585 = vmatprep.mubr.bf16.mxu0 %v1742
        %2586 = vmatmul.mubr.bf16.gmra.mxu0 %v1741
        %v2587 = vpop.f32.mrf.mxu0
        %v2588 = vadd.f32 0.0, %v2587
        %v2589 = vpop.f32.mrf.mxu0
        %v2590 = vadd.f32 0.0, %v2589
        %v2591 = vpop.f32.mrf.mxu0
        %v2592 = vadd.f32 0.0, %v2591
        %v2593 = vpop.f32.mrf.mxu0
        %v2594 = vadd.f32 0.0, %v2593
        %2595 = vmatprep.mubr.bf16.mxu0 %v1746
        %2596 = vmatmul.mubr.bf16.gmra.mxu0 %v1745
        %v2597 = vpop.f32.mrf.mxu0
        %v2598 = vadd.f32 0.0, %v2597
        %v2599 = vpop.f32.mrf.mxu0
        %v2600 = vadd.f32 0.0, %v2599
        %v2601 = vpop.f32.mrf.mxu0
        %v2602 = vadd.f32 0.0, %v2601
        %v2603 = vpop.f32.mrf.mxu0
        %v2604 = vadd.f32 0.0, %v2603
        %2605 = vmatprep.mubr.bf16.mxu0 %v1750
        %2606 = vmatmul.mubr.bf16.gmra.mxu0 %v1749
        %v2607 = vpop.f32.mrf.mxu0
        %v2608 = vadd.f32 0.0, %v2607
        %v2609 = vpop.f32.mrf.mxu0
        %v2610 = vadd.f32 0.0, %v2609
        %v2611 = vpop.f32.mrf.mxu0
        %v2612 = vadd.f32 0.0, %v2611
        %v2613 = vpop.f32.mrf.mxu0
        %v2614 = vadd.f32 0.0, %v2613
        %2615 = vmatprep.mubr.bf16.mxu0 %v1754
        %2616 = vmatmul.mubr.bf16.gmra.mxu0 %v1753
        %v2617 = vpop.f32.mrf.mxu0
        %v2618 = vadd.f32 0.0, %v2617
        %v2619 = vpop.f32.mrf.mxu0
        %v2620 = vadd.f32 0.0, %v2619
        %v2621 = vpop.f32.mrf.mxu0
        %v2622 = vadd.f32 0.0, %v2621
        %v2623 = vpop.f32.mrf.mxu0
        %v2624 = vadd.f32 0.0, %v2623
        %2625 = vmatprep.mubr.bf16.mxu0 %v1758
        %2626 = vmatmul.mubr.bf16.gmra.mxu0 %v1757
        %v2627 = vpop.f32.mrf.mxu0
        %v2628 = vadd.f32 0.0, %v2627
        %v2629 = vpop.f32.mrf.mxu0
        %v2630 = vadd.f32 0.0, %v2629
        %v2631 = vpop.f32.mrf.mxu0
        %v2632 = vadd.f32 0.0, %v2631
        %v2633 = vpop.f32.mrf.mxu0
        %v2634 = vadd.f32 0.0, %v2633
        %2635 = vmatprep.mubr.bf16.mxu0 %v1762
        %2636 = vmatmul.mubr.bf16.gmra.mxu0 %v1761
        %v2637 = vpop.f32.mrf.mxu0
        %v2638 = vadd.f32 0.0, %v2637
        %v2639 = vpop.f32.mrf.mxu0
        %v2640 = vadd.f32 0.0, %v2639
        %v2641 = vpop.f32.mrf.mxu0
        %v2642 = vadd.f32 0.0, %v2641
        %v2643 = vpop.f32.mrf.mxu0
        %v2644 = vadd.f32 0.0, %v2643
        %2645 = vdwg.mxu0
        %2646 = vmatprep.subr.bf16.mxu0 %v2370
        %2647 = vmatpush1.bf16.msra.mxu0 %v2369
        %2648 = vmatprep.subr.bf16.mxu0 %v2366
        %2649 = vmatpush1.bf16.msra.mxu0 %v2365
        %2650 = vmatprep.subr.bf16.mxu0 %v2362
        %2651 = vmatpush1.bf16.msra.mxu0 %v2361
        %2652 = vmatprep.subr.bf16.mxu0 %v2358
        %2653 = vmatpush1.bf16.msra.mxu0 %v2357
        %2654 = vmatprep.subr.bf16.mxu0 %v2354
        %2655 = vmatpush1.bf16.msra.mxu0 %v2353
        %2656 = vmatprep.subr.bf16.mxu0 %v2350
        %2657 = vmatpush1.bf16.msra.mxu0 %v2349
        %2658 = vmatprep.subr.bf16.mxu0 %v2346
        %2659 = vmatpush1.bf16.msra.mxu0 %v2345
        %2660 = vmatprep.subr.bf16.mxu0 %v2342
        %2661 = vmatpush1.bf16.msra.mxu0 %v2341
        %2662 = vmatprep.subr.bf16.mxu0 %v2402
        %2663 = vmatpush2.bf16.msra.mxu0 %v2401
        %2664 = vmatprep.subr.bf16.mxu0 %v2398
        %2665 = vmatpush2.bf16.msra.mxu0 %v2397
        %2666 = vmatprep.subr.bf16.mxu0 %v2394
        %2667 = vmatpush2.bf16.msra.mxu0 %v2393
        %2668 = vmatprep.subr.bf16.mxu0 %v2390
        %2669 = vmatpush2.bf16.msra.mxu0 %v2389
        %2670 = vmatprep.subr.bf16.mxu0 %v2386
        %2671 = vmatpush2.bf16.msra.mxu0 %v2385
        %2672 = vmatprep.subr.bf16.mxu0 %v2382
        %2673 = vmatpush2.bf16.msra.mxu0 %v2381
        %2674 = vmatprep.subr.bf16.mxu0 %v2378
        %2675 = vmatpush2.bf16.msra.mxu0 %v2377
        %2676 = vmatprep.subr.bf16.mxu0 %v2374
        %2677 = vmatpush2.bf16.msra.mxu0 %v2373
        %2678 = vmatprep.mubr.bf16.mxu0 %v1736
        %2679 = vmatmul.mubr.bf16.gmra.mxu0 %v1735
        %v2680 = vpop.f32.mrf.mxu0
        %v2681 = vadd.f32 %v2568, %v2680
        %v2682 = vpop.f32.mrf.mxu0
        %v2683 = vadd.f32 %v2570, %v2682
        %v2684 = vpop.f32.mrf.mxu0
        %v2685 = vadd.f32 %v2572, %v2684
        %v2686 = vpop.f32.mrf.mxu0
        %v2687 = vadd.f32 %v2574, %v2686
        %2688 = vmatprep.mubr.bf16.mxu0 %v1740
        %2689 = vmatmul.mubr.bf16.gmra.mxu0 %v1739
        %v2690 = vpop.f32.mrf.mxu0
        %v2691 = vadd.f32 %v2578, %v2690
        %v2692 = vpop.f32.mrf.mxu0
        %v2693 = vadd.f32 %v2580, %v2692
        %v2694 = vpop.f32.mrf.mxu0
        %v2695 = vadd.f32 %v2582, %v2694
        %v2696 = vpop.f32.mrf.mxu0
        %v2697 = vadd.f32 %v2584, %v2696
        %2698 = vmatprep.mubr.bf16.mxu0 %v1744
        %2699 = vmatmul.mubr.bf16.gmra.mxu0 %v1743
        %v2700 = vpop.f32.mrf.mxu0
        %v2701 = vadd.f32 %v2588, %v2700
        %v2702 = vpop.f32.mrf.mxu0
        %v2703 = vadd.f32 %v2590, %v2702
        %v2704 = vpop.f32.mrf.mxu0
        %v2705 = vadd.f32 %v2592, %v2704
        %v2706 = vpop.f32.mrf.mxu0
        %v2707 = vadd.f32 %v2594, %v2706
        %2708 = vmatprep.mubr.bf16.mxu0 %v1748
        %2709 = vmatmul.mubr.bf16.gmra.mxu0 %v1747
        %v2710 = vpop.f32.mrf.mxu0
        %v2711 = vadd.f32 %v2598, %v2710
        %v2712 = vpop.f32.mrf.mxu0
        %v2713 = vadd.f32 %v2600, %v2712
        %v2714 = vpop.f32.mrf.mxu0
        %v2715 = vadd.f32 %v2602, %v2714
        %v2716 = vpop.f32.mrf.mxu0
        %v2717 = vadd.f32 %v2604, %v2716
        %2718 = vmatprep.mubr.bf16.mxu0 %v1752
        %2719 = vmatmul.mubr.bf16.gmra.mxu0 %v1751
        %v2720 = vpop.f32.mrf.mxu0
        %v2721 = vadd.f32 %v2608, %v2720
        %v2722 = vpop.f32.mrf.mxu0
        %v2723 = vadd.f32 %v2610, %v2722
        %v2724 = vpop.f32.mrf.mxu0
        %v2725 = vadd.f32 %v2612, %v2724
        %v2726 = vpop.f32.mrf.mxu0
        %v2727 = vadd.f32 %v2614, %v2726
        %2728 = vmatprep.mubr.bf16.mxu0 %v1756
        %2729 = vmatmul.mubr.bf16.gmra.mxu0 %v1755
        %v2730 = vpop.f32.mrf.mxu0
        %v2731 = vadd.f32 %v2618, %v2730
        %v2732 = vpop.f32.mrf.mxu0
        %v2733 = vadd.f32 %v2620, %v2732
        %v2734 = vpop.f32.mrf.mxu0
        %v2735 = vadd.f32 %v2622, %v2734
        %v2736 = vpop.f32.mrf.mxu0
        %v2737 = vadd.f32 %v2624, %v2736
        %2738 = vmatprep.mubr.bf16.mxu0 %v1760
        %2739 = vmatmul.mubr.bf16.gmra.mxu0 %v1759
        %v2740 = vpop.f32.mrf.mxu0
        %v2741 = vadd.f32 %v2628, %v2740
        %v2742 = vpop.f32.mrf.mxu0
        %v2743 = vadd.f32 %v2630, %v2742
        %v2744 = vpop.f32.mrf.mxu0
        %v2745 = vadd.f32 %v2632, %v2744
        %v2746 = vpop.f32.mrf.mxu0
        %v2747 = vadd.f32 %v2634, %v2746
        %2748 = vmatprep.mubr.bf16.mxu0 %v1764
        %2749 = vmatmul.mubr.bf16.gmra.mxu0 %v1763
        %v2750 = vpop.f32.mrf.mxu0
        %v2751 = vadd.f32 %v2638, %v2750
        %v2752 = vpop.f32.mrf.mxu0
        %v2753 = vadd.f32 %v2640, %v2752
        %v2754 = vpop.f32.mrf.mxu0
        %v2755 = vadd.f32 %v2642, %v2754
        %v2756 = vpop.f32.mrf.mxu0
        %v2757 = vadd.f32 %v2644, %v2756
        %2758 = vdwg.mxu0
        %2759 = vmatprep.subr.bf16.mxu0 %v2308
        %2760 = vmatpush1.bf16.msra.mxu0 %v2307
        %2761 = vmatprep.subr.bf16.mxu0 %v2304
        %2762 = vmatpush1.bf16.msra.mxu0 %v2303
        %2763 = vmatprep.subr.bf16.mxu0 %v2300
        %2764 = vmatpush1.bf16.msra.mxu0 %v2299
        %2765 = vmatprep.subr.bf16.mxu0 %v2296
        %2766 = vmatpush1.bf16.msra.mxu0 %v2295
        %2767 = vmatprep.subr.bf16.mxu0 %v2292
        %2768 = vmatpush1.bf16.msra.mxu0 %v2291
        %2769 = vmatprep.subr.bf16.mxu0 %v2288
        %2770 = vmatpush1.bf16.msra.mxu0 %v2287
        %2771 = vmatprep.subr.bf16.mxu0 %v2284
        %2772 = vmatpush1.bf16.msra.mxu0 %v2283
        %2773 = vmatprep.subr.bf16.mxu0 %v2280
        %2774 = vmatpush1.bf16.msra.mxu0 %v2279
        %2775 = vmatprep.subr.bf16.mxu0 %v2340
        %2776 = vmatpush2.bf16.msra.mxu0 %v2339
        %2777 = vmatprep.subr.bf16.mxu0 %v2336
        %2778 = vmatpush2.bf16.msra.mxu0 %v2335
        %2779 = vmatprep.subr.bf16.mxu0 %v2332
        %2780 = vmatpush2.bf16.msra.mxu0 %v2331
        %2781 = vmatprep.subr.bf16.mxu0 %v2328
        %2782 = vmatpush2.bf16.msra.mxu0 %v2327
        %2783 = vmatprep.subr.bf16.mxu0 %v2324
        %2784 = vmatpush2.bf16.msra.mxu0 %v2323
        %2785 = vmatprep.subr.bf16.mxu0 %v2320
        %2786 = vmatpush2.bf16.msra.mxu0 %v2319
        %2787 = vmatprep.subr.bf16.mxu0 %v2316
        %2788 = vmatpush2.bf16.msra.mxu0 %v2315
        %2789 = vmatprep.subr.bf16.mxu0 %v2312
        %2790 = vmatpush2.bf16.msra.mxu0 %v2311
        %2791 = vmatprep.mubr.bf16.mxu0 %v1734
        %2792 = vmatmul.mubr.bf16.gmra.mxu0 %v1733
        %v2793 = vpop.f32.mrf.mxu0
        %v2794 = vadd.f32 0.0, %v2793
        %v2795 = vpop.f32.mrf.mxu0
        %v2796 = vadd.f32 0.0, %v2795
        %v2797 = vpop.f32.mrf.mxu0
        %v2798 = vadd.f32 0.0, %v2797
        %v2799 = vpop.f32.mrf.mxu0
        %v2800 = vadd.f32 0.0, %v2799
        %2801 = vmatprep.mubr.bf16.mxu0 %v1738
        %2802 = vmatmul.mubr.bf16.gmra.mxu0 %v1737
        %v2803 = vpop.f32.mrf.mxu0
        %v2804 = vadd.f32 0.0, %v2803
        %v2805 = vpop.f32.mrf.mxu0
        %v2806 = vadd.f32 0.0, %v2805
        %v2807 = vpop.f32.mrf.mxu0
        %v2808 = vadd.f32 0.0, %v2807
        %v2809 = vpop.f32.mrf.mxu0
        %v2810 = vadd.f32 0.0, %v2809
        %2811 = vmatprep.mubr.bf16.mxu0 %v1742
        %2812 = vmatmul.mubr.bf16.gmra.mxu0 %v1741
        %v2813 = vpop.f32.mrf.mxu0
        %v2814 = vadd.f32 0.0, %v2813
        %v2815 = vpop.f32.mrf.mxu0
        %v2816 = vadd.f32 0.0, %v2815
        %v2817 = vpop.f32.mrf.mxu0
        %v2818 = vadd.f32 0.0, %v2817
        %v2819 = vpop.f32.mrf.mxu0
        %v2820 = vadd.f32 0.0, %v2819
        %2821 = vmatprep.mubr.bf16.mxu0 %v1746
        %2822 = vmatmul.mubr.bf16.gmra.mxu0 %v1745
        %v2823 = vpop.f32.mrf.mxu0
        %v2824 = vadd.f32 0.0, %v2823
        %v2825 = vpop.f32.mrf.mxu0
        %v2826 = vadd.f32 0.0, %v2825
        %v2827 = vpop.f32.mrf.mxu0
        %v2828 = vadd.f32 0.0, %v2827
        %v2829 = vpop.f32.mrf.mxu0
        %v2830 = vadd.f32 0.0, %v2829
        %2831 = vmatprep.mubr.bf16.mxu0 %v1750
        %2832 = vmatmul.mubr.bf16.gmra.mxu0 %v1749
        %v2833 = vpop.f32.mrf.mxu0
        %v2834 = vadd.f32 0.0, %v2833
        %v2835 = vpop.f32.mrf.mxu0
        %v2836 = vadd.f32 0.0, %v2835
        %v2837 = vpop.f32.mrf.mxu0
        %v2838 = vadd.f32 0.0, %v2837
        %v2839 = vpop.f32.mrf.mxu0
        %v2840 = vadd.f32 0.0, %v2839
        %2841 = vmatprep.mubr.bf16.mxu0 %v1754
        %2842 = vmatmul.mubr.bf16.gmra.mxu0 %v1753
        %v2843 = vpop.f32.mrf.mxu0
        %v2844 = vadd.f32 0.0, %v2843
        %v2845 = vpop.f32.mrf.mxu0
        %v2846 = vadd.f32 0.0, %v2845
        %v2847 = vpop.f32.mrf.mxu0
        %v2848 = vadd.f32 0.0, %v2847
        %v2849 = vpop.f32.mrf.mxu0
        %v2850 = vadd.f32 0.0, %v2849
        %2851 = vmatprep.mubr.bf16.mxu0 %v1758
        %2852 = vmatmul.mubr.bf16.gmra.mxu0 %v1757
        %v2853 = vpop.f32.mrf.mxu0
        %v2854 = vadd.f32 0.0, %v2853
        %v2855 = vpop.f32.mrf.mxu0
        %v2856 = vadd.f32 0.0, %v2855
        %v2857 = vpop.f32.mrf.mxu0
        %v2858 = vadd.f32 0.0, %v2857
        %v2859 = vpop.f32.mrf.mxu0
        %v2860 = vadd.f32 0.0, %v2859
        %2861 = vmatprep.mubr.bf16.mxu0 %v1762
        %2862 = vmatmul.mubr.bf16.gmra.mxu0 %v1761
        %v2863 = vpop.f32.mrf.mxu0
        %v2864 = vadd.f32 0.0, %v2863
        %v2865 = vpop.f32.mrf.mxu0
        %v2866 = vadd.f32 0.0, %v2865
        %v2867 = vpop.f32.mrf.mxu0
        %v2868 = vadd.f32 0.0, %v2867
        %v2869 = vpop.f32.mrf.mxu0
        %v2870 = vadd.f32 0.0, %v2869
        %2871 = vdwg.mxu0
        %2872 = vmatprep.subr.bf16.mxu0 %v2372
        %2873 = vmatpush1.bf16.msra.mxu0 %v2371
        %2874 = vmatprep.subr.bf16.mxu0 %v2368
        %2875 = vmatpush1.bf16.msra.mxu0 %v2367
        %2876 = vmatprep.subr.bf16.mxu0 %v2364
        %2877 = vmatpush1.bf16.msra.mxu0 %v2363
        %2878 = vmatprep.subr.bf16.mxu0 %v2360
        %2879 = vmatpush1.bf16.msra.mxu0 %v2359
        %2880 = vmatprep.subr.bf16.mxu0 %v2356
        %2881 = vmatpush1.bf16.msra.mxu0 %v2355
        %2882 = vmatprep.subr.bf16.mxu0 %v2352
        %2883 = vmatpush1.bf16.msra.mxu0 %v2351
        %2884 = vmatprep.subr.bf16.mxu0 %v2348
        %2885 = vmatpush1.bf16.msra.mxu0 %v2347
        %2886 = vmatprep.subr.bf16.mxu0 %v2344
        %2887 = vmatpush1.bf16.msra.mxu0 %v2343
        %2888 = vmatprep.subr.bf16.mxu0 %v2404
        %2889 = vmatpush2.bf16.msra.mxu0 %v2403
        %2890 = vmatprep.subr.bf16.mxu0 %v2400
        %2891 = vmatpush2.bf16.msra.mxu0 %v2399
        %2892 = vmatprep.subr.bf16.mxu0 %v2396
        %2893 = vmatpush2.bf16.msra.mxu0 %v2395
        %2894 = vmatprep.subr.bf16.mxu0 %v2392
        %2895 = vmatpush2.bf16.msra.mxu0 %v2391
        %2896 = vmatprep.subr.bf16.mxu0 %v2388
        %2897 = vmatpush2.bf16.msra.mxu0 %v2387
        %2898 = vmatprep.subr.bf16.mxu0 %v2384
        %2899 = vmatpush2.bf16.msra.mxu0 %v2383
        %2900 = vmatprep.subr.bf16.mxu0 %v2380
        %2901 = vmatpush2.bf16.msra.mxu0 %v2379
        %2902 = vmatprep.subr.bf16.mxu0 %v2376
        %2903 = vmatpush2.bf16.msra.mxu0 %v2375
        %2904 = vmatprep.mubr.bf16.mxu0 %v1736
        %2905 = vmatmul.mubr.bf16.gmra.mxu0 %v1735
        %v2906 = vpop.f32.mrf.mxu0
        %v2907 = vadd.f32 %v2794, %v2906
        %v2908 = vpop.f32.mrf.mxu0
        %v2909 = vadd.f32 %v2796, %v2908
        %v2910 = vpop.f32.mrf.mxu0
        %v2911 = vadd.f32 %v2798, %v2910
        %v2912 = vpop.f32.mrf.mxu0
        %v2913 = vadd.f32 %v2800, %v2912
        %2914 = vmatprep.mubr.bf16.mxu0 %v1740
        %2915 = vmatmul.mubr.bf16.gmra.mxu0 %v1739
        %v2916 = vpop.f32.mrf.mxu0
        %v2917 = vadd.f32 %v2804, %v2916
        %v2918 = vpop.f32.mrf.mxu0
        %v2919 = vadd.f32 %v2806, %v2918
        %v2920 = vpop.f32.mrf.mxu0
        %v2921 = vadd.f32 %v2808, %v2920
        %v2922 = vpop.f32.mrf.mxu0
        %v2923 = vadd.f32 %v2810, %v2922
        %2924 = vmatprep.mubr.bf16.mxu0 %v1744
        %2925 = vmatmul.mubr.bf16.gmra.mxu0 %v1743
        %v2926 = vpop.f32.mrf.mxu0
        %v2927 = vadd.f32 %v2814, %v2926
        %v2928 = vpop.f32.mrf.mxu0
        %v2929 = vadd.f32 %v2816, %v2928
        %v2930 = vpop.f32.mrf.mxu0
        %v2931 = vadd.f32 %v2818, %v2930
        %v2932 = vpop.f32.mrf.mxu0
        %v2933 = vadd.f32 %v2820, %v2932
        %2934 = vmatprep.mubr.bf16.mxu0 %v1748
        %2935 = vmatmul.mubr.bf16.gmra.mxu0 %v1747
        %v2936 = vpop.f32.mrf.mxu0
        %v2937 = vadd.f32 %v2824, %v2936
        %v2938 = vpop.f32.mrf.mxu0
        %v2939 = vadd.f32 %v2826, %v2938
        %v2940 = vpop.f32.mrf.mxu0
        %v2941 = vadd.f32 %v2828, %v2940
        %v2942 = vpop.f32.mrf.mxu0
        %v2943 = vadd.f32 %v2830, %v2942
        %2944 = vmatprep.mubr.bf16.mxu0 %v1752
        %2945 = vmatmul.mubr.bf16.gmra.mxu0 %v1751
        %v2946 = vpop.f32.mrf.mxu0
        %v2947 = vadd.f32 %v2834, %v2946
        %v2948 = vpop.f32.mrf.mxu0
        %v2949 = vadd.f32 %v2836, %v2948
        %v2950 = vpop.f32.mrf.mxu0
        %v2951 = vadd.f32 %v2838, %v2950
        %v2952 = vpop.f32.mrf.mxu0
        %v2953 = vadd.f32 %v2840, %v2952
        %2954 = vmatprep.mubr.bf16.mxu0 %v1756
        %2955 = vmatmul.mubr.bf16.gmra.mxu0 %v1755
        %v2956 = vpop.f32.mrf.mxu0
        %v2957 = vadd.f32 %v2844, %v2956
        %v2958 = vpop.f32.mrf.mxu0
        %v2959 = vadd.f32 %v2846, %v2958
        %v2960 = vpop.f32.mrf.mxu0
        %v2961 = vadd.f32 %v2848, %v2960
        %v2962 = vpop.f32.mrf.mxu0
        %v2963 = vadd.f32 %v2850, %v2962
        %2964 = vmatprep.mubr.bf16.mxu0 %v1760
        %2965 = vmatmul.mubr.bf16.gmra.mxu0 %v1759
        %v2966 = vpop.f32.mrf.mxu0
        %v2967 = vadd.f32 %v2854, %v2966
        %v2968 = vpop.f32.mrf.mxu0
        %v2969 = vadd.f32 %v2856, %v2968
        %v2970 = vpop.f32.mrf.mxu0
        %v2971 = vadd.f32 %v2858, %v2970
        %v2972 = vpop.f32.mrf.mxu0
        %v2973 = vadd.f32 %v2860, %v2972
        %2974 = vmatprep.mubr.bf16.mxu0 %v1764
        %2975 = vmatmul.mubr.bf16.gmra.mxu0 %v1763
        %v2976 = vpop.f32.mrf.mxu0
        %v2977 = vadd.f32 %v2864, %v2976
        %v2978 = vpop.f32.mrf.mxu0
        %v2979 = vadd.f32 %v2866, %v2978
        %v2980 = vpop.f32.mrf.mxu0
        %v2981 = vadd.f32 %v2868, %v2980
        %v2982 = vpop.f32.mrf.mxu0
        %v2983 = vadd.f32 %v2870, %v2982
        %2984 = vdwg.mxu0
        %v2985 = vpack.c.bf16 %v1369, %v1365
        %v2986 = vpack.c.bf16 %v1379, %v1375
        %v2987 = vpack.c.bf16 %v1389, %v1385
        %v2988 = vpack.c.bf16 %v1399, %v1395
        %v2989 = vpack.c.bf16 %v1409, %v1405
        %v2990 = vpack.c.bf16 %v1419, %v1415
        %v2991 = vpack.c.bf16 %v1429, %v1425
        %v2992 = vpack.c.bf16 %v1439, %v1435
        %v3001 = vunpack.c.l.b16 %v2985
        %v3002 = vunpack.c.h.b16 %v2985
        %v3003 = vunpack.c.l.b16 %v2986
        %v3004 = vunpack.c.h.b16 %v2986
        %v3005 = vunpack.c.l.b16 %v2987
        %v3006 = vunpack.c.h.b16 %v2987
        %v3007 = vunpack.c.l.b16 %v2988
        %v3008 = vunpack.c.h.b16 %v2988
        %v3009 = vunpack.c.l.b16 %v2989
        %v3010 = vunpack.c.h.b16 %v2989
        %v3011 = vunpack.c.l.b16 %v2990
        %v3012 = vunpack.c.h.b16 %v2990
        %v3013 = vunpack.c.l.b16 %v2991
        %v3014 = vunpack.c.h.b16 %v2991
        %v3015 = vunpack.c.l.b16 %v2992
        %v3016 = vunpack.c.h.b16 %v2992
        %v3017 = vpack.c.b16 %v3001, %v3001
        %v3018 = vpack.c.b16 %v3002, %v3002
        %v3019 = vpack.c.b16 %v3003, %v3003
        %v3020 = vpack.c.b16 %v3004, %v3004
        %v3021 = vpack.c.b16 %v3005, %v3005
        %v3022 = vpack.c.b16 %v3006, %v3006
        %v3023 = vpack.c.b16 %v3007, %v3007
        %v3024 = vpack.c.b16 %v3008, %v3008
        %v3025 = vpack.c.b16 %v3009, %v3009
        %v3026 = vpack.c.b16 %v3010, %v3010
        %v3027 = vpack.c.b16 %v3011, %v3011
        %v3028 = vpack.c.b16 %v3012, %v3012
        %v3029 = vpack.c.b16 %v3013, %v3013
        %v3030 = vpack.c.b16 %v3014, %v3014
        %v3031 = vpack.c.b16 %v3015, %v3015
        %v3032 = vpack.c.b16 %v3016, %v3016
        %3049 = vst [vmem:[%s341] sm:$0xf] %v3017
        %3050 = vst [vmem:[%s341 + $0x4] sm:$0xf] %v3018
        %3051 = vst [vmem:[%s341 + $0x8] sm:$0xf] %v3019
        %3052 = vst [vmem:[%s341 + $0xc] sm:$0xf] %v3020
        %3053 = vst [vmem:[%s341 + $0x10] sm:$0xf] %v3021
        %3054 = vst [vmem:[%s341 + $0x14] sm:$0xf] %v3022
        %3055 = vst [vmem:[%s341 + $0x18] sm:$0xf] %v3023
        %3056 = vst [vmem:[%s341 + $0x1c] sm:$0xf] %v3024
        %3057 = vst [vmem:[%s341 + $0x20] sm:$0xf] %v3025
        %3058 = vst [vmem:[%s341 + $0x24] sm:$0xf] %v3026
        %3059 = vst [vmem:[%s341 + $0x28] sm:$0xf] %v3027
        %3060 = vst [vmem:[%s341 + $0x2c] sm:$0xf] %v3028
        %3061 = vst [vmem:[%s341 + $0x30] sm:$0xf] %v3029
        %3062 = vst [vmem:[%s341 + $0x34] sm:$0xf] %v3030
        %3063 = vst [vmem:[%s341 + $0x38] sm:$0xf] %v3031
        %3064 = vst [vmem:[%s341 + $0x3c] sm:$0xf] %v3032
        %v3065 = vpack.c.bf16 %v2685, %v2681
        %v3066 = vpack.c.bf16 %v2695, %v2691
        %v3067 = vpack.c.bf16 %v2705, %v2701
        %v3068 = vpack.c.bf16 %v2715, %v2711
        %v3069 = vpack.c.bf16 %v2725, %v2721
        %v3070 = vpack.c.bf16 %v2735, %v2731
        %v3071 = vpack.c.bf16 %v2745, %v2741
        %v3072 = vpack.c.bf16 %v2755, %v2751
        %v3081 = vunpack.c.l.b16 %v3065
        %v3082 = vunpack.c.h.b16 %v3065
        %v3083 = vunpack.c.l.b16 %v3066
        %v3084 = vunpack.c.h.b16 %v3066
        %v3085 = vunpack.c.l.b16 %v3067
        %v3086 = vunpack.c.h.b16 %v3067
        %v3087 = vunpack.c.l.b16 %v3068
        %v3088 = vunpack.c.h.b16 %v3068
        %v3089 = vunpack.c.l.b16 %v3069
        %v3090 = vunpack.c.h.b16 %v3069
        %v3091 = vunpack.c.l.b16 %v3070
        %v3092 = vunpack.c.h.b16 %v3070
        %v3093 = vunpack.c.l.b16 %v3071
        %v3094 = vunpack.c.h.b16 %v3071
        %v3095 = vunpack.c.l.b16 %v3072
        %v3096 = vunpack.c.h.b16 %v3072
        %v3097 = vpack.c.b16 %v3081, %v3081
        %v3098 = vpack.c.b16 %v3082, %v3082
        %v3099 = vpack.c.b16 %v3083, %v3083
        %v3100 = vpack.c.b16 %v3084, %v3084
        %v3101 = vpack.c.b16 %v3085, %v3085
        %v3102 = vpack.c.b16 %v3086, %v3086
        %v3103 = vpack.c.b16 %v3087, %v3087
        %v3104 = vpack.c.b16 %v3088, %v3088
        %v3105 = vpack.c.b16 %v3089, %v3089
        %v3106 = vpack.c.b16 %v3090, %v3090
        %v3107 = vpack.c.b16 %v3091, %v3091
        %v3108 = vpack.c.b16 %v3092, %v3092
        %v3109 = vpack.c.b16 %v3093, %v3093
        %v3110 = vpack.c.b16 %v3094, %v3094
        %v3111 = vpack.c.b16 %v3095, %v3095
        %v3112 = vpack.c.b16 %v3096, %v3096
        %3129 = vst [vmem:[%s348] sm:$0xf] %v3097
        %3130 = vst [vmem:[%s348 + $0x4] sm:$0xf] %v3098
        %3131 = vst [vmem:[%s348 + $0x8] sm:$0xf] %v3099
        %3132 = vst [vmem:[%s348 + $0xc] sm:$0xf] %v3100
        %3133 = vst [vmem:[%s348 + $0x10] sm:$0xf] %v3101
        %3134 = vst [vmem:[%s348 + $0x14] sm:$0xf] %v3102
        %3135 = vst [vmem:[%s348 + $0x18] sm:$0xf] %v3103
        %3136 = vst [vmem:[%s348 + $0x1c] sm:$0xf] %v3104
        %3137 = vst [vmem:[%s348 + $0x20] sm:$0xf] %v3105
        %3138 = vst [vmem:[%s348 + $0x24] sm:$0xf] %v3106
        %3139 = vst [vmem:[%s348 + $0x28] sm:$0xf] %v3107
        %3140 = vst [vmem:[%s348 + $0x2c] sm:$0xf] %v3108
        %3141 = vst [vmem:[%s348 + $0x30] sm:$0xf] %v3109
        %3142 = vst [vmem:[%s348 + $0x34] sm:$0xf] %v3110
        %3143 = vst [vmem:[%s348 + $0x38] sm:$0xf] %v3111
        %3144 = vst [vmem:[%s348 + $0x3c] sm:$0xf] %v3112
        %v3145 = vpack.c.bf16 %v1371, %v1367
        %v3146 = vpack.c.bf16 %v1381, %v1377
        %v3147 = vpack.c.bf16 %v1391, %v1387
        %v3148 = vpack.c.bf16 %v1401, %v1397
        %v3149 = vpack.c.bf16 %v1411, %v1407
        %v3150 = vpack.c.bf16 %v1421, %v1417
        %v3151 = vpack.c.bf16 %v1431, %v1427
        %v3152 = vpack.c.bf16 %v1441, %v1437
        %v3161 = vunpack.c.l.b16 %v3145
        %v3162 = vunpack.c.h.b16 %v3145
        %v3163 = vunpack.c.l.b16 %v3146
        %v3164 = vunpack.c.h.b16 %v3146
        %v3165 = vunpack.c.l.b16 %v3147
        %v3166 = vunpack.c.h.b16 %v3147
        %v3167 = vunpack.c.l.b16 %v3148
        %v3168 = vunpack.c.h.b16 %v3148
        %v3169 = vunpack.c.l.b16 %v3149
        %v3170 = vunpack.c.h.b16 %v3149
        %v3171 = vunpack.c.l.b16 %v3150
        %v3172 = vunpack.c.h.b16 %v3150
        %v3173 = vunpack.c.l.b16 %v3151
        %v3174 = vunpack.c.h.b16 %v3151
        %v3175 = vunpack.c.l.b16 %v3152
        %v3176 = vunpack.c.h.b16 %v3152
        %v3177 = vpack.c.b16 %v3161, %v3161
        %v3178 = vpack.c.b16 %v3162, %v3162
        %v3179 = vpack.c.b16 %v3163, %v3163
        %v3180 = vpack.c.b16 %v3164, %v3164
        %v3181 = vpack.c.b16 %v3165, %v3165
        %v3182 = vpack.c.b16 %v3166, %v3166
        %v3183 = vpack.c.b16 %v3167, %v3167
        %v3184 = vpack.c.b16 %v3168, %v3168
        %v3185 = vpack.c.b16 %v3169, %v3169
        %v3186 = vpack.c.b16 %v3170, %v3170
        %v3187 = vpack.c.b16 %v3171, %v3171
        %v3188 = vpack.c.b16 %v3172, %v3172
        %v3189 = vpack.c.b16 %v3173, %v3173
        %v3190 = vpack.c.b16 %v3174, %v3174
        %v3191 = vpack.c.b16 %v3175, %v3175
        %v3192 = vpack.c.b16 %v3176, %v3176
        %s3209 = scalar_lea.vmem %s341, 64 [#allocation10]
        %3210 = vst [vmem:[%s3209] sm:$0xf] %v3177
        %3211 = vst [vmem:[%s3209 + $0x4] sm:$0xf] %v3178
        %3212 = vst [vmem:[%s3209 + $0x8] sm:$0xf] %v3179
        %3213 = vst [vmem:[%s3209 + $0xc] sm:$0xf] %v3180
        %3214 = vst [vmem:[%s3209 + $0x10] sm:$0xf] %v3181
        %3215 = vst [vmem:[%s3209 + $0x14] sm:$0xf] %v3182
        %3216 = vst [vmem:[%s3209 + $0x18] sm:$0xf] %v3183
        %3217 = vst [vmem:[%s3209 + $0x1c] sm:$0xf] %v3184
        %3218 = vst [vmem:[%s3209 + $0x20] sm:$0xf] %v3185
        %3219 = vst [vmem:[%s3209 + $0x24] sm:$0xf] %v3186
        %3220 = vst [vmem:[%s3209 + $0x28] sm:$0xf] %v3187
        %3221 = vst [vmem:[%s3209 + $0x2c] sm:$0xf] %v3188
        %3222 = vst [vmem:[%s3209 + $0x30] sm:$0xf] %v3189
        %3223 = vst [vmem:[%s3209 + $0x34] sm:$0xf] %v3190
        %3224 = vst [vmem:[%s3209 + $0x38] sm:$0xf] %v3191
        %3225 = vst [vmem:[%s3209 + $0x3c] sm:$0xf] %v3192
        %v3226 = vpack.c.bf16 %v2687, %v2683
        %v3227 = vpack.c.bf16 %v2697, %v2693
        %v3228 = vpack.c.bf16 %v2707, %v2703
        %v3229 = vpack.c.bf16 %v2717, %v2713
        %v3230 = vpack.c.bf16 %v2727, %v2723
        %v3231 = vpack.c.bf16 %v2737, %v2733
        %v3232 = vpack.c.bf16 %v2747, %v2743
        %v3233 = vpack.c.bf16 %v2757, %v2753
        %v3242 = vunpack.c.l.b16 %v3226
        %v3243 = vunpack.c.h.b16 %v3226
        %v3244 = vunpack.c.l.b16 %v3227
        %v3245 = vunpack.c.h.b16 %v3227
        %v3246 = vunpack.c.l.b16 %v3228
        %v3247 = vunpack.c.h.b16 %v3228
        %v3248 = vunpack.c.l.b16 %v3229
        %v3249 = vunpack.c.h.b16 %v3229
        %v3250 = vunpack.c.l.b16 %v3230
        %v3251 = vunpack.c.h.b16 %v3230
        %v3252 = vunpack.c.l.b16 %v3231
        %v3253 = vunpack.c.h.b16 %v3231
        %v3254 = vunpack.c.l.b16 %v3232
        %v3255 = vunpack.c.h.b16 %v3232
        %v3256 = vunpack.c.l.b16 %v3233
        %v3257 = vunpack.c.h.b16 %v3233
        %v3258 = vpack.c.b16 %v3242, %v3242
        %v3259 = vpack.c.b16 %v3243, %v3243
        %v3260 = vpack.c.b16 %v3244, %v3244
        %v3261 = vpack.c.b16 %v3245, %v3245
        %v3262 = vpack.c.b16 %v3246, %v3246
        %v3263 = vpack.c.b16 %v3247, %v3247
        %v3264 = vpack.c.b16 %v3248, %v3248
        %v3265 = vpack.c.b16 %v3249, %v3249
        %v3266 = vpack.c.b16 %v3250, %v3250
        %v3267 = vpack.c.b16 %v3251, %v3251
        %v3268 = vpack.c.b16 %v3252, %v3252
        %v3269 = vpack.c.b16 %v3253, %v3253
        %v3270 = vpack.c.b16 %v3254, %v3254
        %v3271 = vpack.c.b16 %v3255, %v3255
        %v3272 = vpack.c.b16 %v3256, %v3256
        %v3273 = vpack.c.b16 %v3257, %v3257
        %s3290 = scalar_lea.vmem %s348, 64 [#allocation11]
        %3291 = vst [vmem:[%s3290] sm:$0xf] %v3258
        %3292 = vst [vmem:[%s3290 + $0x4] sm:$0xf] %v3259
        %3293 = vst [vmem:[%s3290 + $0x8] sm:$0xf] %v3260
        %3294 = vst [vmem:[%s3290 + $0xc] sm:$0xf] %v3261
        %3295 = vst [vmem:[%s3290 + $0x10] sm:$0xf] %v3262
        %3296 = vst [vmem:[%s3290 + $0x14] sm:$0xf] %v3263
        %3297 = vst [vmem:[%s3290 + $0x18] sm:$0xf] %v3264
        %3298 = vst [vmem:[%s3290 + $0x1c] sm:$0xf] %v3265
        %3299 = vst [vmem:[%s3290 + $0x20] sm:$0xf] %v3266
        %3300 = vst [vmem:[%s3290 + $0x24] sm:$0xf] %v3267
        %3301 = vst [vmem:[%s3290 + $0x28] sm:$0xf] %v3268
        %3302 = vst [vmem:[%s3290 + $0x2c] sm:$0xf] %v3269
        %3303 = vst [vmem:[%s3290 + $0x30] sm:$0xf] %v3270
        %3304 = vst [vmem:[%s3290 + $0x34] sm:$0xf] %v3271
        %3305 = vst [vmem:[%s3290 + $0x38] sm:$0xf] %v3272
        %3306 = vst [vmem:[%s3290 + $0x3c] sm:$0xf] %v3273
        %v3307 = vpack.c.bf16 %v1595, %v1591
        %v3308 = vpack.c.bf16 %v1605, %v1601
        %v3309 = vpack.c.bf16 %v1615, %v1611
        %v3310 = vpack.c.bf16 %v1625, %v1621
        %v3311 = vpack.c.bf16 %v1635, %v1631
        %v3312 = vpack.c.bf16 %v1645, %v1641
        %v3313 = vpack.c.bf16 %v1655, %v1651
        %v3314 = vpack.c.bf16 %v1665, %v1661
        %v3323 = vunpack.c.l.b16 %v3307
        %v3324 = vunpack.c.h.b16 %v3307
        %v3325 = vunpack.c.l.b16 %v3308
        %v3326 = vunpack.c.h.b16 %v3308
        %v3327 = vunpack.c.l.b16 %v3309
        %v3328 = vunpack.c.h.b16 %v3309
        %v3329 = vunpack.c.l.b16 %v3310
        %v3330 = vunpack.c.h.b16 %v3310
        %v3331 = vunpack.c.l.b16 %v3311
        %v3332 = vunpack.c.h.b16 %v3311
        %v3333 = vunpack.c.l.b16 %v3312
        %v3334 = vunpack.c.h.b16 %v3312
        %v3335 = vunpack.c.l.b16 %v3313
        %v3336 = vunpack.c.h.b16 %v3313
        %v3337 = vunpack.c.l.b16 %v3314
        %v3338 = vunpack.c.h.b16 %v3314
        %v3339 = vpack.c.b16 %v3323, %v3323
        %v3340 = vpack.c.b16 %v3324, %v3324
        %v3341 = vpack.c.b16 %v3325, %v3325
        %v3342 = vpack.c.b16 %v3326, %v3326
        %v3343 = vpack.c.b16 %v3327, %v3327
        %v3344 = vpack.c.b16 %v3328, %v3328
        %v3345 = vpack.c.b16 %v3329, %v3329
        %v3346 = vpack.c.b16 %v3330, %v3330
        %v3347 = vpack.c.b16 %v3331, %v3331
        %v3348 = vpack.c.b16 %v3332, %v3332
        %v3349 = vpack.c.b16 %v3333, %v3333
        %v3350 = vpack.c.b16 %v3334, %v3334
        %v3351 = vpack.c.b16 %v3335, %v3335
        %v3352 = vpack.c.b16 %v3336, %v3336
        %v3353 = vpack.c.b16 %v3337, %v3337
        %v3354 = vpack.c.b16 %v3338, %v3338
        %s3371 = scalar_lea.vmem %s341, 128 [#allocation10]
        %3372 = vst [vmem:[%s3371] sm:$0xf] %v3339
        %3373 = vst [vmem:[%s3371 + $0x4] sm:$0xf] %v3340
        %3374 = vst [vmem:[%s3371 + $0x8] sm:$0xf] %v3341
        %3375 = vst [vmem:[%s3371 + $0xc] sm:$0xf] %v3342
        %3376 = vst [vmem:[%s3371 + $0x10] sm:$0xf] %v3343
        %3377 = vst [vmem:[%s3371 + $0x14] sm:$0xf] %v3344
        %3378 = vst [vmem:[%s3371 + $0x18] sm:$0xf] %v3345
        %3379 = vst [vmem:[%s3371 + $0x1c] sm:$0xf] %v3346
        %3380 = vst [vmem:[%s3371 + $0x20] sm:$0xf] %v3347
        %3381 = vst [vmem:[%s3371 + $0x24] sm:$0xf] %v3348
        %3382 = vst [vmem:[%s3371 + $0x28] sm:$0xf] %v3349
        %3383 = vst [vmem:[%s3371 + $0x2c] sm:$0xf] %v3350
        %3384 = vst [vmem:[%s3371 + $0x30] sm:$0xf] %v3351
        %3385 = vst [vmem:[%s3371 + $0x34] sm:$0xf] %v3352
        %3386 = vst [vmem:[%s3371 + $0x38] sm:$0xf] %v3353
        %3387 = vst [vmem:[%s3371 + $0x3c] sm:$0xf] %v3354
        %v3388 = vpack.c.bf16 %v2911, %v2907
        %v3389 = vpack.c.bf16 %v2921, %v2917
        %v3390 = vpack.c.bf16 %v2931, %v2927
        %v3391 = vpack.c.bf16 %v2941, %v2937
        %v3392 = vpack.c.bf16 %v2951, %v2947
        %v3393 = vpack.c.bf16 %v2961, %v2957
        %v3394 = vpack.c.bf16 %v2971, %v2967
        %v3395 = vpack.c.bf16 %v2981, %v2977
        %v3404 = vunpack.c.l.b16 %v3388
        %v3405 = vunpack.c.h.b16 %v3388
        %v3406 = vunpack.c.l.b16 %v3389
        %v3407 = vunpack.c.h.b16 %v3389
        %v3408 = vunpack.c.l.b16 %v3390
        %v3409 = vunpack.c.h.b16 %v3390
        %v3410 = vunpack.c.l.b16 %v3391
        %v3411 = vunpack.c.h.b16 %v3391
        %v3412 = vunpack.c.l.b16 %v3392
        %v3413 = vunpack.c.h.b16 %v3392
        %v3414 = vunpack.c.l.b16 %v3393
        %v3415 = vunpack.c.h.b16 %v3393
        %v3416 = vunpack.c.l.b16 %v3394
        %v3417 = vunpack.c.h.b16 %v3394
        %v3418 = vunpack.c.l.b16 %v3395
        %v3419 = vunpack.c.h.b16 %v3395
        %v3420 = vpack.c.b16 %v3404, %v3404
        %v3421 = vpack.c.b16 %v3405, %v3405
        %v3422 = vpack.c.b16 %v3406, %v3406
        %v3423 = vpack.c.b16 %v3407, %v3407
        %v3424 = vpack.c.b16 %v3408, %v3408
        %v3425 = vpack.c.b16 %v3409, %v3409
        %v3426 = vpack.c.b16 %v3410, %v3410
        %v3427 = vpack.c.b16 %v3411, %v3411
        %v3428 = vpack.c.b16 %v3412, %v3412
        %v3429 = vpack.c.b16 %v3413, %v3413
        %v3430 = vpack.c.b16 %v3414, %v3414
        %v3431 = vpack.c.b16 %v3415, %v3415
        %v3432 = vpack.c.b16 %v3416, %v3416
        %v3433 = vpack.c.b16 %v3417, %v3417
        %v3434 = vpack.c.b16 %v3418, %v3418
        %v3435 = vpack.c.b16 %v3419, %v3419
        %s3452 = scalar_lea.vmem %s348, 128 [#allocation11]
        %3453 = vst [vmem:[%s3452] sm:$0xf] %v3420
        %3454 = vst [vmem:[%s3452 + $0x4] sm:$0xf] %v3421
        %3455 = vst [vmem:[%s3452 + $0x8] sm:$0xf] %v3422
        %3456 = vst [vmem:[%s3452 + $0xc] sm:$0xf] %v3423
        %3457 = vst [vmem:[%s3452 + $0x10] sm:$0xf] %v3424
        %3458 = vst [vmem:[%s3452 + $0x14] sm:$0xf] %v3425
        %3459 = vst [vmem:[%s3452 + $0x18] sm:$0xf] %v3426
        %3460 = vst [vmem:[%s3452 + $0x1c] sm:$0xf] %v3427
        %3461 = vst [vmem:[%s3452 + $0x20] sm:$0xf] %v3428
        %3462 = vst [vmem:[%s3452 + $0x24] sm:$0xf] %v3429
        %3463 = vst [vmem:[%s3452 + $0x28] sm:$0xf] %v3430
        %3464 = vst [vmem:[%s3452 + $0x2c] sm:$0xf] %v3431
        %3465 = vst [vmem:[%s3452 + $0x30] sm:$0xf] %v3432
        %3466 = vst [vmem:[%s3452 + $0x34] sm:$0xf] %v3433
        %3467 = vst [vmem:[%s3452 + $0x38] sm:$0xf] %v3434
        %3468 = vst [vmem:[%s3452 + $0x3c] sm:$0xf] %v3435
        %v3469 = vpack.c.bf16 %v1597, %v1593
        %v3470 = vpack.c.bf16 %v1607, %v1603
        %v3471 = vpack.c.bf16 %v1617, %v1613
        %v3472 = vpack.c.bf16 %v1627, %v1623
        %v3473 = vpack.c.bf16 %v1637, %v1633
        %v3474 = vpack.c.bf16 %v1647, %v1643
        %v3475 = vpack.c.bf16 %v1657, %v1653
        %v3476 = vpack.c.bf16 %v1667, %v1663
        %v3485 = vunpack.c.l.b16 %v3469
        %v3486 = vunpack.c.h.b16 %v3469
        %v3487 = vunpack.c.l.b16 %v3470
        %v3488 = vunpack.c.h.b16 %v3470
        %v3489 = vunpack.c.l.b16 %v3471
        %v3490 = vunpack.c.h.b16 %v3471
        %v3491 = vunpack.c.l.b16 %v3472
        %v3492 = vunpack.c.h.b16 %v3472
        %v3493 = vunpack.c.l.b16 %v3473
        %v3494 = vunpack.c.h.b16 %v3473
        %v3495 = vunpack.c.l.b16 %v3474
        %v3496 = vunpack.c.h.b16 %v3474
        %v3497 = vunpack.c.l.b16 %v3475
        %v3498 = vunpack.c.h.b16 %v3475
        %v3499 = vunpack.c.l.b16 %v3476
        %v3500 = vunpack.c.h.b16 %v3476
        %v3501 = vpack.c.b16 %v3485, %v3485
        %v3502 = vpack.c.b16 %v3486, %v3486
        %v3503 = vpack.c.b16 %v3487, %v3487
        %v3504 = vpack.c.b16 %v3488, %v3488
        %v3505 = vpack.c.b16 %v3489, %v3489
        %v3506 = vpack.c.b16 %v3490, %v3490
        %v3507 = vpack.c.b16 %v3491, %v3491
        %v3508 = vpack.c.b16 %v3492, %v3492
        %v3509 = vpack.c.b16 %v3493, %v3493
        %v3510 = vpack.c.b16 %v3494, %v3494
        %v3511 = vpack.c.b16 %v3495, %v3495
        %v3512 = vpack.c.b16 %v3496, %v3496
        %v3513 = vpack.c.b16 %v3497, %v3497
        %v3514 = vpack.c.b16 %v3498, %v3498
        %v3515 = vpack.c.b16 %v3499, %v3499
        %v3516 = vpack.c.b16 %v3500, %v3500
        %s3533 = scalar_lea.vmem %s341, 192 [#allocation10]
        %3534 = vst [vmem:[%s3533] sm:$0xf] %v3501
        %3535 = vst [vmem:[%s3533 + $0x4] sm:$0xf] %v3502
        %3536 = vst [vmem:[%s3533 + $0x8] sm:$0xf] %v3503
        %3537 = vst [vmem:[%s3533 + $0xc] sm:$0xf] %v3504
        %3538 = vst [vmem:[%s3533 + $0x10] sm:$0xf] %v3505
        %3539 = vst [vmem:[%s3533 + $0x14] sm:$0xf] %v3506
        %3540 = vst [vmem:[%s3533 + $0x18] sm:$0xf] %v3507
        %3541 = vst [vmem:[%s3533 + $0x1c] sm:$0xf] %v3508
        %3542 = vst [vmem:[%s3533 + $0x20] sm:$0xf] %v3509
        %3543 = vst [vmem:[%s3533 + $0x24] sm:$0xf] %v3510
        %3544 = vst [vmem:[%s3533 + $0x28] sm:$0xf] %v3511
        %3545 = vst [vmem:[%s3533 + $0x2c] sm:$0xf] %v3512
        %3546 = vst [vmem:[%s3533 + $0x30] sm:$0xf] %v3513
        %3547 = vst [vmem:[%s3533 + $0x34] sm:$0xf] %v3514
        %3548 = vst [vmem:[%s3533 + $0x38] sm:$0xf] %v3515
        %3549 = vst [vmem:[%s3533 + $0x3c] sm:$0xf] %v3516
        %v3550 = vpack.c.bf16 %v2913, %v2909
        %v3551 = vpack.c.bf16 %v2923, %v2919
        %v3552 = vpack.c.bf16 %v2933, %v2929
        %v3553 = vpack.c.bf16 %v2943, %v2939
        %v3554 = vpack.c.bf16 %v2953, %v2949
        %v3555 = vpack.c.bf16 %v2963, %v2959
        %v3556 = vpack.c.bf16 %v2973, %v2969
        %v3557 = vpack.c.bf16 %v2983, %v2979
        %v3566 = vunpack.c.l.b16 %v3550
        %v3567 = vunpack.c.h.b16 %v3550
        %v3568 = vunpack.c.l.b16 %v3551
        %v3569 = vunpack.c.h.b16 %v3551
        %v3570 = vunpack.c.l.b16 %v3552
        %v3571 = vunpack.c.h.b16 %v3552
        %v3572 = vunpack.c.l.b16 %v3553
        %v3573 = vunpack.c.h.b16 %v3553
        %v3574 = vunpack.c.l.b16 %v3554
        %v3575 = vunpack.c.h.b16 %v3554
        %v3576 = vunpack.c.l.b16 %v3555
        %v3577 = vunpack.c.h.b16 %v3555
        %v3578 = vunpack.c.l.b16 %v3556
        %v3579 = vunpack.c.h.b16 %v3556
        %v3580 = vunpack.c.l.b16 %v3557
        %v3581 = vunpack.c.h.b16 %v3557
        %v3582 = vpack.c.b16 %v3566, %v3566
        %v3583 = vpack.c.b16 %v3567, %v3567
        %v3584 = vpack.c.b16 %v3568, %v3568
        %v3585 = vpack.c.b16 %v3569, %v3569
        %v3586 = vpack.c.b16 %v3570, %v3570
        %v3587 = vpack.c.b16 %v3571, %v3571
        %v3588 = vpack.c.b16 %v3572, %v3572
        %v3589 = vpack.c.b16 %v3573, %v3573
        %v3590 = vpack.c.b16 %v3574, %v3574
        %v3591 = vpack.c.b16 %v3575, %v3575
        %v3592 = vpack.c.b16 %v3576, %v3576
        %v3593 = vpack.c.b16 %v3577, %v3577
        %v3594 = vpack.c.b16 %v3578, %v3578
        %v3595 = vpack.c.b16 %v3579, %v3579
        %v3596 = vpack.c.b16 %v3580, %v3580
        %v3597 = vpack.c.b16 %v3581, %v3581
        %s3614 = scalar_lea.vmem %s348, 192 [#allocation11]
        %3615 = vst [vmem:[%s3614] sm:$0xf] %v3582
        %3616 = vst [vmem:[%s3614 + $0x4] sm:$0xf] %v3583
        %3617 = vst [vmem:[%s3614 + $0x8] sm:$0xf] %v3584
        %3618 = vst [vmem:[%s3614 + $0xc] sm:$0xf] %v3585
        %3619 = vst [vmem:[%s3614 + $0x10] sm:$0xf] %v3586
        %3620 = vst [vmem:[%s3614 + $0x14] sm:$0xf] %v3587
        %3621 = vst [vmem:[%s3614 + $0x18] sm:$0xf] %v3588
        %3622 = vst [vmem:[%s3614 + $0x1c] sm:$0xf] %v3589
        %3623 = vst [vmem:[%s3614 + $0x20] sm:$0xf] %v3590
        %3624 = vst [vmem:[%s3614 + $0x24] sm:$0xf] %v3591
        %3625 = vst [vmem:[%s3614 + $0x28] sm:$0xf] %v3592
        %3626 = vst [vmem:[%s3614 + $0x2c] sm:$0xf] %v3593
        %3627 = vst [vmem:[%s3614 + $0x30] sm:$0xf] %v3594
        %3628 = vst [vmem:[%s3614 + $0x34] sm:$0xf] %v3595
        %3629 = vst [vmem:[%s3614 + $0x38] sm:$0xf] %v3596
        %3630 = vst [vmem:[%s3614 + $0x3c] sm:$0xf] %v3597
        %s3631 = sand.u32 %s150, 1
        %s3632 = scalar_lea.sflag [#allocation4], %s3631
        %s3633 = sand.u32 %s150, 1
        %s3634 = smul.addr %s3633, 256
        %s3635 = scalar_lea.vmem [#allocation10], %s3634
        %s3636 = sand.u32 %s178, 1
        %s3637 = scalar_lea.sflag [#allocation12], %s3636
        %s3638 = sand.u32 %s178, 1
        %s3639 = smul.addr %s3638, 256
        %s3640 = scalar_lea.vmem [#allocation11], %s3639
        // Predicated region
        $region53: #{tpu_custom_call.1} parent=35 // pred_check
          %p3641 = pneg %p160
        $region54: #{tpu_custom_call.1} parent=35 // pred_check_branch
          %3643 = sbr.rel (%p3641) target = $region56
        $region55: #{tpu_custom_call.1} parent=35 // pred_region
          #allocation14 [shape = 'u32[6]{0}', space=smem, size = 0x18, scoped, tag = 'DMA stride descriptor']
          %s3644 = smul.u32 16, %s35
          %s3646 = ssub.s32 4096, 4096
          %3647 = vsyncadd %s3632, %s3646
          %s3648 = smul.addr %s34, 128
          %s3649 = sadd.s32 %s3644, %s3648
          %s3650 = smul.addr %s3649, 64
          %s3651 = scalar_lea.hbm %s4, %s3650
          %s3653 = sshll.u32 1, 14
          %s3654 = sxor.u32 4294967295, %s3653
          %s3657 = sshll.u32 7, 18
          %s3658 = sxor.u32 4294967295, %s3657
          %s3659 = sand.u32 0, %s3658
          %s3661 = sor.u32 %s3659, 0
          %s3662 = sshll.u32 %s3635, 4
          %s3663 = int_to_ptr.vmem [resolvable:$true] %s3662
          %3669 = sst [smem:[#allocation14]] 1024
          %s3670 = scalar_lea.smem [#allocation14], 1
          %3671 = sst [smem:[%s3670]] 2048
          %s3672 = scalar_lea.smem [#allocation14], 2
          %3673 = sst [smem:[%s3672]] 16
          %s3674 = scalar_lea.smem [#allocation14], 3
          %3675 = sst [smem:[%s3674]] 64
          %s3676 = scalar_lea.smem [#allocation14], 4
          %3677 = sst [smem:[%s3676]] 64
          %s3678 = scalar_lea.smem [#allocation14], 5
          %3679 = sst [smem:[%s3678]] 4
          %3681 = dma.general %s3663, 4096, %s3651, %s3632, 131072, [#allocation14], %s3661, 0
        $region56: #{tpu_custom_call.1} parent=35 // pred_fallthru
          _
        // Predicated region
        $region57: #{tpu_custom_call.1} parent=35 // pred_check
          %p3682 = pneg %p188
        $region58: #{tpu_custom_call.1} parent=35 // pred_check_branch
          %3684 = sbr.rel (%p3682) target = $region60
        $region59: #{tpu_custom_call.1} parent=35 // pred_region
          #allocation16 [shape = 'u32[6]{0}', space=smem, size = 0x18, scoped, tag = 'DMA stride descriptor']
          %s3685 = smul.u32 16, %s35
          %s3687 = ssub.s32 4096, 4096
          %3688 = vsyncadd %s3637, %s3687
          %s3689 = smul.addr %s34, 128
          %s3690 = sadd.s32 %s3685, %s3689
          %s3691 = smul.addr %s3690, 64
          %s3692 = scalar_lea.hbm %s5, %s3691
          %s3694 = sshll.u32 1, 14
          %s3695 = sxor.u32 4294967295, %s3694
          %s3698 = sshll.u32 7, 18
          %s3699 = sxor.u32 4294967295, %s3698
          %s3700 = sand.u32 0, %s3699
          %s3702 = sor.u32 %s3700, 0
          %s3703 = sshll.u32 %s3640, 4
          %s3704 = int_to_ptr.vmem [resolvable:$true] %s3703
          %3710 = sst [smem:[#allocation16]] 1024
          %s3711 = scalar_lea.smem [#allocation16], 1
          %3712 = sst [smem:[%s3711]] 2048
          %s3713 = scalar_lea.smem [#allocation16], 2
          %3714 = sst [smem:[%s3713]] 16
          %s3715 = scalar_lea.smem [#allocation16], 3
          %3716 = sst [smem:[%s3715]] 64
          %s3717 = scalar_lea.smem [#allocation16], 4
          %3718 = sst [smem:[%s3717]] 64
          %s3719 = scalar_lea.smem [#allocation16], 5
          %3720 = sst [smem:[%s3719]] 4
          %3722 = dma.general %s3704, 4096, %s3692, %s3637, 131072, [#allocation16], %s3702, 0
        $region60: #{tpu_custom_call.1} parent=35 // pred_fallthru
          _
      $region36: #{tpu_custom_call.1} parent=5 // pred_fallthru
        _
      %p3723 = scmp.le.s32.totalorder 2, %s25
      // Predicated region
      $region61: #{tpu_custom_call.1} parent=5 // pred_check
        %p3724 = pneg %p3723
      $region62: #{tpu_custom_call.1} parent=5 // pred_check_branch
        %3726 = sbr.rel (%p3724) target = $region64
      $region63: #{tpu_custom_call.1} parent=5 // pred_region
        %s3727 = ssub.s32 %s25, 2
        // Predicated region
        $region65: #{tpu_custom_call.1} parent=63 // pred_check
          %p3728 = pneg %p166
        $region66: #{tpu_custom_call.1} parent=63 // pred_check_branch
          %3730 = sbr.rel (%p3728) target = $region68
        $region67: #{tpu_custom_call.1} parent=63 // pred_region
          %s3731 = sand.u32 %s151, 1
          %s3732 = scalar_lea.sflag [#allocation4], %s3731
          %s3733 = sand.u32 %s151, 1
          %s3734 = smul.addr %s3733, 256
          %s3735 = scalar_lea.vmem [#allocation10], %s3734
          %3736 = dma.done %s3732, 4096
        $region68: #{tpu_custom_call.1} parent=63 // pred_fallthru
          _
        // Predicated region
        $region69: #{tpu_custom_call.1} parent=63 // pred_check
          %p3737 = pneg %p194
        $region70: #{tpu_custom_call.1} parent=63 // pred_check_branch
          %3739 = sbr.rel (%p3737) target = $region72
        $region71: #{tpu_custom_call.1} parent=63 // pred_region
          %s3740 = sand.u32 %s179, 1
          %s3741 = scalar_lea.sflag [#allocation12], %s3740
          %s3742 = sand.u32 %s179, 1
          %s3743 = smul.addr %s3742, 256
          %s3744 = scalar_lea.vmem [#allocation11], %s3743
          %3745 = dma.done %s3741, 4096
        $region72: #{tpu_custom_call.1} parent=63 // pred_fallthru
          _
      $region64: #{tpu_custom_call.1} parent=5 // pred_fallthru
        _
    $region6: #{tpu_custom_call.1} parent=1 // loop_footer
      %s29 = sadd.s32 1, %s25
    $region7: #{tpu_custom_call.1} parent=1 // loop_footer_branch
      %24 = sbr.rel target = $region3
    $region8: #{tpu_custom_call.1} parent=1 // loop_exit
      _
    %3746 = vsyncpa [#allocation3], 1
    %s3747 = scalar_lea.sflag [#allocation3], 1
    %3748 = vsyncpa %s3747, 1
    %3749 = vsyncpa [#allocation6], 1
    %s3750 = scalar_lea.sflag [#allocation6], 1
    %3751 = vsyncpa %s3750, 1
    %3752 = vsyncpa [#allocation9], 1
    %3753 = vsyncpa [#allocation4], 1
    %s3754 = scalar_lea.sflag [#allocation4], 1
    %3755 = vsyncpa %s3754, 1
    %3756 = vsyncpa [#allocation12], 1
    %s3757 = scalar_lea.sflag [#allocation12], 1
    %3758 = vsyncpa %s3757, 1

</llo_original>
